<compile_context>
chip_gen: v7x
topology: tpu7x:2x2x1
jax: 0.10.0
libtpu: 0.0.40
codegen_flags: <defaults>
</compile_context>

<pallas_src>
import functools

import jax
import jax.numpy as jnp
import numpy as np
from jax.experimental import pallas as pl
from jax.experimental.pallas import tpu as pltpu


def make_decoder_kernel(seq_len: int, batch: int, num_layers: int, hidden_size: int):
    T, B, L, Hd = seq_len, batch, num_layers, hidden_size
    H2, H3 = 2 * Hd, 3 * Hd

    def kernel(embed2d_ref, h0_ref, Hc_ref, HcT_ref,
               w0_ref, wih_ref, whh_ref, bih_ref, bhh_ref,
               l1_ref, l2a_ref, l2b_ref,
               out_ref, hN_ref):
        # ---- hoisted layer-0 input projection: one fused (T*B,E)x(E,3H) matmul
        #      for all time steps, layer-0 input bias folded in once -----------
        x_all = embed2d_ref[...]                                    # (T*B, E), t-major
        gi0_all = (jnp.dot(x_all, w0_ref[...],
                           preferred_element_type=jnp.float32)
                   + bih_ref[0])                                    # (T*B, 3H)
        gi0_all = gi0_all.reshape(T, B, H3)                         # leading time axis

        l1 = l1_ref[...]
        l2a = l2a_ref[...]
        l2b = l2b_ref[...]

        # Hidden states stay in vregs across the (unrolled) time loop.
        h = [h0_ref[i] for i in range(L)]
        o_steps = []

        # NOTE: T is small & static here -> full unroll is fine.
        # TODO(synk): for production T/H switch to lax.fori_loop(unroll=2) with a
        # VMEM scratch for the collected top-layer states (bounds vreg pressure).
        for t in range(T):
            x = None
            for i in range(L):
                h_prev = h[i]                                       # (B, H)
                if i == 0:
                    gi = gi0_all[t]                                 # bias pre-folded
                else:
                    gi = (jnp.dot(x, wih_ref[i - 1],
                                  preferred_element_type=jnp.float32)
                          + bih_ref[i])                             # (B, 3H)
                gh = (jnp.dot(h_prev, whh_ref[i],
                              preferred_element_type=jnp.float32)
                      + bhh_ref[i])                                 # (B, 3H)
                # Fused r|z gates: one sigmoid on the concatenated slice.
                rz = jax.nn.sigmoid(gi[:, :H2] + gh[:, :H2])
                r = rz[:, :Hd]
                z = rz[:, Hd:]
                # b_hn stays inside r * (...) because gh already contains it.
                n = jnp.tanh(gi[:, H2:] + r * gh[:, H2:])
                h_new = (1.0 - z) * n + z * h_prev
                h[i] = h_new
                # TODO(synk): inter-layer nn.Dropout is identity (eval mode).
                x = h_new
            o_steps.append(x)                                       # top-layer (B, H)

        # ---- GlobalAttention, hoisted out of the recurrence (one batched pass)
        O_bt = jnp.stack(o_steps, axis=1)                           # (B, T, H)
        O_2d = O_bt.reshape(B * T, Hd)                              # b-major slab
        q1 = jnp.dot(O_2d, l1,
                     preferred_element_type=jnp.float32).reshape(B, T, Hd)
        Hc = Hc_ref[...]                                            # (B, S, H)
        HcT = HcT_ref[...]                                          # (B, H, S)
        s = jnp.einsum('bth,bhs->bts', q1, HcT,
                       preferred_element_type=jnp.float32)          # (B, T, S)
        m = jnp.max(s, axis=-1, keepdims=True)
        e = jnp.exp(s - m)
        denom = jnp.sum(e, axis=-1, keepdims=True)
        a = e * pl.reciprocal(denom, approx=True)                   # softmax over S
        c = jnp.einsum('bts,bsh->bth', a, Hc,
                       preferred_element_type=jnp.float32)          # (B, T, H)
        att = jnp.tanh(
            jnp.dot(c.reshape(B * T, Hd), l2a,
                    preferred_element_type=jnp.float32)
            + jnp.dot(O_2d, l2b, preferred_element_type=jnp.float32))
        # TODO(synk): output nn.Dropout is identity (eval mode).

        out_ref[...] = att                                          # one dense store

        # Final hidden state written once (not every time step).
        for i in range(L):
            hN_ref[i] = h[i]

    return kernel


def decoder_forward(tokens, h0, H_ctx, params, *, num_layers, hidden_size):
    """tokens: (T, B) int32; h0: (L, B, H); H_ctx: (S_enc, B, H)."""
    T, B = tokens.shape
    L, _, Hd = h0.shape
    assert L == num_layers and Hd == hidden_size

    # Glue: embedding lookup + encoder-context transposes (layout plumbing only).
    embed = params["emb"][tokens]                     # (T, B, E)
    E = embed.shape[-1]
    embed2d = embed.reshape(T * B, E)                 # t-major slab
    Hc_bsh = jnp.transpose(H_ctx, (1, 0, 2))          # (B, S, H)  for context matmul
    Hc_bhs = jnp.transpose(H_ctx, (1, 2, 0))          # (B, H, S)  for score matmul
    S = Hc_bsh.shape[1]
    Lm1 = max(1, L - 1)
    H3 = 3 * Hd

    kernel = make_decoder_kernel(T, B, L, Hd)

    grid_spec = pltpu.PrefetchScalarGridSpec(
        num_scalar_prefetch=0,
        grid=(1,),                                    # single kernel invocation
        in_specs=[
            pl.BlockSpec((T * B, E), lambda i: (0, 0)),          # embed (all steps)
            pl.BlockSpec((L, B, Hd), lambda i: (0, 0, 0)),       # h0
            pl.BlockSpec((B, S, Hd), lambda i: (0, 0, 0)),       # encoder context
            pl.BlockSpec((B, Hd, S), lambda i: (0, 0, 0)),       # context, pre-transposed
            pl.BlockSpec((E, H3), lambda i: (0, 0)),             # W_ih layer 0 (gates fused)
            pl.BlockSpec((Lm1, Hd, H3), lambda i: (0, 0, 0)),    # W_ih layers 1.. (fused)
            pl.BlockSpec((L, Hd, H3), lambda i: (0, 0, 0)),      # W_hh (fused)
            pl.BlockSpec((L, 1, H3), lambda i: (0, 0, 0)),       # b_ih (fused)
            pl.BlockSpec((L, 1, H3), lambda i: (0, 0, 0)),       # b_hh (fused)
            pl.BlockSpec((Hd, Hd), lambda i: (0, 0)),            # attention L1^T
            pl.BlockSpec((Hd, Hd), lambda i: (0, 0)),            # L2^T[:H]  (for c)
            pl.BlockSpec((Hd, Hd), lambda i: (0, 0)),            # L2^T[H:]  (for o)
        ],
        out_specs=[
            pl.BlockSpec((B * T, Hd), lambda i: (0, 0)),         # dense output slab
            pl.BlockSpec((L, B, Hd), lambda i: (0, 0, 0)),       # final hidden
        ],
    )

    out_flat, hN = pl.pallas_call(
        kernel,
        grid_spec=grid_spec,
        out_shape=(
            jax.ShapeDtypeStruct((B * T, Hd), jnp.float32),
            jax.ShapeDtypeStruct((L, B, Hd), jnp.float32),
        ),
        compiler_params=pltpu.CompilerParams(
            dimension_semantics=("arbitrary",)),
    )(
        embed2d, h0, Hc_bsh, Hc_bhs,
        params["w0"], params["wih"], params["whh"],
        params["bih"], params["bhh"],
        params["l1_t"], params["l2a_t"], params["l2b_t"],
    )
    out = out_flat.reshape(B, T, Hd).transpose(1, 0, 2)          # (T, B, H)
    return out, hN


# ----------------------- pure-JAX reference (for checking) -----------------------
def decoder_reference(tokens, h0, H_ctx, params, *, num_layers, hidden_size):
    Hd = hidden_size
    embed = params["emb"][tokens]                    # (T, B, E)
    Hc = jnp.transpose(H_ctx, (1, 0, 2))             # (B, S, H)
    h = [h0[i] for i in range(num_layers)]
    outs = []
    for t in range(tokens.shape[0]):
        x = embed[t]
        for i in range(num_layers):
            wih = params["w0"] if i == 0 else params["wih"][i - 1]
            gi = x @ wih + params["bih"][i]
            gh = h[i] @ params["whh"][i] + params["bhh"][i]
            r = jax.nn.sigmoid(gi[:, :Hd] + gh[:, :Hd])
            z = jax.nn.sigmoid(gi[:, Hd:2 * Hd] + gh[:, Hd:2 * Hd])
            n = jnp.tanh(gi[:, 2 * Hd:] + r * gh[:, 2 * Hd:])
            h[i] = (1.0 - z) * n + z * h[i]
            x = h[i]
        o = x
        q1 = o @ params["l1_t"]
        a = jax.nn.softmax(jnp.einsum("bsh,bh->bs", Hc, q1), axis=1)
        c = jnp.einsum("bs,bsh->bh", a, Hc)
        outs.append(jnp.tanh(c @ params["l2a_t"] + o @ params["l2b_t"]))
    return jnp.stack(outs), jnp.stack(h)


# ---------------------------------- main ----------------------------------------
if __name__ == "__main__":
    vocab = 20
    input_size = 32      # embedding dim == GRU layer-0 input size
    hidden_size = 32
    num_layers = 2
    dec_seq, enc_seq, batch = 6, 8, 2

    key = jax.random.PRNGKey(0)
    ks = jax.random.split(key, 16)
    scale = 0.1

    def rnd(k, shape):
        return (scale * jax.random.normal(k, shape)).astype(jnp.float32)

    Lm1 = max(1, num_layers - 1)
    params = {
        "emb": rnd(ks[0], (vocab, input_size)),
        # GRU weights, pre-transposed (x @ W form), gates concatenated [r|z|n]
        # along the output dimension:
        "w0": rnd(ks[1], (input_size, 3 * hidden_size)),
        "wih": rnd(ks[2], (Lm1, hidden_size, 3 * hidden_size)),
        "whh": rnd(ks[3], (num_layers, hidden_size, 3 * hidden_size)),
        "bih": rnd(ks[4], (num_layers, 1, 3 * hidden_size)),
        "bhh": rnd(ks[5], (num_layers, 1, 3 * hidden_size)),
        # GlobalAttention: L1 (H->H, no bias), L2 (2H->H, no bias) split in halves.
        "l1_t": rnd(ks[6], (hidden_size, hidden_size)),
        "l2a_t": rnd(ks[7], (hidden_size, hidden_size)),
        "l2b_t": rnd(ks[8], (hidden_size, hidden_size)),
    }

    tokens = jax.random.randint(ks[9], (dec_seq, batch), 0, vocab, dtype=jnp.int32)
    h0 = rnd(ks[10], (num_layers, batch, hidden_size))
    H_ctx = rnd(ks[11], (enc_seq, batch, hidden_size))

    fwd = jax.jit(functools.partial(decoder_forward,
                                    num_layers=num_layers, hidden_size=hidden_size))
    out, hN = fwd(tokens, h0, H_ctx, params)
    jax.block_until_ready((out, hN))

    ref_out, ref_hN = decoder_reference(tokens, h0, H_ctx, params,
                                        num_layers=num_layers, hidden_size=hidden_size)
    np.testing.assert_allclose(np.asarray(out), np.asarray(ref_out), rtol=1e-3, atol=1e-3)
    np.testing.assert_allclose(np.asarray(hN), np.asarray(ref_hN), rtol=1e-3, atol=1e-3)

    print("KERNEL_OK")
</pallas_src>

<mosaic_0001>
module attributes {stable_mosaic.version = 11 : i64} {
  func.func @kernel(%arg0: i32, %arg1: memref<12x32xf32, #tpu.memory_space<vmem>>, %arg2: memref<2x2x32xf32, #tpu.memory_space<vmem>>, %arg3: memref<2x8x32xf32, #tpu.memory_space<vmem>>, %arg4: memref<2x32x8xf32, #tpu.memory_space<vmem>>, %arg5: memref<32x96xf32, #tpu.memory_space<vmem>>, %arg6: memref<1x32x96xf32, #tpu.memory_space<vmem>>, %arg7: memref<2x32x96xf32, #tpu.memory_space<vmem>>, %arg8: memref<2x1x96xf32, #tpu.memory_space<vmem>>, %arg9: memref<2x1x96xf32, #tpu.memory_space<vmem>>, %arg10: memref<32x32xf32, #tpu.memory_space<vmem>>, %arg11: memref<32x32xf32, #tpu.memory_space<vmem>>, %arg12: memref<32x32xf32, #tpu.memory_space<vmem>>, %arg13: memref<12x32xf32, #tpu.memory_space<vmem>>, %arg14: memref<2x2x32xf32, #tpu.memory_space<vmem>>) attributes {dimension_semantics = [#tpu.dimension_semantics<arbitrary>], iteration_bounds = array<i64: 1>, scalar_prefetch = 0 : i64, scratch_operands = 0 : i64, tpu.core_type = #tpu.core_type<tc>, window_params = [{pipeline_mode = #tpu.pipeline_mode<synchronous>, transform_indices = @transform_0, window_bounds = array<i64: 12, 32>}, {pipeline_mode = #tpu.pipeline_mode<synchronous>, transform_indices = @transform_1, window_bounds = array<i64: 2, 2, 32>}, {pipeline_mode = #tpu.pipeline_mode<synchronous>, transform_indices = @transform_2, window_bounds = array<i64: 2, 8, 32>}, {pipeline_mode = #tpu.pipeline_mode<synchronous>, transform_indices = @transform_3, window_bounds = array<i64: 2, 32, 8>}, {pipeline_mode = #tpu.pipeline_mode<synchronous>, transform_indices = @transform_4, window_bounds = array<i64: 32, 96>}, {pipeline_mode = #tpu.pipeline_mode<synchronous>, transform_indices = @transform_5, window_bounds = array<i64: 1, 32, 96>}, {pipeline_mode = #tpu.pipeline_mode<synchronous>, transform_indices = @transform_6, window_bounds = array<i64: 2, 32, 96>}, {pipeline_mode = #tpu.pipeline_mode<synchronous>, transform_indices = @transform_7, window_bounds = array<i64: 2, 1, 96>}, {pipeline_mode = #tpu.pipeline_mode<synchronous>, transform_indices = @transform_8, window_bounds = array<i64: 2, 1, 96>}, {pipeline_mode = #tpu.pipeline_mode<synchronous>, transform_indices = @transform_9, window_bounds = array<i64: 32, 32>}, {pipeline_mode = #tpu.pipeline_mode<synchronous>, transform_indices = @transform_10, window_bounds = array<i64: 32, 32>}, {pipeline_mode = #tpu.pipeline_mode<synchronous>, transform_indices = @transform_11, window_bounds = array<i64: 32, 32>}, {pipeline_mode = #tpu.pipeline_mode<synchronous>, transform_indices = @transform_12, window_bounds = array<i64: 12, 32>}, {pipeline_mode = #tpu.pipeline_mode<synchronous>, transform_indices = @transform_13, window_bounds = array<i64: 2, 2, 32>}]} {
    %c0 = arith.constant 0 : index
    %c0_0 = arith.constant 0 : index
    %0 = vector.load %arg1[%c0, %c0_0] : memref<12x32xf32, #tpu.memory_space<vmem>>, vector<12x32xf32>
    %c0_1 = arith.constant 0 : index
    %c0_2 = arith.constant 0 : index
    %1 = vector.load %arg5[%c0_1, %c0_2] : memref<32x96xf32, #tpu.memory_space<vmem>>, vector<32x96xf32>
    %cst = arith.constant dense<0.000000e+00> : vector<12x96xf32>
    %2 = tpu.matmul %0, %1, %cst {dimension_numbers = #tpu.dot_dimension_numbers<[1], [0], [0], [1], [0, 0, 1, 1], [], []>} : vector<12x32xf32>, vector<32x96xf32>, vector<12x96xf32> -> vector<12x96xf32>
    %c0_3 = arith.constant 0 : index
    %c0_4 = arith.constant 0 : index
    %c0_5 = arith.constant 0 : index
    %3 = vector.load %arg8[%c0_3, %c0_4, %c0_5] : memref<2x1x96xf32, #tpu.memory_space<vmem>>, vector<1x1x96xf32>
    %4 = vector.shape_cast %3 : vector<1x1x96xf32> to vector<1x96xf32>
    %5 = vector.broadcast %4 : vector<1x96xf32> to vector<12x96xf32>
    %6 = arith.addf %2, %5 : vector<12x96xf32>
    %7 = vector.shape_cast %6 : vector<12x96xf32> to vector<6x2x96xf32>
    %c0_6 = arith.constant 0 : index
    %c0_7 = arith.constant 0 : index
    %8 = vector.load %arg10[%c0_6, %c0_7] : memref<32x32xf32, #tpu.memory_space<vmem>>, vector<32x32xf32>
    %c0_8 = arith.constant 0 : index
    %c0_9 = arith.constant 0 : index
    %9 = vector.load %arg11[%c0_8, %c0_9] : memref<32x32xf32, #tpu.memory_space<vmem>>, vector<32x32xf32>
    %c0_10 = arith.constant 0 : index
    %c0_11 = arith.constant 0 : index
    %10 = vector.load %arg12[%c0_10, %c0_11] : memref<32x32xf32, #tpu.memory_space<vmem>>, vector<32x32xf32>
    %c0_12 = arith.constant 0 : index
    %c0_13 = arith.constant 0 : index
    %c0_14 = arith.constant 0 : index
    %11 = vector.load %arg2[%c0_12, %c0_13, %c0_14] : memref<2x2x32xf32, #tpu.memory_space<vmem>>, vector<1x2x32xf32>
    %12 = vector.shape_cast %11 : vector<1x2x32xf32> to vector<2x32xf32>
    %c1 = arith.constant 1 : index
    %c0_15 = arith.constant 0 : index
    %c0_16 = arith.constant 0 : index
    %13 = vector.load %arg2[%c1, %c0_15, %c0_16] : memref<2x2x32xf32, #tpu.memory_space<vmem>>, vector<1x2x32xf32>
    %14 = vector.shape_cast %13 : vector<1x2x32xf32> to vector<2x32xf32>
    %15 = vector.extract_strided_slice %7 {offsets = [0, 0, 0], sizes = [1, 2, 96], strides = [1, 1, 1]} : vector<6x2x96xf32> to vector<1x2x96xf32>
    %16 = vector.shape_cast %15 : vector<1x2x96xf32> to vector<2x96xf32>
    %c0_17 = arith.constant 0 : index
    %c0_18 = arith.constant 0 : index
    %c0_19 = arith.constant 0 : index
    %17 = vector.load %arg7[%c0_17, %c0_18, %c0_19] : memref<2x32x96xf32, #tpu.memory_space<vmem>>, vector<1x32x96xf32>
    %18 = vector.shape_cast %17 : vector<1x32x96xf32> to vector<32x96xf32>
    %cst_20 = arith.constant dense<0.000000e+00> : vector<2x96xf32>
    %19 = tpu.matmul %12, %18, %cst_20 {dimension_numbers = #tpu.dot_dimension_numbers<[1], [0], [0], [1], [0, 0, 1, 1], [], []>} : vector<2x32xf32>, vector<32x96xf32>, vector<2x96xf32> -> vector<2x96xf32>
    %c0_21 = arith.constant 0 : index
    %c0_22 = arith.constant 0 : index
    %c0_23 = arith.constant 0 : index
    %20 = vector.load %arg9[%c0_21, %c0_22, %c0_23] : memref<2x1x96xf32, #tpu.memory_space<vmem>>, vector<1x1x96xf32>
    %21 = vector.shape_cast %20 : vector<1x1x96xf32> to vector<1x96xf32>
    %22 = vector.broadcast %21 : vector<1x96xf32> to vector<2x96xf32>
    %23 = arith.addf %19, %22 : vector<2x96xf32>
    %24 = vector.extract_strided_slice %16 {offsets = [0, 0], sizes = [2, 64], strides = [1, 1]} : vector<2x96xf32> to vector<2x64xf32>
    %25 = vector.extract_strided_slice %23 {offsets = [0, 0], sizes = [2, 64], strides = [1, 1]} : vector<2x96xf32> to vector<2x64xf32>
    %26 = arith.addf %24, %25 : vector<2x64xf32>
    %27 = arith.negf %26 : vector<2x64xf32>
    %28 = math.exp %27 : vector<2x64xf32>
    %cst_24 = arith.constant 1.000000e+00 : f32
    %29 = vector.broadcast %cst_24 : f32 to vector<2x64xf32>
    %30 = arith.addf %29, %28 : vector<2x64xf32>
    %31 = arith.divf %29, %30 : vector<2x64xf32>
    %32 = vector.extract_strided_slice %31 {offsets = [0, 0], sizes = [2, 32], strides = [1, 1]} : vector<2x64xf32> to vector<2x32xf32>
    %33 = vector.extract_strided_slice %31 {offsets = [0, 32], sizes = [2, 32], strides = [1, 1]} : vector<2x64xf32> to vector<2x32xf32>
    %34 = vector.extract_strided_slice %16 {offsets = [0, 64], sizes = [2, 32], strides = [1, 1]} : vector<2x96xf32> to vector<2x32xf32>
    %35 = vector.extract_strided_slice %23 {offsets = [0, 64], sizes = [2, 32], strides = [1, 1]} : vector<2x96xf32> to vector<2x32xf32>
    %36 = arith.mulf %32, %35 : vector<2x32xf32>
    %37 = arith.addf %34, %36 : vector<2x32xf32>
    %38 = math.tanh %37 : vector<2x32xf32>
    %cst_25 = arith.constant 1.000000e+00 : f32
    %39 = vector.broadcast %cst_25 : f32 to vector<2x32xf32>
    %40 = arith.subf %39, %33 : vector<2x32xf32>
    %41 = arith.mulf %40, %38 : vector<2x32xf32>
    %42 = arith.mulf %33, %12 : vector<2x32xf32>
    %43 = arith.addf %41, %42 : vector<2x32xf32>
    %c0_26 = arith.constant 0 : index
    %c0_27 = arith.constant 0 : index
    %c0_28 = arith.constant 0 : index
    %44 = vector.load %arg6[%c0_26, %c0_27, %c0_28] : memref<1x32x96xf32, #tpu.memory_space<vmem>>, vector<1x32x96xf32>
    %45 = vector.shape_cast %44 : vector<1x32x96xf32> to vector<32x96xf32>
    %cst_29 = arith.constant dense<0.000000e+00> : vector<2x96xf32>
    %46 = tpu.matmul %43, %45, %cst_29 {dimension_numbers = #tpu.dot_dimension_numbers<[1], [0], [0], [1], [0, 0, 1, 1], [], []>} : vector<2x32xf32>, vector<32x96xf32>, vector<2x96xf32> -> vector<2x96xf32>
    %c1_30 = arith.constant 1 : index
    %c0_31 = arith.constant 0 : index
    %c0_32 = arith.constant 0 : index
    %47 = vector.load %arg8[%c1_30, %c0_31, %c0_32] : memref<2x1x96xf32, #tpu.memory_space<vmem>>, vector<1x1x96xf32>
    %48 = vector.shape_cast %47 : vector<1x1x96xf32> to vector<1x96xf32>
    %49 = vector.broadcast %48 : vector<1x96xf32> to vector<2x96xf32>
    %50 = arith.addf %46, %49 : vector<2x96xf32>
    %c1_33 = arith.constant 1 : index
    %c0_34 = arith.constant 0 : index
    %c0_35 = arith.constant 0 : index
    %51 = vector.load %arg7[%c1_33, %c0_34, %c0_35] : memref<2x32x96xf32, #tpu.memory_space<vmem>>, vector<1x32x96xf32>
    %52 = vector.shape_cast %51 : vector<1x32x96xf32> to vector<32x96xf32>
    %cst_36 = arith.constant dense<0.000000e+00> : vector<2x96xf32>
    %53 = tpu.matmul %14, %52, %cst_36 {dimension_numbers = #tpu.dot_dimension_numbers<[1], [0], [0], [1], [0, 0, 1, 1], [], []>} : vector<2x32xf32>, vector<32x96xf32>, vector<2x96xf32> -> vector<2x96xf32>
    %c1_37 = arith.constant 1 : index
    %c0_38 = arith.constant 0 : index
    %c0_39 = arith.constant 0 : index
    %54 = vector.load %arg9[%c1_37, %c0_38, %c0_39] : memref<2x1x96xf32, #tpu.memory_space<vmem>>, vector<1x1x96xf32>
    %55 = vector.shape_cast %54 : vector<1x1x96xf32> to vector<1x96xf32>
    %56 = vector.broadcast %55 : vector<1x96xf32> to vector<2x96xf32>
    %57 = arith.addf %53, %56 : vector<2x96xf32>
    %58 = vector.extract_strided_slice %50 {offsets = [0, 0], sizes = [2, 64], strides = [1, 1]} : vector<2x96xf32> to vector<2x64xf32>
    %59 = vector.extract_strided_slice %57 {offsets = [0, 0], sizes = [2, 64], strides = [1, 1]} : vector<2x96xf32> to vector<2x64xf32>
    %60 = arith.addf %58, %59 : vector<2x64xf32>
    %61 = arith.negf %60 : vector<2x64xf32>
    %62 = math.exp %61 : vector<2x64xf32>
    %cst_40 = arith.constant 1.000000e+00 : f32
    %63 = vector.broadcast %cst_40 : f32 to vector<2x64xf32>
    %64 = arith.addf %63, %62 : vector<2x64xf32>
    %65 = arith.divf %63, %64 : vector<2x64xf32>
    %66 = vector.extract_strided_slice %65 {offsets = [0, 0], sizes = [2, 32], strides = [1, 1]} : vector<2x64xf32> to vector<2x32xf32>
    %67 = vector.extract_strided_slice %65 {offsets = [0, 32], sizes = [2, 32], strides = [1, 1]} : vector<2x64xf32> to vector<2x32xf32>
    %68 = vector.extract_strided_slice %50 {offsets = [0, 64], sizes = [2, 32], strides = [1, 1]} : vector<2x96xf32> to vector<2x32xf32>
    %69 = vector.extract_strided_slice %57 {offsets = [0, 64], sizes = [2, 32], strides = [1, 1]} : vector<2x96xf32> to vector<2x32xf32>
    %70 = arith.mulf %66, %69 : vector<2x32xf32>
    %71 = arith.addf %68, %70 : vector<2x32xf32>
    %72 = math.tanh %71 : vector<2x32xf32>
    %cst_41 = arith.constant 1.000000e+00 : f32
    %73 = vector.broadcast %cst_41 : f32 to vector<2x32xf32>
    %74 = arith.subf %73, %67 : vector<2x32xf32>
    %75 = arith.mulf %74, %72 : vector<2x32xf32>
    %76 = arith.mulf %67, %14 : vector<2x32xf32>
    %77 = arith.addf %75, %76 : vector<2x32xf32>
    %78 = vector.extract_strided_slice %7 {offsets = [1, 0, 0], sizes = [1, 2, 96], strides = [1, 1, 1]} : vector<6x2x96xf32> to vector<1x2x96xf32>
    %79 = vector.shape_cast %78 : vector<1x2x96xf32> to vector<2x96xf32>
    %c0_42 = arith.constant 0 : index
    %c0_43 = arith.constant 0 : index
    %c0_44 = arith.constant 0 : index
    %80 = vector.load %arg7[%c0_42, %c0_43, %c0_44] : memref<2x32x96xf32, #tpu.memory_space<vmem>>, vector<1x32x96xf32>
    %81 = vector.shape_cast %80 : vector<1x32x96xf32> to vector<32x96xf32>
    %cst_45 = arith.constant dense<0.000000e+00> : vector<2x96xf32>
    %82 = tpu.matmul %43, %81, %cst_45 {dimension_numbers = #tpu.dot_dimension_numbers<[1], [0], [0], [1], [0, 0, 1, 1], [], []>} : vector<2x32xf32>, vector<32x96xf32>, vector<2x96xf32> -> vector<2x96xf32>
    %c0_46 = arith.constant 0 : index
    %c0_47 = arith.constant 0 : index
    %c0_48 = arith.constant 0 : index
    %83 = vector.load %arg9[%c0_46, %c0_47, %c0_48] : memref<2x1x96xf32, #tpu.memory_space<vmem>>, vector<1x1x96xf32>
    %84 = vector.shape_cast %83 : vector<1x1x96xf32> to vector<1x96xf32>
    %85 = vector.broadcast %84 : vector<1x96xf32> to vector<2x96xf32>
    %86 = arith.addf %82, %85 : vector<2x96xf32>
    %87 = vector.extract_strided_slice %79 {offsets = [0, 0], sizes = [2, 64], strides = [1, 1]} : vector<2x96xf32> to vector<2x64xf32>
    %88 = vector.extract_strided_slice %86 {offsets = [0, 0], sizes = [2, 64], strides = [1, 1]} : vector<2x96xf32> to vector<2x64xf32>
    %89 = arith.addf %87, %88 : vector<2x64xf32>
    %90 = arith.negf %89 : vector<2x64xf32>
    %91 = math.exp %90 : vector<2x64xf32>
    %cst_49 = arith.constant 1.000000e+00 : f32
    %92 = vector.broadcast %cst_49 : f32 to vector<2x64xf32>
    %93 = arith.addf %92, %91 : vector<2x64xf32>
    %94 = arith.divf %92, %93 : vector<2x64xf32>
    %95 = vector.extract_strided_slice %94 {offsets = [0, 0], sizes = [2, 32], strides = [1, 1]} : vector<2x64xf32> to vector<2x32xf32>
    %96 = vector.extract_strided_slice %94 {offsets = [0, 32], sizes = [2, 32], strides = [1, 1]} : vector<2x64xf32> to vector<2x32xf32>
    %97 = vector.extract_strided_slice %79 {offsets = [0, 64], sizes = [2, 32], strides = [1, 1]} : vector<2x96xf32> to vector<2x32xf32>
    %98 = vector.extract_strided_slice %86 {offsets = [0, 64], sizes = [2, 32], strides = [1, 1]} : vector<2x96xf32> to vector<2x32xf32>
    %99 = arith.mulf %95, %98 : vector<2x32xf32>
    %100 = arith.addf %97, %99 : vector<2x32xf32>
    %101 = math.tanh %100 : vector<2x32xf32>
    %cst_50 = arith.constant 1.000000e+00 : f32
    %102 = vector.broadcast %cst_50 : f32 to vector<2x32xf32>
    %103 = arith.subf %102, %96 : vector<2x32xf32>
    %104 = arith.mulf %103, %101 : vector<2x32xf32>
    %105 = arith.mulf %96, %43 : vector<2x32xf32>
    %106 = arith.addf %104, %105 : vector<2x32xf32>
    %c0_51 = arith.constant 0 : index
    %c0_52 = arith.constant 0 : index
    %c0_53 = arith.constant 0 : index
    %107 = vector.load %arg6[%c0_51, %c0_52, %c0_53] : memref<1x32x96xf32, #tpu.memory_space<vmem>>, vector<1x32x96xf32>
    %108 = vector.shape_cast %107 : vector<1x32x96xf32> to vector<32x96xf32>
    %cst_54 = arith.constant dense<0.000000e+00> : vector<2x96xf32>
    %109 = tpu.matmul %106, %108, %cst_54 {dimension_numbers = #tpu.dot_dimension_numbers<[1], [0], [0], [1], [0, 0, 1, 1], [], []>} : vector<2x32xf32>, vector<32x96xf32>, vector<2x96xf32> -> vector<2x96xf32>
    %c1_55 = arith.constant 1 : index
    %c0_56 = arith.constant 0 : index
    %c0_57 = arith.constant 0 : index
    %110 = vector.load %arg8[%c1_55, %c0_56, %c0_57] : memref<2x1x96xf32, #tpu.memory_space<vmem>>, vector<1x1x96xf32>
    %111 = vector.shape_cast %110 : vector<1x1x96xf32> to vector<1x96xf32>
    %112 = vector.broadcast %111 : vector<1x96xf32> to vector<2x96xf32>
    %113 = arith.addf %109, %112 : vector<2x96xf32>
    %c1_58 = arith.constant 1 : index
    %c0_59 = arith.constant 0 : index
    %c0_60 = arith.constant 0 : index
    %114 = vector.load %arg7[%c1_58, %c0_59, %c0_60] : memref<2x32x96xf32, #tpu.memory_space<vmem>>, vector<1x32x96xf32>
    %115 = vector.shape_cast %114 : vector<1x32x96xf32> to vector<32x96xf32>
    %cst_61 = arith.constant dense<0.000000e+00> : vector<2x96xf32>
    %116 = tpu.matmul %77, %115, %cst_61 {dimension_numbers = #tpu.dot_dimension_numbers<[1], [0], [0], [1], [0, 0, 1, 1], [], []>} : vector<2x32xf32>, vector<32x96xf32>, vector<2x96xf32> -> vector<2x96xf32>
    %c1_62 = arith.constant 1 : index
    %c0_63 = arith.constant 0 : index
    %c0_64 = arith.constant 0 : index
    %117 = vector.load %arg9[%c1_62, %c0_63, %c0_64] : memref<2x1x96xf32, #tpu.memory_space<vmem>>, vector<1x1x96xf32>
    %118 = vector.shape_cast %117 : vector<1x1x96xf32> to vector<1x96xf32>
    %119 = vector.broadcast %118 : vector<1x96xf32> to vector<2x96xf32>
    %120 = arith.addf %116, %119 : vector<2x96xf32>
    %121 = vector.extract_strided_slice %113 {offsets = [0, 0], sizes = [2, 64], strides = [1, 1]} : vector<2x96xf32> to vector<2x64xf32>
    %122 = vector.extract_strided_slice %120 {offsets = [0, 0], sizes = [2, 64], strides = [1, 1]} : vector<2x96xf32> to vector<2x64xf32>
    %123 = arith.addf %121, %122 : vector<2x64xf32>
    %124 = arith.negf %123 : vector<2x64xf32>
    %125 = math.exp %124 : vector<2x64xf32>
    %cst_65 = arith.constant 1.000000e+00 : f32
    %126 = vector.broadcast %cst_65 : f32 to vector<2x64xf32>
    %127 = arith.addf %126, %125 : vector<2x64xf32>
    %128 = arith.divf %126, %127 : vector<2x64xf32>
    %129 = vector.extract_strided_slice %128 {offsets = [0, 0], sizes = [2, 32], strides = [1, 1]} : vector<2x64xf32> to vector<2x32xf32>
    %130 = vector.extract_strided_slice %128 {offsets = [0, 32], sizes = [2, 32], strides = [1, 1]} : vector<2x64xf32> to vector<2x32xf32>
    %131 = vector.extract_strided_slice %113 {offsets = [0, 64], sizes = [2, 32], strides = [1, 1]} : vector<2x96xf32> to vector<2x32xf32>
    %132 = vector.extract_strided_slice %120 {offsets = [0, 64], sizes = [2, 32], strides = [1, 1]} : vector<2x96xf32> to vector<2x32xf32>
    %133 = arith.mulf %129, %132 : vector<2x32xf32>
    %134 = arith.addf %131, %133 : vector<2x32xf32>
    %135 = math.tanh %134 : vector<2x32xf32>
    %cst_66 = arith.constant 1.000000e+00 : f32
    %136 = vector.broadcast %cst_66 : f32 to vector<2x32xf32>
    %137 = arith.subf %136, %130 : vector<2x32xf32>
    %138 = arith.mulf %137, %135 : vector<2x32xf32>
    %139 = arith.mulf %130, %77 : vector<2x32xf32>
    %140 = arith.addf %138, %139 : vector<2x32xf32>
    %141 = vector.extract_strided_slice %7 {offsets = [2, 0, 0], sizes = [1, 2, 96], strides = [1, 1, 1]} : vector<6x2x96xf32> to vector<1x2x96xf32>
    %142 = vector.shape_cast %141 : vector<1x2x96xf32> to vector<2x96xf32>
    %c0_67 = arith.constant 0 : index
    %c0_68 = arith.constant 0 : index
    %c0_69 = arith.constant 0 : index
    %143 = vector.load %arg7[%c0_67, %c0_68, %c0_69] : memref<2x32x96xf32, #tpu.memory_space<vmem>>, vector<1x32x96xf32>
    %144 = vector.shape_cast %143 : vector<1x32x96xf32> to vector<32x96xf32>
    %cst_70 = arith.constant dense<0.000000e+00> : vector<2x96xf32>
    %145 = tpu.matmul %106, %144, %cst_70 {dimension_numbers = #tpu.dot_dimension_numbers<[1], [0], [0], [1], [0, 0, 1, 1], [], []>} : vector<2x32xf32>, vector<32x96xf32>, vector<2x96xf32> -> vector<2x96xf32>
    %c0_71 = arith.constant 0 : index
    %c0_72 = arith.constant 0 : index
    %c0_73 = arith.constant 0 : index
    %146 = vector.load %arg9[%c0_71, %c0_72, %c0_73] : memref<2x1x96xf32, #tpu.memory_space<vmem>>, vector<1x1x96xf32>
    %147 = vector.shape_cast %146 : vector<1x1x96xf32> to vector<1x96xf32>
    %148 = vector.broadcast %147 : vector<1x96xf32> to vector<2x96xf32>
    %149 = arith.addf %145, %148 : vector<2x96xf32>
    %150 = vector.extract_strided_slice %142 {offsets = [0, 0], sizes = [2, 64], strides = [1, 1]} : vector<2x96xf32> to vector<2x64xf32>
    %151 = vector.extract_strided_slice %149 {offsets = [0, 0], sizes = [2, 64], strides = [1, 1]} : vector<2x96xf32> to vector<2x64xf32>
    %152 = arith.addf %150, %151 : vector<2x64xf32>
    %153 = arith.negf %152 : vector<2x64xf32>
    %154 = math.exp %153 : vector<2x64xf32>
    %cst_74 = arith.constant 1.000000e+00 : f32
    %155 = vector.broadcast %cst_74 : f32 to vector<2x64xf32>
    %156 = arith.addf %155, %154 : vector<2x64xf32>
    %157 = arith.divf %155, %156 : vector<2x64xf32>
    %158 = vector.extract_strided_slice %157 {offsets = [0, 0], sizes = [2, 32], strides = [1, 1]} : vector<2x64xf32> to vector<2x32xf32>
    %159 = vector.extract_strided_slice %157 {offsets = [0, 32], sizes = [2, 32], strides = [1, 1]} : vector<2x64xf32> to vector<2x32xf32>
    %160 = vector.extract_strided_slice %142 {offsets = [0, 64], sizes = [2, 32], strides = [1, 1]} : vector<2x96xf32> to vector<2x32xf32>
    %161 = vector.extract_strided_slice %149 {offsets = [0, 64], sizes = [2, 32], strides = [1, 1]} : vector<2x96xf32> to vector<2x32xf32>
    %162 = arith.mulf %158, %161 : vector<2x32xf32>
    %163 = arith.addf %160, %162 : vector<2x32xf32>
    %164 = math.tanh %163 : vector<2x32xf32>
    %cst_75 = arith.constant 1.000000e+00 : f32
    %165 = vector.broadcast %cst_75 : f32 to vector<2x32xf32>
    %166 = arith.subf %165, %159 : vector<2x32xf32>
    %167 = arith.mulf %166, %164 : vector<2x32xf32>
    %168 = arith.mulf %159, %106 : vector<2x32xf32>
    %169 = arith.addf %167, %168 : vector<2x32xf32>
    %c0_76 = arith.constant 0 : index
    %c0_77 = arith.constant 0 : index
    %c0_78 = arith.constant 0 : index
    %170 = vector.load %arg6[%c0_76, %c0_77, %c0_78] : memref<1x32x96xf32, #tpu.memory_space<vmem>>, vector<1x32x96xf32>
    %171 = vector.shape_cast %170 : vector<1x32x96xf32> to vector<32x96xf32>
    %cst_79 = arith.constant dense<0.000000e+00> : vector<2x96xf32>
    %172 = tpu.matmul %169, %171, %cst_79 {dimension_numbers = #tpu.dot_dimension_numbers<[1], [0], [0], [1], [0, 0, 1, 1], [], []>} : vector<2x32xf32>, vector<32x96xf32>, vector<2x96xf32> -> vector<2x96xf32>
    %c1_80 = arith.constant 1 : index
    %c0_81 = arith.constant 0 : index
    %c0_82 = arith.constant 0 : index
    %173 = vector.load %arg8[%c1_80, %c0_81, %c0_82] : memref<2x1x96xf32, #tpu.memory_space<vmem>>, vector<1x1x96xf32>
    %174 = vector.shape_cast %173 : vector<1x1x96xf32> to vector<1x96xf32>
    %175 = vector.broadcast %174 : vector<1x96xf32> to vector<2x96xf32>
    %176 = arith.addf %172, %175 : vector<2x96xf32>
    %c1_83 = arith.constant 1 : index
    %c0_84 = arith.constant 0 : index
    %c0_85 = arith.constant 0 : index
    %177 = vector.load %arg7[%c1_83, %c0_84, %c0_85] : memref<2x32x96xf32, #tpu.memory_space<vmem>>, vector<1x32x96xf32>
    %178 = vector.shape_cast %177 : vector<1x32x96xf32> to vector<32x96xf32>
    %cst_86 = arith.constant dense<0.000000e+00> : vector<2x96xf32>
    %179 = tpu.matmul %140, %178, %cst_86 {dimension_numbers = #tpu.dot_dimension_numbers<[1], [0], [0], [1], [0, 0, 1, 1], [], []>} : vector<2x32xf32>, vector<32x96xf32>, vector<2x96xf32> -> vector<2x96xf32>
    %c1_87 = arith.constant 1 : index
    %c0_88 = arith.constant 0 : index
    %c0_89 = arith.constant 0 : index
    %180 = vector.load %arg9[%c1_87, %c0_88, %c0_89] : memref<2x1x96xf32, #tpu.memory_space<vmem>>, vector<1x1x96xf32>
    %181 = vector.shape_cast %180 : vector<1x1x96xf32> to vector<1x96xf32>
    %182 = vector.broadcast %181 : vector<1x96xf32> to vector<2x96xf32>
    %183 = arith.addf %179, %182 : vector<2x96xf32>
    %184 = vector.extract_strided_slice %176 {offsets = [0, 0], sizes = [2, 64], strides = [1, 1]} : vector<2x96xf32> to vector<2x64xf32>
    %185 = vector.extract_strided_slice %183 {offsets = [0, 0], sizes = [2, 64], strides = [1, 1]} : vector<2x96xf32> to vector<2x64xf32>
    %186 = arith.addf %184, %185 : vector<2x64xf32>
    %187 = arith.negf %186 : vector<2x64xf32>
    %188 = math.exp %187 : vector<2x64xf32>
    %cst_90 = arith.constant 1.000000e+00 : f32
    %189 = vector.broadcast %cst_90 : f32 to vector<2x64xf32>
    %190 = arith.addf %189, %188 : vector<2x64xf32>
    %191 = arith.divf %189, %190 : vector<2x64xf32>
    %192 = vector.extract_strided_slice %191 {offsets = [0, 0], sizes = [2, 32], strides = [1, 1]} : vector<2x64xf32> to vector<2x32xf32>
    %193 = vector.extract_strided_slice %191 {offsets = [0, 32], sizes = [2, 32], strides = [1, 1]} : vector<2x64xf32> to vector<2x32xf32>
    %194 = vector.extract_strided_slice %176 {offsets = [0, 64], sizes = [2, 32], strides = [1, 1]} : vector<2x96xf32> to vector<2x32xf32>
    %195 = vector.extract_strided_slice %183 {offsets = [0, 64], sizes = [2, 32], strides = [1, 1]} : vector<2x96xf32> to vector<2x32xf32>
    %196 = arith.mulf %192, %195 : vector<2x32xf32>
    %197 = arith.addf %194, %196 : vector<2x32xf32>
    %198 = math.tanh %197 : vector<2x32xf32>
    %cst_91 = arith.constant 1.000000e+00 : f32
    %199 = vector.broadcast %cst_91 : f32 to vector<2x32xf32>
    %200 = arith.subf %199, %193 : vector<2x32xf32>
    %201 = arith.mulf %200, %198 : vector<2x32xf32>
    %202 = arith.mulf %193, %140 : vector<2x32xf32>
    %203 = arith.addf %201, %202 : vector<2x32xf32>
    %204 = vector.extract_strided_slice %7 {offsets = [3, 0, 0], sizes = [1, 2, 96], strides = [1, 1, 1]} : vector<6x2x96xf32> to vector<1x2x96xf32>
    %205 = vector.shape_cast %204 : vector<1x2x96xf32> to vector<2x96xf32>
    %c0_92 = arith.constant 0 : index
    %c0_93 = arith.constant 0 : index
    %c0_94 = arith.constant 0 : index
    %206 = vector.load %arg7[%c0_92, %c0_93, %c0_94] : memref<2x32x96xf32, #tpu.memory_space<vmem>>, vector<1x32x96xf32>
    %207 = vector.shape_cast %206 : vector<1x32x96xf32> to vector<32x96xf32>
    %cst_95 = arith.constant dense<0.000000e+00> : vector<2x96xf32>
    %208 = tpu.matmul %169, %207, %cst_95 {dimension_numbers = #tpu.dot_dimension_numbers<[1], [0], [0], [1], [0, 0, 1, 1], [], []>} : vector<2x32xf32>, vector<32x96xf32>, vector<2x96xf32> -> vector<2x96xf32>
    %c0_96 = arith.constant 0 : index
    %c0_97 = arith.constant 0 : index
    %c0_98 = arith.constant 0 : index
    %209 = vector.load %arg9[%c0_96, %c0_97, %c0_98] : memref<2x1x96xf32, #tpu.memory_space<vmem>>, vector<1x1x96xf32>
    %210 = vector.shape_cast %209 : vector<1x1x96xf32> to vector<1x96xf32>
    %211 = vector.broadcast %210 : vector<1x96xf32> to vector<2x96xf32>
    %212 = arith.addf %208, %211 : vector<2x96xf32>
    %213 = vector.extract_strided_slice %205 {offsets = [0, 0], sizes = [2, 64], strides = [1, 1]} : vector<2x96xf32> to vector<2x64xf32>
    %214 = vector.extract_strided_slice %212 {offsets = [0, 0], sizes = [2, 64], strides = [1, 1]} : vector<2x96xf32> to vector<2x64xf32>
    %215 = arith.addf %213, %214 : vector<2x64xf32>
    %216 = arith.negf %215 : vector<2x64xf32>
    %217 = math.exp %216 : vector<2x64xf32>
    %cst_99 = arith.constant 1.000000e+00 : f32
    %218 = vector.broadcast %cst_99 : f32 to vector<2x64xf32>
    %219 = arith.addf %218, %217 : vector<2x64xf32>
    %220 = arith.divf %218, %219 : vector<2x64xf32>
    %221 = vector.extract_strided_slice %220 {offsets = [0, 0], sizes = [2, 32], strides = [1, 1]} : vector<2x64xf32> to vector<2x32xf32>
    %222 = vector.extract_strided_slice %220 {offsets = [0, 32], sizes = [2, 32], strides = [1, 1]} : vector<2x64xf32> to vector<2x32xf32>
    %223 = vector.extract_strided_slice %205 {offsets = [0, 64], sizes = [2, 32], strides = [1, 1]} : vector<2x96xf32> to vector<2x32xf32>
    %224 = vector.extract_strided_slice %212 {offsets = [0, 64], sizes = [2, 32], strides = [1, 1]} : vector<2x96xf32> to vector<2x32xf32>
    %225 = arith.mulf %221, %224 : vector<2x32xf32>
    %226 = arith.addf %223, %225 : vector<2x32xf32>
    %227 = math.tanh %226 : vector<2x32xf32>
    %cst_100 = arith.constant 1.000000e+00 : f32
    %228 = vector.broadcast %cst_100 : f32 to vector<2x32xf32>
    %229 = arith.subf %228, %222 : vector<2x32xf32>
    %230 = arith.mulf %229, %227 : vector<2x32xf32>
    %231 = arith.mulf %222, %169 : vector<2x32xf32>
    %232 = arith.addf %230, %231 : vector<2x32xf32>
    %c0_101 = arith.constant 0 : index
    %c0_102 = arith.constant 0 : index
    %c0_103 = arith.constant 0 : index
    %233 = vector.load %arg6[%c0_101, %c0_102, %c0_103] : memref<1x32x96xf32, #tpu.memory_space<vmem>>, vector<1x32x96xf32>
    %234 = vector.shape_cast %233 : vector<1x32x96xf32> to vector<32x96xf32>
    %cst_104 = arith.constant dense<0.000000e+00> : vector<2x96xf32>
    %235 = tpu.matmul %232, %234, %cst_104 {dimension_numbers = #tpu.dot_dimension_numbers<[1], [0], [0], [1], [0, 0, 1, 1], [], []>} : vector<2x32xf32>, vector<32x96xf32>, vector<2x96xf32> -> vector<2x96xf32>
    %c1_105 = arith.constant 1 : index
    %c0_106 = arith.constant 0 : index
    %c0_107 = arith.constant 0 : index
    %236 = vector.load %arg8[%c1_105, %c0_106, %c0_107] : memref<2x1x96xf32, #tpu.memory_space<vmem>>, vector<1x1x96xf32>
    %237 = vector.shape_cast %236 : vector<1x1x96xf32> to vector<1x96xf32>
    %238 = vector.broadcast %237 : vector<1x96xf32> to vector<2x96xf32>
    %239 = arith.addf %235, %238 : vector<2x96xf32>
    %c1_108 = arith.constant 1 : index
    %c0_109 = arith.constant 0 : index
    %c0_110 = arith.constant 0 : index
    %240 = vector.load %arg7[%c1_108, %c0_109, %c0_110] : memref<2x32x96xf32, #tpu.memory_space<vmem>>, vector<1x32x96xf32>
    %241 = vector.shape_cast %240 : vector<1x32x96xf32> to vector<32x96xf32>
    %cst_111 = arith.constant dense<0.000000e+00> : vector<2x96xf32>
    %242 = tpu.matmul %203, %241, %cst_111 {dimension_numbers = #tpu.dot_dimension_numbers<[1], [0], [0], [1], [0, 0, 1, 1], [], []>} : vector<2x32xf32>, vector<32x96xf32>, vector<2x96xf32> -> vector<2x96xf32>
    %c1_112 = arith.constant 1 : index
    %c0_113 = arith.constant 0 : index
    %c0_114 = arith.constant 0 : index
    %243 = vector.load %arg9[%c1_112, %c0_113, %c0_114] : memref<2x1x96xf32, #tpu.memory_space<vmem>>, vector<1x1x96xf32>
    %244 = vector.shape_cast %243 : vector<1x1x96xf32> to vector<1x96xf32>
    %245 = vector.broadcast %244 : vector<1x96xf32> to vector<2x96xf32>
    %246 = arith.addf %242, %245 : vector<2x96xf32>
    %247 = vector.extract_strided_slice %239 {offsets = [0, 0], sizes = [2, 64], strides = [1, 1]} : vector<2x96xf32> to vector<2x64xf32>
    %248 = vector.extract_strided_slice %246 {offsets = [0, 0], sizes = [2, 64], strides = [1, 1]} : vector<2x96xf32> to vector<2x64xf32>
    %249 = arith.addf %247, %248 : vector<2x64xf32>
    %250 = arith.negf %249 : vector<2x64xf32>
    %251 = math.exp %250 : vector<2x64xf32>
    %cst_115 = arith.constant 1.000000e+00 : f32
    %252 = vector.broadcast %cst_115 : f32 to vector<2x64xf32>
    %253 = arith.addf %252, %251 : vector<2x64xf32>
    %254 = arith.divf %252, %253 : vector<2x64xf32>
    %255 = vector.extract_strided_slice %254 {offsets = [0, 0], sizes = [2, 32], strides = [1, 1]} : vector<2x64xf32> to vector<2x32xf32>
    %256 = vector.extract_strided_slice %254 {offsets = [0, 32], sizes = [2, 32], strides = [1, 1]} : vector<2x64xf32> to vector<2x32xf32>
    %257 = vector.extract_strided_slice %239 {offsets = [0, 64], sizes = [2, 32], strides = [1, 1]} : vector<2x96xf32> to vector<2x32xf32>
    %258 = vector.extract_strided_slice %246 {offsets = [0, 64], sizes = [2, 32], strides = [1, 1]} : vector<2x96xf32> to vector<2x32xf32>
    %259 = arith.mulf %255, %258 : vector<2x32xf32>
    %260 = arith.addf %257, %259 : vector<2x32xf32>
    %261 = math.tanh %260 : vector<2x32xf32>
    %cst_116 = arith.constant 1.000000e+00 : f32
    %262 = vector.broadcast %cst_116 : f32 to vector<2x32xf32>
    %263 = arith.subf %262, %256 : vector<2x32xf32>
    %264 = arith.mulf %263, %261 : vector<2x32xf32>
    %265 = arith.mulf %256, %203 : vector<2x32xf32>
    %266 = arith.addf %264, %265 : vector<2x32xf32>
    %267 = vector.extract_strided_slice %7 {offsets = [4, 0, 0], sizes = [1, 2, 96], strides = [1, 1, 1]} : vector<6x2x96xf32> to vector<1x2x96xf32>
    %268 = vector.shape_cast %267 : vector<1x2x96xf32> to vector<2x96xf32>
    %c0_117 = arith.constant 0 : index
    %c0_118 = arith.constant 0 : index
    %c0_119 = arith.constant 0 : index
    %269 = vector.load %arg7[%c0_117, %c0_118, %c0_119] : memref<2x32x96xf32, #tpu.memory_space<vmem>>, vector<1x32x96xf32>
    %270 = vector.shape_cast %269 : vector<1x32x96xf32> to vector<32x96xf32>
    %cst_120 = arith.constant dense<0.000000e+00> : vector<2x96xf32>
    %271 = tpu.matmul %232, %270, %cst_120 {dimension_numbers = #tpu.dot_dimension_numbers<[1], [0], [0], [1], [0, 0, 1, 1], [], []>} : vector<2x32xf32>, vector<32x96xf32>, vector<2x96xf32> -> vector<2x96xf32>
    %c0_121 = arith.constant 0 : index
    %c0_122 = arith.constant 0 : index
    %c0_123 = arith.constant 0 : index
    %272 = vector.load %arg9[%c0_121, %c0_122, %c0_123] : memref<2x1x96xf32, #tpu.memory_space<vmem>>, vector<1x1x96xf32>
    %273 = vector.shape_cast %272 : vector<1x1x96xf32> to vector<1x96xf32>
    %274 = vector.broadcast %273 : vector<1x96xf32> to vector<2x96xf32>
    %275 = arith.addf %271, %274 : vector<2x96xf32>
    %276 = vector.extract_strided_slice %268 {offsets = [0, 0], sizes = [2, 64], strides = [1, 1]} : vector<2x96xf32> to vector<2x64xf32>
    %277 = vector.extract_strided_slice %275 {offsets = [0, 0], sizes = [2, 64], strides = [1, 1]} : vector<2x96xf32> to vector<2x64xf32>
    %278 = arith.addf %276, %277 : vector<2x64xf32>
    %279 = arith.negf %278 : vector<2x64xf32>
    %280 = math.exp %279 : vector<2x64xf32>
    %cst_124 = arith.constant 1.000000e+00 : f32
    %281 = vector.broadcast %cst_124 : f32 to vector<2x64xf32>
    %282 = arith.addf %281, %280 : vector<2x64xf32>
    %283 = arith.divf %281, %282 : vector<2x64xf32>
    %284 = vector.extract_strided_slice %283 {offsets = [0, 0], sizes = [2, 32], strides = [1, 1]} : vector<2x64xf32> to vector<2x32xf32>
    %285 = vector.extract_strided_slice %283 {offsets = [0, 32], sizes = [2, 32], strides = [1, 1]} : vector<2x64xf32> to vector<2x32xf32>
    %286 = vector.extract_strided_slice %268 {offsets = [0, 64], sizes = [2, 32], strides = [1, 1]} : vector<2x96xf32> to vector<2x32xf32>
    %287 = vector.extract_strided_slice %275 {offsets = [0, 64], sizes = [2, 32], strides = [1, 1]} : vector<2x96xf32> to vector<2x32xf32>
    %288 = arith.mulf %284, %287 : vector<2x32xf32>
    %289 = arith.addf %286, %288 : vector<2x32xf32>
    %290 = math.tanh %289 : vector<2x32xf32>
    %cst_125 = arith.constant 1.000000e+00 : f32
    %291 = vector.broadcast %cst_125 : f32 to vector<2x32xf32>
    %292 = arith.subf %291, %285 : vector<2x32xf32>
    %293 = arith.mulf %292, %290 : vector<2x32xf32>
    %294 = arith.mulf %285, %232 : vector<2x32xf32>
    %295 = arith.addf %293, %294 : vector<2x32xf32>
    %c0_126 = arith.constant 0 : index
    %c0_127 = arith.constant 0 : index
    %c0_128 = arith.constant 0 : index
    %296 = vector.load %arg6[%c0_126, %c0_127, %c0_128] : memref<1x32x96xf32, #tpu.memory_space<vmem>>, vector<1x32x96xf32>
    %297 = vector.shape_cast %296 : vector<1x32x96xf32> to vector<32x96xf32>
    %cst_129 = arith.constant dense<0.000000e+00> : vector<2x96xf32>
    %298 = tpu.matmul %295, %297, %cst_129 {dimension_numbers = #tpu.dot_dimension_numbers<[1], [0], [0], [1], [0, 0, 1, 1], [], []>} : vector<2x32xf32>, vector<32x96xf32>, vector<2x96xf32> -> vector<2x96xf32>
    %c1_130 = arith.constant 1 : index
    %c0_131 = arith.constant 0 : index
    %c0_132 = arith.constant 0 : index
    %299 = vector.load %arg8[%c1_130, %c0_131, %c0_132] : memref<2x1x96xf32, #tpu.memory_space<vmem>>, vector<1x1x96xf32>
    %300 = vector.shape_cast %299 : vector<1x1x96xf32> to vector<1x96xf32>
    %301 = vector.broadcast %300 : vector<1x96xf32> to vector<2x96xf32>
    %302 = arith.addf %298, %301 : vector<2x96xf32>
    %c1_133 = arith.constant 1 : index
    %c0_134 = arith.constant 0 : index
    %c0_135 = arith.constant 0 : index
    %303 = vector.load %arg7[%c1_133, %c0_134, %c0_135] : memref<2x32x96xf32, #tpu.memory_space<vmem>>, vector<1x32x96xf32>
    %304 = vector.shape_cast %303 : vector<1x32x96xf32> to vector<32x96xf32>
    %cst_136 = arith.constant dense<0.000000e+00> : vector<2x96xf32>
    %305 = tpu.matmul %266, %304, %cst_136 {dimension_numbers = #tpu.dot_dimension_numbers<[1], [0], [0], [1], [0, 0, 1, 1], [], []>} : vector<2x32xf32>, vector<32x96xf32>, vector<2x96xf32> -> vector<2x96xf32>
    %c1_137 = arith.constant 1 : index
    %c0_138 = arith.constant 0 : index
    %c0_139 = arith.constant 0 : index
    %306 = vector.load %arg9[%c1_137, %c0_138, %c0_139] : memref<2x1x96xf32, #tpu.memory_space<vmem>>, vector<1x1x96xf32>
    %307 = vector.shape_cast %306 : vector<1x1x96xf32> to vector<1x96xf32>
    %308 = vector.broadcast %307 : vector<1x96xf32> to vector<2x96xf32>
    %309 = arith.addf %305, %308 : vector<2x96xf32>
    %310 = vector.extract_strided_slice %302 {offsets = [0, 0], sizes = [2, 64], strides = [1, 1]} : vector<2x96xf32> to vector<2x64xf32>
    %311 = vector.extract_strided_slice %309 {offsets = [0, 0], sizes = [2, 64], strides = [1, 1]} : vector<2x96xf32> to vector<2x64xf32>
    %312 = arith.addf %310, %311 : vector<2x64xf32>
    %313 = arith.negf %312 : vector<2x64xf32>
    %314 = math.exp %313 : vector<2x64xf32>
    %cst_140 = arith.constant 1.000000e+00 : f32
    %315 = vector.broadcast %cst_140 : f32 to vector<2x64xf32>
    %316 = arith.addf %315, %314 : vector<2x64xf32>
    %317 = arith.divf %315, %316 : vector<2x64xf32>
    %318 = vector.extract_strided_slice %317 {offsets = [0, 0], sizes = [2, 32], strides = [1, 1]} : vector<2x64xf32> to vector<2x32xf32>
    %319 = vector.extract_strided_slice %317 {offsets = [0, 32], sizes = [2, 32], strides = [1, 1]} : vector<2x64xf32> to vector<2x32xf32>
    %320 = vector.extract_strided_slice %302 {offsets = [0, 64], sizes = [2, 32], strides = [1, 1]} : vector<2x96xf32> to vector<2x32xf32>
    %321 = vector.extract_strided_slice %309 {offsets = [0, 64], sizes = [2, 32], strides = [1, 1]} : vector<2x96xf32> to vector<2x32xf32>
    %322 = arith.mulf %318, %321 : vector<2x32xf32>
    %323 = arith.addf %320, %322 : vector<2x32xf32>
    %324 = math.tanh %323 : vector<2x32xf32>
    %cst_141 = arith.constant 1.000000e+00 : f32
    %325 = vector.broadcast %cst_141 : f32 to vector<2x32xf32>
    %326 = arith.subf %325, %319 : vector<2x32xf32>
    %327 = arith.mulf %326, %324 : vector<2x32xf32>
    %328 = arith.mulf %319, %266 : vector<2x32xf32>
    %329 = arith.addf %327, %328 : vector<2x32xf32>
    %330 = vector.extract_strided_slice %7 {offsets = [5, 0, 0], sizes = [1, 2, 96], strides = [1, 1, 1]} : vector<6x2x96xf32> to vector<1x2x96xf32>
    %331 = vector.shape_cast %330 : vector<1x2x96xf32> to vector<2x96xf32>
    %c0_142 = arith.constant 0 : index
    %c0_143 = arith.constant 0 : index
    %c0_144 = arith.constant 0 : index
    %332 = vector.load %arg7[%c0_142, %c0_143, %c0_144] : memref<2x32x96xf32, #tpu.memory_space<vmem>>, vector<1x32x96xf32>
    %333 = vector.shape_cast %332 : vector<1x32x96xf32> to vector<32x96xf32>
    %cst_145 = arith.constant dense<0.000000e+00> : vector<2x96xf32>
    %334 = tpu.matmul %295, %333, %cst_145 {dimension_numbers = #tpu.dot_dimension_numbers<[1], [0], [0], [1], [0, 0, 1, 1], [], []>} : vector<2x32xf32>, vector<32x96xf32>, vector<2x96xf32> -> vector<2x96xf32>
    %c0_146 = arith.constant 0 : index
    %c0_147 = arith.constant 0 : index
    %c0_148 = arith.constant 0 : index
    %335 = vector.load %arg9[%c0_146, %c0_147, %c0_148] : memref<2x1x96xf32, #tpu.memory_space<vmem>>, vector<1x1x96xf32>
    %336 = vector.shape_cast %335 : vector<1x1x96xf32> to vector<1x96xf32>
    %337 = vector.broadcast %336 : vector<1x96xf32> to vector<2x96xf32>
    %338 = arith.addf %334, %337 : vector<2x96xf32>
    %339 = vector.extract_strided_slice %331 {offsets = [0, 0], sizes = [2, 64], strides = [1, 1]} : vector<2x96xf32> to vector<2x64xf32>
    %340 = vector.extract_strided_slice %338 {offsets = [0, 0], sizes = [2, 64], strides = [1, 1]} : vector<2x96xf32> to vector<2x64xf32>
    %341 = arith.addf %339, %340 : vector<2x64xf32>
    %342 = arith.negf %341 : vector<2x64xf32>
    %343 = math.exp %342 : vector<2x64xf32>
    %cst_149 = arith.constant 1.000000e+00 : f32
    %344 = vector.broadcast %cst_149 : f32 to vector<2x64xf32>
    %345 = arith.addf %344, %343 : vector<2x64xf32>
    %346 = arith.divf %344, %345 : vector<2x64xf32>
    %347 = vector.extract_strided_slice %346 {offsets = [0, 0], sizes = [2, 32], strides = [1, 1]} : vector<2x64xf32> to vector<2x32xf32>
    %348 = vector.extract_strided_slice %346 {offsets = [0, 32], sizes = [2, 32], strides = [1, 1]} : vector<2x64xf32> to vector<2x32xf32>
    %349 = vector.extract_strided_slice %331 {offsets = [0, 64], sizes = [2, 32], strides = [1, 1]} : vector<2x96xf32> to vector<2x32xf32>
    %350 = vector.extract_strided_slice %338 {offsets = [0, 64], sizes = [2, 32], strides = [1, 1]} : vector<2x96xf32> to vector<2x32xf32>
    %351 = arith.mulf %347, %350 : vector<2x32xf32>
    %352 = arith.addf %349, %351 : vector<2x32xf32>
    %353 = math.tanh %352 : vector<2x32xf32>
    %cst_150 = arith.constant 1.000000e+00 : f32
    %354 = vector.broadcast %cst_150 : f32 to vector<2x32xf32>
    %355 = arith.subf %354, %348 : vector<2x32xf32>
    %356 = arith.mulf %355, %353 : vector<2x32xf32>
    %357 = arith.mulf %348, %295 : vector<2x32xf32>
    %358 = arith.addf %356, %357 : vector<2x32xf32>
    %c0_151 = arith.constant 0 : index
    %c0_152 = arith.constant 0 : index
    %c0_153 = arith.constant 0 : index
    %359 = vector.load %arg6[%c0_151, %c0_152, %c0_153] : memref<1x32x96xf32, #tpu.memory_space<vmem>>, vector<1x32x96xf32>
    %360 = vector.shape_cast %359 : vector<1x32x96xf32> to vector<32x96xf32>
    %cst_154 = arith.constant dense<0.000000e+00> : vector<2x96xf32>
    %361 = tpu.matmul %358, %360, %cst_154 {dimension_numbers = #tpu.dot_dimension_numbers<[1], [0], [0], [1], [0, 0, 1, 1], [], []>} : vector<2x32xf32>, vector<32x96xf32>, vector<2x96xf32> -> vector<2x96xf32>
    %c1_155 = arith.constant 1 : index
    %c0_156 = arith.constant 0 : index
    %c0_157 = arith.constant 0 : index
    %362 = vector.load %arg8[%c1_155, %c0_156, %c0_157] : memref<2x1x96xf32, #tpu.memory_space<vmem>>, vector<1x1x96xf32>
    %363 = vector.shape_cast %362 : vector<1x1x96xf32> to vector<1x96xf32>
    %364 = vector.broadcast %363 : vector<1x96xf32> to vector<2x96xf32>
    %365 = arith.addf %361, %364 : vector<2x96xf32>
    %c1_158 = arith.constant 1 : index
    %c0_159 = arith.constant 0 : index
    %c0_160 = arith.constant 0 : index
    %366 = vector.load %arg7[%c1_158, %c0_159, %c0_160] : memref<2x32x96xf32, #tpu.memory_space<vmem>>, vector<1x32x96xf32>
    %367 = vector.shape_cast %366 : vector<1x32x96xf32> to vector<32x96xf32>
    %cst_161 = arith.constant dense<0.000000e+00> : vector<2x96xf32>
    %368 = tpu.matmul %329, %367, %cst_161 {dimension_numbers = #tpu.dot_dimension_numbers<[1], [0], [0], [1], [0, 0, 1, 1], [], []>} : vector<2x32xf32>, vector<32x96xf32>, vector<2x96xf32> -> vector<2x96xf32>
    %c1_162 = arith.constant 1 : index
    %c0_163 = arith.constant 0 : index
    %c0_164 = arith.constant 0 : index
    %369 = vector.load %arg9[%c1_162, %c0_163, %c0_164] : memref<2x1x96xf32, #tpu.memory_space<vmem>>, vector<1x1x96xf32>
    %370 = vector.shape_cast %369 : vector<1x1x96xf32> to vector<1x96xf32>
    %371 = vector.broadcast %370 : vector<1x96xf32> to vector<2x96xf32>
    %372 = arith.addf %368, %371 : vector<2x96xf32>
    %373 = vector.extract_strided_slice %365 {offsets = [0, 0], sizes = [2, 64], strides = [1, 1]} : vector<2x96xf32> to vector<2x64xf32>
    %374 = vector.extract_strided_slice %372 {offsets = [0, 0], sizes = [2, 64], strides = [1, 1]} : vector<2x96xf32> to vector<2x64xf32>
    %375 = arith.addf %373, %374 : vector<2x64xf32>
    %376 = arith.negf %375 : vector<2x64xf32>
    %377 = math.exp %376 : vector<2x64xf32>
    %cst_165 = arith.constant 1.000000e+00 : f32
    %378 = vector.broadcast %cst_165 : f32 to vector<2x64xf32>
    %379 = arith.addf %378, %377 : vector<2x64xf32>
    %380 = arith.divf %378, %379 : vector<2x64xf32>
    %381 = vector.extract_strided_slice %380 {offsets = [0, 0], sizes = [2, 32], strides = [1, 1]} : vector<2x64xf32> to vector<2x32xf32>
    %382 = vector.extract_strided_slice %380 {offsets = [0, 32], sizes = [2, 32], strides = [1, 1]} : vector<2x64xf32> to vector<2x32xf32>
    %383 = vector.extract_strided_slice %365 {offsets = [0, 64], sizes = [2, 32], strides = [1, 1]} : vector<2x96xf32> to vector<2x32xf32>
    %384 = vector.extract_strided_slice %372 {offsets = [0, 64], sizes = [2, 32], strides = [1, 1]} : vector<2x96xf32> to vector<2x32xf32>
    %385 = arith.mulf %381, %384 : vector<2x32xf32>
    %386 = arith.addf %383, %385 : vector<2x32xf32>
    %387 = math.tanh %386 : vector<2x32xf32>
    %cst_166 = arith.constant 1.000000e+00 : f32
    %388 = vector.broadcast %cst_166 : f32 to vector<2x32xf32>
    %389 = arith.subf %388, %382 : vector<2x32xf32>
    %390 = arith.mulf %389, %387 : vector<2x32xf32>
    %391 = arith.mulf %382, %329 : vector<2x32xf32>
    %392 = arith.addf %390, %391 : vector<2x32xf32>
    %393 = vector.shape_cast %77 : vector<2x32xf32> to vector<2x1x32xf32>
    %394 = vector.shape_cast %140 : vector<2x32xf32> to vector<2x1x32xf32>
    %395 = vector.shape_cast %203 : vector<2x32xf32> to vector<2x1x32xf32>
    %396 = vector.shape_cast %266 : vector<2x32xf32> to vector<2x1x32xf32>
    %397 = vector.shape_cast %329 : vector<2x32xf32> to vector<2x1x32xf32>
    %398 = vector.shape_cast %392 : vector<2x32xf32> to vector<2x1x32xf32>
    %399 = tpu.concatenate %393, %394, %395, %396, %397, %398 in 1 : vector<2x1x32xf32>, vector<2x1x32xf32>, vector<2x1x32xf32>, vector<2x1x32xf32>, vector<2x1x32xf32>, vector<2x1x32xf32> -> vector<2x6x32xf32>
    %400 = vector.shape_cast %399 : vector<2x6x32xf32> to vector<12x32xf32>
    %cst_167 = arith.constant dense<0.000000e+00> : vector<12x32xf32>
    %401 = tpu.matmul %400, %8, %cst_167 {dimension_numbers = #tpu.dot_dimension_numbers<[1], [0], [0], [1], [0, 0, 1, 1], [], []>} : vector<12x32xf32>, vector<32x32xf32>, vector<12x32xf32> -> vector<12x32xf32>
    %402 = vector.shape_cast %401 : vector<12x32xf32> to vector<2x6x32xf32>
    %c0_168 = arith.constant 0 : index
    %c0_169 = arith.constant 0 : index
    %c0_170 = arith.constant 0 : index
    %403 = vector.load %arg3[%c0_168, %c0_169, %c0_170] : memref<2x8x32xf32, #tpu.memory_space<vmem>>, vector<2x8x32xf32>
    %c0_171 = arith.constant 0 : index
    %c0_172 = arith.constant 0 : index
    %c0_173 = arith.constant 0 : index
    %404 = vector.load %arg4[%c0_171, %c0_172, %c0_173] : memref<2x32x8xf32, #tpu.memory_space<vmem>>, vector<2x32x8xf32>
    "tpu.trace_start"() <{level = 10 : i32, message = "bth,bhs->bts"}> : () -> ()
    %cst_174 = arith.constant dense<0.000000e+00> : vector<2x6x8xf32>
    %405 = tpu.matmul %402, %404, %cst_174 {dimension_numbers = #tpu.dot_dimension_numbers<[2], [1], [1], [2], [0, 0, 0, 1, 1, 2], [0], [0]>} : vector<2x6x32xf32>, vector<2x32x8xf32>, vector<2x6x8xf32> -> vector<2x6x8xf32>
    "tpu.trace_stop"() : () -> ()
    %cst_175 = arith.constant dense<0xFF800000> : vector<2x6xf32>
    %406 = vector.multi_reduction <maximumf>, %405, %cst_175 [2] : vector<2x6x8xf32> to vector<2x6xf32>
    %407 = vector.shape_cast %406 : vector<2x6xf32> to vector<2x6x1xf32>
    %408 = vector.broadcast %407 : vector<2x6x1xf32> to vector<2x6x8xf32>
    %409 = arith.subf %405, %408 : vector<2x6x8xf32>
    %410 = math.exp %409 : vector<2x6x8xf32>
    %cst_176 = arith.constant dense<0.000000e+00> : vector<2x6xf32>
    %411 = vector.multi_reduction <add>, %410, %cst_176 [2] : vector<2x6x8xf32> to vector<2x6xf32>
    %412 = vector.shape_cast %411 : vector<2x6xf32> to vector<2x6x1xf32>
    %413 = tpu.reciprocal %412 {approx = true} : vector<2x6x1xf32> -> vector<2x6x1xf32>
    %414 = vector.broadcast %413 : vector<2x6x1xf32> to vector<2x6x8xf32>
    %415 = arith.mulf %410, %414 : vector<2x6x8xf32>
    "tpu.trace_start"() <{level = 10 : i32, message = "bts,bsh->bth"}> : () -> ()
    %cst_177 = arith.constant dense<0.000000e+00> : vector<2x6x32xf32>
    %416 = tpu.matmul %415, %403, %cst_177 {dimension_numbers = #tpu.dot_dimension_numbers<[2], [1], [1], [2], [0, 0, 0, 1, 1, 2], [0], [0]>} : vector<2x6x8xf32>, vector<2x8x32xf32>, vector<2x6x32xf32> -> vector<2x6x32xf32>
    "tpu.trace_stop"() : () -> ()
    %417 = vector.shape_cast %416 : vector<2x6x32xf32> to vector<12x32xf32>
    %cst_178 = arith.constant dense<0.000000e+00> : vector<12x32xf32>
    %418 = tpu.matmul %417, %9, %cst_178 {dimension_numbers = #tpu.dot_dimension_numbers<[1], [0], [0], [1], [0, 0, 1, 1], [], []>} : vector<12x32xf32>, vector<32x32xf32>, vector<12x32xf32> -> vector<12x32xf32>
    %cst_179 = arith.constant dense<0.000000e+00> : vector<12x32xf32>
    %419 = tpu.matmul %400, %10, %cst_179 {dimension_numbers = #tpu.dot_dimension_numbers<[1], [0], [0], [1], [0, 0, 1, 1], [], []>} : vector<12x32xf32>, vector<32x32xf32>, vector<12x32xf32> -> vector<12x32xf32>
    %420 = arith.addf %418, %419 : vector<12x32xf32>
    %421 = math.tanh %420 : vector<12x32xf32>
    %c0_180 = arith.constant 0 : index
    %c0_181 = arith.constant 0 : index
    %422 = vector.load %arg13[%c0_180, %c0_181] : memref<12x32xf32, #tpu.memory_space<vmem>>, vector<12x32xf32>
    tpu.vector_store %arg13[%c0_180, %c0_181], %421 {strides = array<i32>} : memref<12x32xf32, #tpu.memory_space<vmem>>, vector<12x32xf32>,
    %c0_182 = arith.constant 0 : index
    %c0_183 = arith.constant 0 : index
    %c0_184 = arith.constant 0 : index
    %423 = vector.load %arg14[%c0_182, %c0_183, %c0_184] : memref<2x2x32xf32, #tpu.memory_space<vmem>>, vector<1x2x32xf32>
    %424 = vector.shape_cast %423 : vector<1x2x32xf32> to vector<2x32xf32>
    %425 = vector.shape_cast %358 : vector<2x32xf32> to vector<1x2x32xf32>
    tpu.vector_store %arg14[%c0_182, %c0_183, %c0_184], %425 {strides = array<i32>} : memref<2x2x32xf32, #tpu.memory_space<vmem>>, vector<1x2x32xf32>,
    %c1_185 = arith.constant 1 : index
    %c0_186 = arith.constant 0 : index
    %c0_187 = arith.constant 0 : index
    %426 = vector.load %arg14[%c1_185, %c0_186, %c0_187] : memref<2x2x32xf32, #tpu.memory_space<vmem>>, vector<1x2x32xf32>
    %427 = vector.shape_cast %426 : vector<1x2x32xf32> to vector<2x32xf32>
    %428 = vector.shape_cast %392 : vector<2x32xf32> to vector<1x2x32xf32>
    tpu.vector_store %arg14[%c1_185, %c0_186, %c0_187], %428 {strides = array<i32>} : memref<2x2x32xf32, #tpu.memory_space<vmem>>, vector<1x2x32xf32>,
    return
  }
  func.func @transform_0(%arg0: i32) -> (i32, i32) {
    %c0_i32 = arith.constant 0 : i32
    %c0_i32_0 = arith.constant 0 : i32
    %c0_i32_1 = arith.constant 0 : i32
    return %c0_i32, %c0_i32_0 : i32, i32
  }
  func.func @transform_1(%arg0: i32) -> (i32, i32, i32) {
    %c0_i32 = arith.constant 0 : i32
    %c0_i32_0 = arith.constant 0 : i32
    %c0_i32_1 = arith.constant 0 : i32
    %c0_i32_2 = arith.constant 0 : i32
    return %c0_i32, %c0_i32_0, %c0_i32_1 : i32, i32, i32
  }
  func.func @transform_2(%arg0: i32) -> (i32, i32, i32) {
    %c0_i32 = arith.constant 0 : i32
    %c0_i32_0 = arith.constant 0 : i32
    %c0_i32_1 = arith.constant 0 : i32
    %c0_i32_2 = arith.constant 0 : i32
    return %c0_i32, %c0_i32_0, %c0_i32_1 : i32, i32, i32
  }
  func.func @transform_3(%arg0: i32) -> (i32, i32, i32) {
    %c0_i32 = arith.constant 0 : i32
    %c0_i32_0 = arith.constant 0 : i32
    %c0_i32_1 = arith.constant 0 : i32
    %c0_i32_2 = arith.constant 0 : i32
    return %c0_i32, %c0_i32_0, %c0_i32_1 : i32, i32, i32
  }
  func.func @transform_4(%arg0: i32) -> (i32, i32) {
    %c0_i32 = arith.constant 0 : i32
    %c0_i32_0 = arith.constant 0 : i32
    %c0_i32_1 = arith.constant 0 : i32
    return %c0_i32, %c0_i32_0 : i32, i32
  }
  func.func @transform_5(%arg0: i32) -> (i32, i32, i32) {
    %c0_i32 = arith.constant 0 : i32
    %c0_i32_0 = arith.constant 0 : i32
    %c0_i32_1 = arith.constant 0 : i32
    %c0_i32_2 = arith.constant 0 : i32
    return %c0_i32, %c0_i32_0, %c0_i32_1 : i32, i32, i32
  }
  func.func @transform_6(%arg0: i32) -> (i32, i32, i32) {
    %c0_i32 = arith.constant 0 : i32
    %c0_i32_0 = arith.constant 0 : i32
    %c0_i32_1 = arith.constant 0 : i32
    %c0_i32_2 = arith.constant 0 : i32
    return %c0_i32, %c0_i32_0, %c0_i32_1 : i32, i32, i32
  }
  func.func @transform_7(%arg0: i32) -> (i32, i32, i32) {
    %c0_i32 = arith.constant 0 : i32
    %c0_i32_0 = arith.constant 0 : i32
    %c0_i32_1 = arith.constant 0 : i32
    %c0_i32_2 = arith.constant 0 : i32
    return %c0_i32, %c0_i32_0, %c0_i32_1 : i32, i32, i32
  }
  func.func @transform_8(%arg0: i32) -> (i32, i32, i32) {
    %c0_i32 = arith.constant 0 : i32
    %c0_i32_0 = arith.constant 0 : i32
    %c0_i32_1 = arith.constant 0 : i32
    %c0_i32_2 = arith.constant 0 : i32
    return %c0_i32, %c0_i32_0, %c0_i32_1 : i32, i32, i32
  }
  func.func @transform_9(%arg0: i32) -> (i32, i32) {
    %c0_i32 = arith.constant 0 : i32
    %c0_i32_0 = arith.constant 0 : i32
    %c0_i32_1 = arith.constant 0 : i32
    return %c0_i32, %c0_i32_0 : i32, i32
  }
  func.func @transform_10(%arg0: i32) -> (i32, i32) {
    %c0_i32 = arith.constant 0 : i32
    %c0_i32_0 = arith.constant 0 : i32
    %c0_i32_1 = arith.constant 0 : i32
    return %c0_i32, %c0_i32_0 : i32, i32
  }
  func.func @transform_11(%arg0: i32) -> (i32, i32) {
    %c0_i32 = arith.constant 0 : i32
    %c0_i32_0 = arith.constant 0 : i32
    %c0_i32_1 = arith.constant 0 : i32
    return %c0_i32, %c0_i32_0 : i32, i32
  }
  func.func @transform_12(%arg0: i32) -> (i32, i32) {
    %c0_i32 = arith.constant 0 : i32
    %c0_i32_0 = arith.constant 0 : i32
    %c0_i32_1 = arith.constant 0 : i32
    return %c0_i32, %c0_i32_0 : i32, i32
  }
  func.func @transform_13(%arg0: i32) -> (i32, i32, i32) {
    %c0_i32 = arith.constant 0 : i32
    %c0_i32_0 = arith.constant 0 : i32
    %c0_i32_1 = arith.constant 0 : i32
    %c0_i32_2 = arith.constant 0 : i32
    return %c0_i32, %c0_i32_0, %c0_i32_1 : i32, i32, i32
  }
}

</mosaic_0001>

<llo_original>
// kernel: decoder_forward.1
$region0: #{decoder_forward.1}
  #allocation0 [shape = 'u32[]', space=smem, size = 0x4, offset = 0x4, fixed_abs, tag = 'smem constant byte address 0x4 - core index']
  #allocation1 [shape = 'u32[144,128]{1,0:T(1,128)}', space=vmem, size = 0x12000, scoped, tag = 'internal scratch']
  %s0 = inlined_call_operand.vmem [shape: f32[12,32], index: 0, kind: input, shape index: {}]
  %s1 = inlined_call_operand.vmem [shape: f32[2,2,32], index: 1, kind: input, shape index: {}]
  %s2 = inlined_call_operand.vmem [shape: f32[2,8,32], index: 2, kind: input, shape index: {}]
  %s3 = inlined_call_operand.vmem [shape: f32[2,32,8], index: 3, kind: input, shape index: {}]
  %s4 = inlined_call_operand.vmem [shape: f32[32,96], index: 4, kind: input, shape index: {}]
  %s5 = inlined_call_operand.vmem [shape: f32[1,32,96], index: 5, kind: input, shape index: {}]
  %s6 = inlined_call_operand.vmem [shape: f32[2,32,96], index: 6, kind: input, shape index: {}]
  %s7 = inlined_call_operand.vmem [shape: f32[2,1,96], index: 7, kind: input, shape index: {}]
  %s8 = inlined_call_operand.vmem [shape: f32[2,1,96], index: 8, kind: input, shape index: {}]
  %s9 = inlined_call_operand.vmem [shape: f32[32,32], index: 9, kind: input, shape index: {}]
  %s10 = inlined_call_operand.vmem [shape: f32[32,32], index: 10, kind: input, shape index: {}]
  %s11 = inlined_call_operand.vmem [shape: f32[32,32], index: 11, kind: input, shape index: {}]
  %s12 = inlined_call_operand.vmem [shape: f32[12,32], index: 12, kind: output, shape index: {0}]
  %s13 = inlined_call_operand.hbm [shape: f32[2,2,32], index: 13, kind: output, shape index: {1}]
  %14 = xla_tuple %s12, %s13
  %s15 = sld [smem:[#allocation0]]
  $region66: #{decoder_forward.1} parent=0
    _
  %s17 = ssub.s32 1, %s15
  %s18 = scalar_select 0, %s17, %s15
  $region1: #{decoder_forward.1} parent=0
    #allocation2 [shape = 'u8[2048]{0}', space=vmem, size = 0x800, scoped, tag = 'output window, operand 1, single buffered']
    #allocation3 [shape = 's32[1]{0}', space=sflag, size = 0x4, scoped, tag = 'scoped memory for decoder_forward.1']
    %19 = vsyncpa [#allocation3], 0
    // Predicated region
    $region2: #{decoder_forward.1} parent=1 // pred_check
      _
    $region3: #{decoder_forward.1} parent=1 // pred_check_branch
      %21 = sbr.rel (0) target = $region5
    $region4: #{decoder_forward.1} parent=1 // pred_region
      _
    $region5: #{decoder_forward.1} parent=1 // pred_fallthru
      _
    // Predicated region
    $region6: #{decoder_forward.1} parent=1 // pred_check
      _
    $region7: #{decoder_forward.1} parent=1 // pred_check_branch
      %23 = sbr.rel (0) target = $region9
    $region8: #{decoder_forward.1} parent=1 // pred_region
      _
    $region9: #{decoder_forward.1} parent=1 // pred_fallthru
      _
    // Predicated region
    $region10: #{decoder_forward.1} parent=1 // pred_check
      _
    $region11: #{decoder_forward.1} parent=1 // pred_check_branch
      %25 = sbr.rel (0) target = $region13
    $region12: #{decoder_forward.1} parent=1 // pred_region
      _
    $region13: #{decoder_forward.1} parent=1 // pred_fallthru
      _
    // Predicated region
    $region14: #{decoder_forward.1} parent=1 // pred_check
      _
    $region15: #{decoder_forward.1} parent=1 // pred_check_branch
      %27 = sbr.rel (0) target = $region17
    $region16: #{decoder_forward.1} parent=1 // pred_region
      _
    $region17: #{decoder_forward.1} parent=1 // pred_fallthru
      _
    // Predicated region
    $region18: #{decoder_forward.1} parent=1 // pred_check
      _
    $region19: #{decoder_forward.1} parent=1 // pred_check_branch
      %29 = sbr.rel (0) target = $region21
    $region20: #{decoder_forward.1} parent=1 // pred_region
      _
    $region21: #{decoder_forward.1} parent=1 // pred_fallthru
      _
    // Predicated region
    $region22: #{decoder_forward.1} parent=1 // pred_check
      _
    $region23: #{decoder_forward.1} parent=1 // pred_check_branch
      %31 = sbr.rel (0) target = $region25
    $region24: #{decoder_forward.1} parent=1 // pred_region
      _
    $region25: #{decoder_forward.1} parent=1 // pred_fallthru
      _
    // Predicated region
    $region26: #{decoder_forward.1} parent=1 // pred_check
      _
    $region27: #{decoder_forward.1} parent=1 // pred_check_branch
      %33 = sbr.rel (0) target = $region29
    $region28: #{decoder_forward.1} parent=1 // pred_region
      _
    $region29: #{decoder_forward.1} parent=1 // pred_fallthru
      _
    // Predicated region
    $region30: #{decoder_forward.1} parent=1 // pred_check
      _
    $region31: #{decoder_forward.1} parent=1 // pred_check_branch
      %35 = sbr.rel (0) target = $region33
    $region32: #{decoder_forward.1} parent=1 // pred_region
      _
    $region33: #{decoder_forward.1} parent=1 // pred_fallthru
      _
    // Predicated region
    $region34: #{decoder_forward.1} parent=1 // pred_check
      _
    $region35: #{decoder_forward.1} parent=1 // pred_check_branch
      %37 = sbr.rel (0) target = $region37
    $region36: #{decoder_forward.1} parent=1 // pred_region
      _
    $region37: #{decoder_forward.1} parent=1 // pred_fallthru
      _
    // Predicated region
    $region38: #{decoder_forward.1} parent=1 // pred_check
      _
    $region39: #{decoder_forward.1} parent=1 // pred_check_branch
      %39 = sbr.rel (0) target = $region41
    $region40: #{decoder_forward.1} parent=1 // pred_region
      _
    $region41: #{decoder_forward.1} parent=1 // pred_fallthru
      _
    // Predicated region
    $region42: #{decoder_forward.1} parent=1 // pred_check
      _
    $region43: #{decoder_forward.1} parent=1 // pred_check_branch
      %41 = sbr.rel (0) target = $region45
    $region44: #{decoder_forward.1} parent=1 // pred_region
      _
    $region45: #{decoder_forward.1} parent=1 // pred_fallthru
      _
    // Predicated region
    $region46: #{decoder_forward.1} parent=1 // pred_check
      _
    $region47: #{decoder_forward.1} parent=1 // pred_check_branch
      %43 = sbr.rel (0) target = $region49
    $region48: #{decoder_forward.1} parent=1 // pred_region
      _
    $region49: #{decoder_forward.1} parent=1 // pred_fallthru
      _
    %v44 = vld [vmem:[%s0] sm:$0xff]
    %v45 = vld [vmem:[%s0 + $0x8] sm:$0xf]
    %v46 = vld [vmem:[%s4] sm:$0xff]
    %v47 = vld [vmem:[%s4 + $0x8] sm:$0xff]
    %v48 = vld [vmem:[%s4 + $0x10] sm:$0xff]
    %v49 = vld [vmem:[%s4 + $0x18] sm:$0xff]
    %v50 = vld [vmem:[%s7] sm:$0x1]
    %v52 = vlaneseq
    %v53 = vshrl.u32 %v52, 7
    %v54 = vsub.s32 0, %v53
    %v55 = vrot.slane %v50, %v54
    %vm57 = vcmask 261120
    %v59 = vsel %vm57, %v44, 0
    %v62 = vsel %vm57, %v45, 0
    %64 = vmatprep.subr.mxu0 0.0
    %65 = vmatpush1.msra.mxu0 %v46
    %66 = vmatprep.subr.mxu0 0.0
    %67 = vmatpush1.msra.mxu0 %v47
    %68 = vmatprep.subr.mxu0 0.0
    %69 = vmatpush1.msra.mxu0 %v48
    %70 = vmatprep.subr.mxu0 0.0
    %71 = vmatpush1.msra.mxu0 %v49
    %72 = vmatprep.subr.mxu0 0.0
    %73 = vmatpush1.msra.mxu0 0.0
    %74 = vmatprep.subr.mxu0 0.0
    %75 = vmatpush1.msra.mxu0 0.0
    %76 = vmatprep.subr.mxu0 0.0
    %77 = vmatpush1.msra.mxu0 0.0
    %78 = vmatprep.subr.mxu0 0.0
    %79 = vmatpush1.msra.mxu0 0.0
    %80 = vmatprep.subr.mxu0 0.0
    %81 = vmatpush1.msra.mxu0 0.0
    %82 = vmatprep.subr.mxu0 0.0
    %83 = vmatpush1.msra.mxu0 0.0
    %84 = vmatprep.subr.mxu0 0.0
    %85 = vmatpush1.msra.mxu0 0.0
    %86 = vmatprep.subr.mxu0 0.0
    %87 = vmatpush1.msra.mxu0 0.0
    %88 = vmatprep.subr.mxu0 0.0
    %89 = vmatpush1.msra.mxu0 0.0
    %90 = vmatprep.subr.mxu0 0.0
    %91 = vmatpush1.msra.mxu0 0.0
    %92 = vmatprep.subr.mxu0 0.0
    %93 = vmatpush1.msra.mxu0 0.0
    %94 = vmatprep.subr.mxu0 0.0
    %95 = vmatpush1.msra.mxu0 0.0
    %96 = vmatprep.subr.mxu0 0.0
    %97 = vmatpush1.msra.mxu0 0.0
    %98 = vmatprep.subr.mxu0 0.0
    %99 = vmatpush1.msra.mxu0 0.0
    %100 = vmatprep.subr.mxu0 0.0
    %101 = vmatpush1.msra.mxu0 0.0
    %102 = vmatprep.subr.mxu0 0.0
    %103 = vmatpush1.msra.mxu0 0.0
    %104 = vmatprep.subr.mxu0 0.0
    %105 = vmatpush1.msra.mxu0 0.0
    %106 = vmatprep.subr.mxu0 0.0
    %107 = vmatpush1.msra.mxu0 0.0
    %108 = vmatprep.subr.mxu0 0.0
    %109 = vmatpush1.msra.mxu0 0.0
    %110 = vmatprep.subr.mxu0 0.0
    %111 = vmatpush1.msra.mxu0 0.0
    %112 = vmatprep.subr.mxu0 0.0
    %113 = vmatpush1.msra.mxu0 0.0
    %114 = vmatprep.subr.mxu0 0.0
    %115 = vmatpush1.msra.mxu0 0.0
    %116 = vmatprep.subr.mxu0 0.0
    %117 = vmatpush1.msra.mxu0 0.0
    %118 = vmatprep.subr.mxu0 0.0
    %119 = vmatpush1.msra.mxu0 0.0
    %120 = vmatprep.subr.mxu0 0.0
    %121 = vmatpush1.msra.mxu0 0.0
    %122 = vmatprep.subr.mxu0 0.0
    %123 = vmatpush1.msra.mxu0 0.0
    %124 = vmatprep.subr.mxu0 0.0
    %125 = vmatpush1.msra.mxu0 0.0
    %126 = vmatprep.subr.mxu0 0.0
    %127 = vmatpush1.msra.mxu0 0.0
    %128 = vmatprep.mubr.f32.mxu0 0.0
    %129 = vmatmul.mubr.f32.gmra.mrb[0].mxu0 %v59
    %v130 = vpop.f32.mrb[0].mxu0
    %v131 = vadd.f32 %v55, %v130
    %v132 = vpop.f32.mrb[0].mxu0
    %133 = vmatprep.mubr.f32.mxu0 0.0
    %134 = vmatmul.mubr.f32.gmra.mrb[0].mxu0 %v62
    %v135 = vpop.f32.mrb[0].mxu0
    %v136 = vadd.f32 %v55, %v135
    %v137 = vpop.f32.mrb[0].mxu0
    %138 = vdwg.mxu0
    %v141 = vcombine.high %v131, %v131
    %v143 = vunpack.c.l.s4 1983009808
    %v144 = vunpack.c.0.s8 %v143
    %v145 = vlaneseq
    %v146 = vshrl.u32 %v145, 7
    %v147 = vsub.s32 %v144, %v146
    %v148 = vrot.slane %v131, %v147
    %v150 = vunpack.c.l.s4 1983009808
    %v151 = vunpack.c.0.s8 %v150
    %v152 = vlaneseq
    %v153 = vshrl.u32 %v152, 7
    %v154 = vsub.s32 %v151, %v153
    %v155 = vrot.slane %v141, %v154
    %v156 = vcombine.high %v148, %v148
    %v157 = vcombine.high %v155, %v155
    %v159 = vunpack.c.l.s4 1983009808
    %v160 = vunpack.c.0.s8 %v159
    %v161 = vlaneseq
    %v162 = vshrl.u32 %v161, 7
    %v163 = vsub.s32 %v160, %v162
    %v164 = vrot.slane %v136, %v163
    %v165 = vcombine.high %v164, %v164
    %v172 = vld [vmem:[%s9] sm:$0xff]
    %v173 = vld [vmem:[%s9 + $0x8] sm:$0xff]
    %v174 = vld [vmem:[%s9 + $0x10] sm:$0xff]
    %v175 = vld [vmem:[%s9 + $0x18] sm:$0xff]
    %v176 = vld [vmem:[%s10] sm:$0xff]
    %v177 = vld [vmem:[%s10 + $0x8] sm:$0xff]
    %v178 = vld [vmem:[%s10 + $0x10] sm:$0xff]
    %v179 = vld [vmem:[%s10 + $0x18] sm:$0xff]
    %v180 = vld [vmem:[%s11] sm:$0xff]
    %v181 = vld [vmem:[%s11 + $0x8] sm:$0xff]
    %v182 = vld [vmem:[%s11 + $0x10] sm:$0xff]
    %v183 = vld [vmem:[%s11 + $0x18] sm:$0xff]
    %v184 = vld [vmem:[%s1] sm:$0x3]
    %s185 = scalar_lea.vmem %s1, 2
    %v186 = vld [vmem:[%s185] sm:$0x3]
    %v187 = vld [vmem:[%s6] sm:$0xff]
    %v188 = vld [vmem:[%s6 + $0x8] sm:$0xff]
    %v189 = vld [vmem:[%s6 + $0x10] sm:$0xff]
    %v190 = vld [vmem:[%s6 + $0x18] sm:$0xff]
    %v191 = vld [vmem:[%s8] sm:$0x1]
    %v193 = vlaneseq
    %v194 = vshrl.u32 %v193, 7
    %v195 = vsub.s32 0, %v194
    %v196 = vrot.slane %v191, %v195
    %v199 = vsel %vm57, %v184, 0
    %201 = vmatprep.subr.mxu0 0.0
    %202 = vmatpush1.msra.mxu0 %v187
    %203 = vmatprep.subr.mxu0 0.0
    %204 = vmatpush1.msra.mxu0 %v188
    %205 = vmatprep.subr.mxu0 0.0
    %206 = vmatpush1.msra.mxu0 %v189
    %207 = vmatprep.subr.mxu0 0.0
    %208 = vmatpush1.msra.mxu0 %v190
    %209 = vmatprep.subr.mxu0 0.0
    %210 = vmatpush1.msra.mxu0 0.0
    %211 = vmatprep.subr.mxu0 0.0
    %212 = vmatpush1.msra.mxu0 0.0
    %213 = vmatprep.subr.mxu0 0.0
    %214 = vmatpush1.msra.mxu0 0.0
    %215 = vmatprep.subr.mxu0 0.0
    %216 = vmatpush1.msra.mxu0 0.0
    %217 = vmatprep.subr.mxu0 0.0
    %218 = vmatpush1.msra.mxu0 0.0
    %219 = vmatprep.subr.mxu0 0.0
    %220 = vmatpush1.msra.mxu0 0.0
    %221 = vmatprep.subr.mxu0 0.0
    %222 = vmatpush1.msra.mxu0 0.0
    %223 = vmatprep.subr.mxu0 0.0
    %224 = vmatpush1.msra.mxu0 0.0
    %225 = vmatprep.subr.mxu0 0.0
    %226 = vmatpush1.msra.mxu0 0.0
    %227 = vmatprep.subr.mxu0 0.0
    %228 = vmatpush1.msra.mxu0 0.0
    %229 = vmatprep.subr.mxu0 0.0
    %230 = vmatpush1.msra.mxu0 0.0
    %231 = vmatprep.subr.mxu0 0.0
    %232 = vmatpush1.msra.mxu0 0.0
    %233 = vmatprep.subr.mxu0 0.0
    %234 = vmatpush1.msra.mxu0 0.0
    %235 = vmatprep.subr.mxu0 0.0
    %236 = vmatpush1.msra.mxu0 0.0
    %237 = vmatprep.subr.mxu0 0.0
    %238 = vmatpush1.msra.mxu0 0.0
    %239 = vmatprep.subr.mxu0 0.0
    %240 = vmatpush1.msra.mxu0 0.0
    %241 = vmatprep.subr.mxu0 0.0
    %242 = vmatpush1.msra.mxu0 0.0
    %243 = vmatprep.subr.mxu0 0.0
    %244 = vmatpush1.msra.mxu0 0.0
    %245 = vmatprep.subr.mxu0 0.0
    %246 = vmatpush1.msra.mxu0 0.0
    %247 = vmatprep.subr.mxu0 0.0
    %248 = vmatpush1.msra.mxu0 0.0
    %249 = vmatprep.subr.mxu0 0.0
    %250 = vmatpush1.msra.mxu0 0.0
    %251 = vmatprep.subr.mxu0 0.0
    %252 = vmatpush1.msra.mxu0 0.0
    %253 = vmatprep.subr.mxu0 0.0
    %254 = vmatpush1.msra.mxu0 0.0
    %255 = vmatprep.subr.mxu0 0.0
    %256 = vmatpush1.msra.mxu0 0.0
    %257 = vmatprep.subr.mxu0 0.0
    %258 = vmatpush1.msra.mxu0 0.0
    %259 = vmatprep.subr.mxu0 0.0
    %260 = vmatpush1.msra.mxu0 0.0
    %261 = vmatprep.subr.mxu0 0.0
    %262 = vmatpush1.msra.mxu0 0.0
    %263 = vmatprep.subr.mxu0 0.0
    %264 = vmatpush1.msra.mxu0 0.0
    %265 = vmatprep.mubr.f32.mxu0 0.0
    %266 = vmatmul.mubr.f32.gmra.mrb[0].mxu0 %v199
    %v267 = vpop.f32.mrb[0].mxu0
    %v268 = vadd.f32 %v196, %v267
    %v269 = vpop.f32.mrb[0].mxu0
    %270 = vdwg.mxu0
    %v271 = vadd.f32 %v148, %v268
    %v272 = vxor.u32 %v271, 2147483648
    %v273 = vmul.f32 %v272, 1.442695
    %v274 = vpow.pop %v273
    %v275 = vadd.f32 %v274, 1.0
    %v276 = vrcp.pop %v275
    %v277 = vmul.f32 1.0, %v276
    %v280 = vunpack.c.l.s4 1983009808
    %v281 = vunpack.c.0.s8 %v280
    %v282 = vlaneseq
    %v283 = vshrl.u32 %v282, 7
    %v284 = vsub.s32 %v281, %v283
    %v285 = vrot.slane %v268, %v284
    %286 = vrot.lane.b32.xlu0 %v285, 64
    %v287 = vpop.permute.xlu0 %286
    %v289 = vmul.f32 %v277, %v287
    %291 = vrot.lane.b32.xlu0 %v289, 64
    %v292 = vpop.permute.xlu0 %291
    %v294 = vadd.f32 %v148, %v292
    %v295 = vtanh.pop %v294
    %v296 = vsub.f32 1.0, %v277
    %298 = vrot.lane.b32.xlu0 %v295, 96
    %v299 = vpop.permute.xlu0 %298
    %v301 = vmul.f32 %v296, %v299
    %v303 = vunpack.c.l.s4 1983009808
    %v304 = vunpack.c.0.s8 %v303
    %v305 = vlaneseq
    %v306 = vshrl.u32 %v305, 7
    %v307 = vsub.s32 %v304, %v306
    %v308 = vrot.slane %v184, %v307
    %309 = vrot.lane.b32.xlu0 %v308, 32
    %v310 = vpop.permute.xlu0 %309
    %v312 = vmul.f32 %v277, %v310
    %v313 = vadd.f32 %v301, %v312
    %v314 = vld [vmem:[%s5] sm:$0xff]
    %v315 = vld [vmem:[%s5 + $0x8] sm:$0xff]
    %v316 = vld [vmem:[%s5 + $0x10] sm:$0xff]
    %v317 = vld [vmem:[%s5 + $0x18] sm:$0xff]
    %s318 = scalar_lea.vmem %s7, 1
    %v319 = vld [vmem:[%s318] sm:$0x1]
    %v321 = vlaneseq
    %v322 = vshrl.u32 %v321, 7
    %v323 = vsub.s32 0, %v322
    %v324 = vrot.slane %v319, %v323
    %v328 = vunpack.c.l.s4 1983009808
    %v329 = vunpack.c.0.s8 %v328
    %v330 = vlaneseq
    %v331 = vshrl.u32 %v330, 7
    %v332 = vsub.s32 %v329, %v331
    %v333 = vrot.slane %v313, %v332
    %334 = vrot.lane.b32.xlu0 %v333, 96
    %v335 = vpop.permute.xlu0 %334
    %v336 = vsel %vm57, %v335, 0
    %338 = vmatprep.subr.mxu0 0.0
    %339 = vmatpush1.msra.mxu0 %v314
    %340 = vmatprep.subr.mxu0 0.0
    %341 = vmatpush1.msra.mxu0 %v315
    %342 = vmatprep.subr.mxu0 0.0
    %343 = vmatpush1.msra.mxu0 %v316
    %344 = vmatprep.subr.mxu0 0.0
    %345 = vmatpush1.msra.mxu0 %v317
    %346 = vmatprep.subr.mxu0 0.0
    %347 = vmatpush1.msra.mxu0 0.0
    %348 = vmatprep.subr.mxu0 0.0
    %349 = vmatpush1.msra.mxu0 0.0
    %350 = vmatprep.subr.mxu0 0.0
    %351 = vmatpush1.msra.mxu0 0.0
    %352 = vmatprep.subr.mxu0 0.0
    %353 = vmatpush1.msra.mxu0 0.0
    %354 = vmatprep.subr.mxu0 0.0
    %355 = vmatpush1.msra.mxu0 0.0
    %356 = vmatprep.subr.mxu0 0.0
    %357 = vmatpush1.msra.mxu0 0.0
    %358 = vmatprep.subr.mxu0 0.0
    %359 = vmatpush1.msra.mxu0 0.0
    %360 = vmatprep.subr.mxu0 0.0
    %361 = vmatpush1.msra.mxu0 0.0
    %362 = vmatprep.subr.mxu0 0.0
    %363 = vmatpush1.msra.mxu0 0.0
    %364 = vmatprep.subr.mxu0 0.0
    %365 = vmatpush1.msra.mxu0 0.0
    %366 = vmatprep.subr.mxu0 0.0
    %367 = vmatpush1.msra.mxu0 0.0
    %368 = vmatprep.subr.mxu0 0.0
    %369 = vmatpush1.msra.mxu0 0.0
    %370 = vmatprep.subr.mxu0 0.0
    %371 = vmatpush1.msra.mxu0 0.0
    %372 = vmatprep.subr.mxu0 0.0
    %373 = vmatpush1.msra.mxu0 0.0
    %374 = vmatprep.subr.mxu0 0.0
    %375 = vmatpush1.msra.mxu0 0.0
    %376 = vmatprep.subr.mxu0 0.0
    %377 = vmatpush1.msra.mxu0 0.0
    %378 = vmatprep.subr.mxu0 0.0
    %379 = vmatpush1.msra.mxu0 0.0
    %380 = vmatprep.subr.mxu0 0.0
    %381 = vmatpush1.msra.mxu0 0.0
    %382 = vmatprep.subr.mxu0 0.0
    %383 = vmatpush1.msra.mxu0 0.0
    %384 = vmatprep.subr.mxu0 0.0
    %385 = vmatpush1.msra.mxu0 0.0
    %386 = vmatprep.subr.mxu0 0.0
    %387 = vmatpush1.msra.mxu0 0.0
    %388 = vmatprep.subr.mxu0 0.0
    %389 = vmatpush1.msra.mxu0 0.0
    %390 = vmatprep.subr.mxu0 0.0
    %391 = vmatpush1.msra.mxu0 0.0
    %392 = vmatprep.subr.mxu0 0.0
    %393 = vmatpush1.msra.mxu0 0.0
    %394 = vmatprep.subr.mxu0 0.0
    %395 = vmatpush1.msra.mxu0 0.0
    %396 = vmatprep.subr.mxu0 0.0
    %397 = vmatpush1.msra.mxu0 0.0
    %398 = vmatprep.subr.mxu0 0.0
    %399 = vmatpush1.msra.mxu0 0.0
    %400 = vmatprep.subr.mxu0 0.0
    %401 = vmatpush1.msra.mxu0 0.0
    %402 = vmatprep.mubr.f32.mxu0 0.0
    %403 = vmatmul.mubr.f32.gmra.mrb[0].mxu0 %v336
    %v404 = vpop.f32.mrb[0].mxu0
    %v405 = vadd.f32 %v324, %v404
    %v406 = vpop.f32.mrb[0].mxu0
    %407 = vdwg.mxu0
    %s408 = scalar_lea.vmem %s6, 32
    %v409 = vld [vmem:[%s408] sm:$0xff]
    %v410 = vld [vmem:[%s408 + $0x8] sm:$0xff]
    %v411 = vld [vmem:[%s408 + $0x10] sm:$0xff]
    %v412 = vld [vmem:[%s408 + $0x18] sm:$0xff]
    %s413 = scalar_lea.vmem %s8, 1
    %v414 = vld [vmem:[%s413] sm:$0x1]
    %v416 = vlaneseq
    %v417 = vshrl.u32 %v416, 7
    %v418 = vsub.s32 0, %v417
    %v419 = vrot.slane %v414, %v418
    %v422 = vsel %vm57, %v186, 0
    %424 = vmatprep.subr.mxu0 0.0
    %425 = vmatpush1.msra.mxu0 %v409
    %426 = vmatprep.subr.mxu0 0.0
    %427 = vmatpush1.msra.mxu0 %v410
    %428 = vmatprep.subr.mxu0 0.0
    %429 = vmatpush1.msra.mxu0 %v411
    %430 = vmatprep.subr.mxu0 0.0
    %431 = vmatpush1.msra.mxu0 %v412
    %432 = vmatprep.subr.mxu0 0.0
    %433 = vmatpush1.msra.mxu0 0.0
    %434 = vmatprep.subr.mxu0 0.0
    %435 = vmatpush1.msra.mxu0 0.0
    %436 = vmatprep.subr.mxu0 0.0
    %437 = vmatpush1.msra.mxu0 0.0
    %438 = vmatprep.subr.mxu0 0.0
    %439 = vmatpush1.msra.mxu0 0.0
    %440 = vmatprep.subr.mxu0 0.0
    %441 = vmatpush1.msra.mxu0 0.0
    %442 = vmatprep.subr.mxu0 0.0
    %443 = vmatpush1.msra.mxu0 0.0
    %444 = vmatprep.subr.mxu0 0.0
    %445 = vmatpush1.msra.mxu0 0.0
    %446 = vmatprep.subr.mxu0 0.0
    %447 = vmatpush1.msra.mxu0 0.0
    %448 = vmatprep.subr.mxu0 0.0
    %449 = vmatpush1.msra.mxu0 0.0
    %450 = vmatprep.subr.mxu0 0.0
    %451 = vmatpush1.msra.mxu0 0.0
    %452 = vmatprep.subr.mxu0 0.0
    %453 = vmatpush1.msra.mxu0 0.0
    %454 = vmatprep.subr.mxu0 0.0
    %455 = vmatpush1.msra.mxu0 0.0
    %456 = vmatprep.subr.mxu0 0.0
    %457 = vmatpush1.msra.mxu0 0.0
    %458 = vmatprep.subr.mxu0 0.0
    %459 = vmatpush1.msra.mxu0 0.0
    %460 = vmatprep.subr.mxu0 0.0
    %461 = vmatpush1.msra.mxu0 0.0
    %462 = vmatprep.subr.mxu0 0.0
    %463 = vmatpush1.msra.mxu0 0.0
    %464 = vmatprep.subr.mxu0 0.0
    %465 = vmatpush1.msra.mxu0 0.0
    %466 = vmatprep.subr.mxu0 0.0
    %467 = vmatpush1.msra.mxu0 0.0
    %468 = vmatprep.subr.mxu0 0.0
    %469 = vmatpush1.msra.mxu0 0.0
    %470 = vmatprep.subr.mxu0 0.0
    %471 = vmatpush1.msra.mxu0 0.0
    %472 = vmatprep.subr.mxu0 0.0
    %473 = vmatpush1.msra.mxu0 0.0
    %474 = vmatprep.subr.mxu0 0.0
    %475 = vmatpush1.msra.mxu0 0.0
    %476 = vmatprep.subr.mxu0 0.0
    %477 = vmatpush1.msra.mxu0 0.0
    %478 = vmatprep.subr.mxu0 0.0
    %479 = vmatpush1.msra.mxu0 0.0
    %480 = vmatprep.subr.mxu0 0.0
    %481 = vmatpush1.msra.mxu0 0.0
    %482 = vmatprep.subr.mxu0 0.0
    %483 = vmatpush1.msra.mxu0 0.0
    %484 = vmatprep.subr.mxu0 0.0
    %485 = vmatpush1.msra.mxu0 0.0
    %486 = vmatprep.subr.mxu0 0.0
    %487 = vmatpush1.msra.mxu0 0.0
    %488 = vmatprep.mubr.f32.mxu0 0.0
    %489 = vmatmul.mubr.f32.gmra.mrb[0].mxu0 %v422
    %v490 = vpop.f32.mrb[0].mxu0
    %v491 = vadd.f32 %v419, %v490
    %v492 = vpop.f32.mrb[0].mxu0
    %493 = vdwg.mxu0
    %v494 = vadd.f32 %v405, %v491
    %v495 = vxor.u32 %v494, 2147483648
    %v496 = vmul.f32 %v495, 1.442695
    %v497 = vpow.pop %v496
    %v498 = vadd.f32 %v497, 1.0
    %v499 = vrcp.pop %v498
    %v500 = vmul.f32 1.0, %v499
    %502 = vrot.lane.b32.xlu0 %v491, 64
    %v503 = vpop.permute.xlu0 %502
    %v505 = vmul.f32 %v500, %v503
    %507 = vrot.lane.b32.xlu0 %v505, 64
    %v508 = vpop.permute.xlu0 %507
    %v510 = vadd.f32 %v405, %v508
    %v511 = vtanh.pop %v510
    %v512 = vsub.f32 1.0, %v500
    %514 = vrot.lane.b32.xlu0 %v511, 96
    %v515 = vpop.permute.xlu0 %514
    %v517 = vmul.f32 %v512, %v515
    %518 = vrot.lane.b32.xlu0 %v186, 32
    %v519 = vpop.permute.xlu0 %518
    %v521 = vmul.f32 %v500, %v519
    %v522 = vadd.f32 %v517, %v521
    %523 = vmatprep.subr.mxu0 0.0
    %524 = vmatpush1.msra.mxu0 %v187
    %525 = vmatprep.subr.mxu0 0.0
    %526 = vmatpush1.msra.mxu0 %v188
    %527 = vmatprep.subr.mxu0 0.0
    %528 = vmatpush1.msra.mxu0 %v189
    %529 = vmatprep.subr.mxu0 0.0
    %530 = vmatpush1.msra.mxu0 %v190
    %531 = vmatprep.subr.mxu0 0.0
    %532 = vmatpush1.msra.mxu0 0.0
    %533 = vmatprep.subr.mxu0 0.0
    %534 = vmatpush1.msra.mxu0 0.0
    %535 = vmatprep.subr.mxu0 0.0
    %536 = vmatpush1.msra.mxu0 0.0
    %537 = vmatprep.subr.mxu0 0.0
    %538 = vmatpush1.msra.mxu0 0.0
    %539 = vmatprep.subr.mxu0 0.0
    %540 = vmatpush1.msra.mxu0 0.0
    %541 = vmatprep.subr.mxu0 0.0
    %542 = vmatpush1.msra.mxu0 0.0
    %543 = vmatprep.subr.mxu0 0.0
    %544 = vmatpush1.msra.mxu0 0.0
    %545 = vmatprep.subr.mxu0 0.0
    %546 = vmatpush1.msra.mxu0 0.0
    %547 = vmatprep.subr.mxu0 0.0
    %548 = vmatpush1.msra.mxu0 0.0
    %549 = vmatprep.subr.mxu0 0.0
    %550 = vmatpush1.msra.mxu0 0.0
    %551 = vmatprep.subr.mxu0 0.0
    %552 = vmatpush1.msra.mxu0 0.0
    %553 = vmatprep.subr.mxu0 0.0
    %554 = vmatpush1.msra.mxu0 0.0
    %555 = vmatprep.subr.mxu0 0.0
    %556 = vmatpush1.msra.mxu0 0.0
    %557 = vmatprep.subr.mxu0 0.0
    %558 = vmatpush1.msra.mxu0 0.0
    %559 = vmatprep.subr.mxu0 0.0
    %560 = vmatpush1.msra.mxu0 0.0
    %561 = vmatprep.subr.mxu0 0.0
    %562 = vmatpush1.msra.mxu0 0.0
    %563 = vmatprep.subr.mxu0 0.0
    %564 = vmatpush1.msra.mxu0 0.0
    %565 = vmatprep.subr.mxu0 0.0
    %566 = vmatpush1.msra.mxu0 0.0
    %567 = vmatprep.subr.mxu0 0.0
    %568 = vmatpush1.msra.mxu0 0.0
    %569 = vmatprep.subr.mxu0 0.0
    %570 = vmatpush1.msra.mxu0 0.0
    %571 = vmatprep.subr.mxu0 0.0
    %572 = vmatpush1.msra.mxu0 0.0
    %573 = vmatprep.subr.mxu0 0.0
    %574 = vmatpush1.msra.mxu0 0.0
    %575 = vmatprep.subr.mxu0 0.0
    %576 = vmatpush1.msra.mxu0 0.0
    %577 = vmatprep.subr.mxu0 0.0
    %578 = vmatpush1.msra.mxu0 0.0
    %579 = vmatprep.subr.mxu0 0.0
    %580 = vmatpush1.msra.mxu0 0.0
    %581 = vmatprep.subr.mxu0 0.0
    %582 = vmatpush1.msra.mxu0 0.0
    %583 = vmatprep.subr.mxu0 0.0
    %584 = vmatpush1.msra.mxu0 0.0
    %585 = vmatprep.subr.mxu0 0.0
    %586 = vmatpush1.msra.mxu0 0.0
    %587 = vmatprep.mubr.f32.mxu0 0.0
    %588 = vmatmul.mubr.f32.gmra.mrb[0].mxu0 %v336
    %v589 = vpop.f32.mrb[0].mxu0
    %v590 = vadd.f32 %v196, %v589
    %v591 = vpop.f32.mrb[0].mxu0
    %592 = vdwg.mxu0
    %v593 = vadd.f32 %v156, %v590
    %v594 = vxor.u32 %v593, 2147483648
    %v595 = vmul.f32 %v594, 1.442695
    %v596 = vpow.pop %v595
    %v597 = vadd.f32 %v596, 1.0
    %v598 = vrcp.pop %v597
    %v599 = vmul.f32 1.0, %v598
    %v602 = vunpack.c.l.s4 1983009808
    %v603 = vunpack.c.0.s8 %v602
    %v604 = vlaneseq
    %v605 = vshrl.u32 %v604, 7
    %v606 = vsub.s32 %v603, %v605
    %v607 = vrot.slane %v590, %v606
    %608 = vrot.lane.b32.xlu0 %v607, 64
    %v609 = vpop.permute.xlu0 %608
    %v611 = vmul.f32 %v599, %v609
    %613 = vrot.lane.b32.xlu0 %v611, 64
    %v614 = vpop.permute.xlu0 %613
    %v616 = vadd.f32 %v156, %v614
    %v617 = vtanh.pop %v616
    %v618 = vsub.f32 1.0, %v599
    %620 = vrot.lane.b32.xlu0 %v617, 96
    %v621 = vpop.permute.xlu0 %620
    %v623 = vmul.f32 %v618, %v621
    %v624 = vmul.f32 %v599, %v313
    %v625 = vadd.f32 %v623, %v624
    %v628 = vunpack.c.l.s4 1983009808
    %v629 = vunpack.c.0.s8 %v628
    %v630 = vlaneseq
    %v631 = vshrl.u32 %v630, 7
    %v632 = vsub.s32 %v629, %v631
    %v633 = vrot.slane %v625, %v632
    %634 = vrot.lane.b32.xlu0 %v633, 96
    %v635 = vpop.permute.xlu0 %634
    %v636 = vsel %vm57, %v635, 0
    %638 = vmatprep.subr.mxu0 0.0
    %639 = vmatpush1.msra.mxu0 %v314
    %640 = vmatprep.subr.mxu0 0.0
    %641 = vmatpush1.msra.mxu0 %v315
    %642 = vmatprep.subr.mxu0 0.0
    %643 = vmatpush1.msra.mxu0 %v316
    %644 = vmatprep.subr.mxu0 0.0
    %645 = vmatpush1.msra.mxu0 %v317
    %646 = vmatprep.subr.mxu0 0.0
    %647 = vmatpush1.msra.mxu0 0.0
    %648 = vmatprep.subr.mxu0 0.0
    %649 = vmatpush1.msra.mxu0 0.0
    %650 = vmatprep.subr.mxu0 0.0
    %651 = vmatpush1.msra.mxu0 0.0
    %652 = vmatprep.subr.mxu0 0.0
    %653 = vmatpush1.msra.mxu0 0.0
    %654 = vmatprep.subr.mxu0 0.0
    %655 = vmatpush1.msra.mxu0 0.0
    %656 = vmatprep.subr.mxu0 0.0
    %657 = vmatpush1.msra.mxu0 0.0
    %658 = vmatprep.subr.mxu0 0.0
    %659 = vmatpush1.msra.mxu0 0.0
    %660 = vmatprep.subr.mxu0 0.0
    %661 = vmatpush1.msra.mxu0 0.0
    %662 = vmatprep.subr.mxu0 0.0
    %663 = vmatpush1.msra.mxu0 0.0
    %664 = vmatprep.subr.mxu0 0.0
    %665 = vmatpush1.msra.mxu0 0.0
    %666 = vmatprep.subr.mxu0 0.0
    %667 = vmatpush1.msra.mxu0 0.0
    %668 = vmatprep.subr.mxu0 0.0
    %669 = vmatpush1.msra.mxu0 0.0
    %670 = vmatprep.subr.mxu0 0.0
    %671 = vmatpush1.msra.mxu0 0.0
    %672 = vmatprep.subr.mxu0 0.0
    %673 = vmatpush1.msra.mxu0 0.0
    %674 = vmatprep.subr.mxu0 0.0
    %675 = vmatpush1.msra.mxu0 0.0
    %676 = vmatprep.subr.mxu0 0.0
    %677 = vmatpush1.msra.mxu0 0.0
    %678 = vmatprep.subr.mxu0 0.0
    %679 = vmatpush1.msra.mxu0 0.0
    %680 = vmatprep.subr.mxu0 0.0
    %681 = vmatpush1.msra.mxu0 0.0
    %682 = vmatprep.subr.mxu0 0.0
    %683 = vmatpush1.msra.mxu0 0.0
    %684 = vmatprep.subr.mxu0 0.0
    %685 = vmatpush1.msra.mxu0 0.0
    %686 = vmatprep.subr.mxu0 0.0
    %687 = vmatpush1.msra.mxu0 0.0
    %688 = vmatprep.subr.mxu0 0.0
    %689 = vmatpush1.msra.mxu0 0.0
    %690 = vmatprep.subr.mxu0 0.0
    %691 = vmatpush1.msra.mxu0 0.0
    %692 = vmatprep.subr.mxu0 0.0
    %693 = vmatpush1.msra.mxu0 0.0
    %694 = vmatprep.subr.mxu0 0.0
    %695 = vmatpush1.msra.mxu0 0.0
    %696 = vmatprep.subr.mxu0 0.0
    %697 = vmatpush1.msra.mxu0 0.0
    %698 = vmatprep.subr.mxu0 0.0
    %699 = vmatpush1.msra.mxu0 0.0
    %700 = vmatprep.subr.mxu0 0.0
    %701 = vmatpush1.msra.mxu0 0.0
    %702 = vmatprep.mubr.f32.mxu0 0.0
    %703 = vmatmul.mubr.f32.gmra.mrb[0].mxu0 %v636
    %v704 = vpop.f32.mrb[0].mxu0
    %v705 = vadd.f32 %v324, %v704
    %v706 = vpop.f32.mrb[0].mxu0
    %707 = vdwg.mxu0
    %709 = vrot.lane.b32.xlu0 %v522, 96
    %v710 = vpop.permute.xlu0 %709
    %v711 = vsel %vm57, %v710, 0
    %713 = vmatprep.subr.mxu0 0.0
    %714 = vmatpush1.msra.mxu0 %v409
    %715 = vmatprep.subr.mxu0 0.0
    %716 = vmatpush1.msra.mxu0 %v410
    %717 = vmatprep.subr.mxu0 0.0
    %718 = vmatpush1.msra.mxu0 %v411
    %719 = vmatprep.subr.mxu0 0.0
    %720 = vmatpush1.msra.mxu0 %v412
    %721 = vmatprep.subr.mxu0 0.0
    %722 = vmatpush1.msra.mxu0 0.0
    %723 = vmatprep.subr.mxu0 0.0
    %724 = vmatpush1.msra.mxu0 0.0
    %725 = vmatprep.subr.mxu0 0.0
    %726 = vmatpush1.msra.mxu0 0.0
    %727 = vmatprep.subr.mxu0 0.0
    %728 = vmatpush1.msra.mxu0 0.0
    %729 = vmatprep.subr.mxu0 0.0
    %730 = vmatpush1.msra.mxu0 0.0
    %731 = vmatprep.subr.mxu0 0.0
    %732 = vmatpush1.msra.mxu0 0.0
    %733 = vmatprep.subr.mxu0 0.0
    %734 = vmatpush1.msra.mxu0 0.0
    %735 = vmatprep.subr.mxu0 0.0
    %736 = vmatpush1.msra.mxu0 0.0
    %737 = vmatprep.subr.mxu0 0.0
    %738 = vmatpush1.msra.mxu0 0.0
    %739 = vmatprep.subr.mxu0 0.0
    %740 = vmatpush1.msra.mxu0 0.0
    %741 = vmatprep.subr.mxu0 0.0
    %742 = vmatpush1.msra.mxu0 0.0
    %743 = vmatprep.subr.mxu0 0.0
    %744 = vmatpush1.msra.mxu0 0.0
    %745 = vmatprep.subr.mxu0 0.0
    %746 = vmatpush1.msra.mxu0 0.0
    %747 = vmatprep.subr.mxu0 0.0
    %748 = vmatpush1.msra.mxu0 0.0
    %749 = vmatprep.subr.mxu0 0.0
    %750 = vmatpush1.msra.mxu0 0.0
    %751 = vmatprep.subr.mxu0 0.0
    %752 = vmatpush1.msra.mxu0 0.0
    %753 = vmatprep.subr.mxu0 0.0
    %754 = vmatpush1.msra.mxu0 0.0
    %755 = vmatprep.subr.mxu0 0.0
    %756 = vmatpush1.msra.mxu0 0.0
    %757 = vmatprep.subr.mxu0 0.0
    %758 = vmatpush1.msra.mxu0 0.0
    %759 = vmatprep.subr.mxu0 0.0
    %760 = vmatpush1.msra.mxu0 0.0
    %761 = vmatprep.subr.mxu0 0.0
    %762 = vmatpush1.msra.mxu0 0.0
    %763 = vmatprep.subr.mxu0 0.0
    %764 = vmatpush1.msra.mxu0 0.0
    %765 = vmatprep.subr.mxu0 0.0
    %766 = vmatpush1.msra.mxu0 0.0
    %767 = vmatprep.subr.mxu0 0.0
    %768 = vmatpush1.msra.mxu0 0.0
    %769 = vmatprep.subr.mxu0 0.0
    %770 = vmatpush1.msra.mxu0 0.0
    %771 = vmatprep.subr.mxu0 0.0
    %772 = vmatpush1.msra.mxu0 0.0
    %773 = vmatprep.subr.mxu0 0.0
    %774 = vmatpush1.msra.mxu0 0.0
    %775 = vmatprep.subr.mxu0 0.0
    %776 = vmatpush1.msra.mxu0 0.0
    %777 = vmatprep.mubr.f32.mxu0 0.0
    %778 = vmatmul.mubr.f32.gmra.mrb[0].mxu0 %v711
    %v779 = vpop.f32.mrb[0].mxu0
    %v780 = vadd.f32 %v419, %v779
    %v781 = vpop.f32.mrb[0].mxu0
    %782 = vdwg.mxu0
    %v783 = vadd.f32 %v705, %v780
    %v784 = vxor.u32 %v783, 2147483648
    %v785 = vmul.f32 %v784, 1.442695
    %v786 = vpow.pop %v785
    %v787 = vadd.f32 %v786, 1.0
    %v788 = vrcp.pop %v787
    %v789 = vmul.f32 1.0, %v788
    %791 = vrot.lane.b32.xlu0 %v780, 64
    %v792 = vpop.permute.xlu0 %791
    %v794 = vmul.f32 %v789, %v792
    %796 = vrot.lane.b32.xlu0 %v794, 64
    %v797 = vpop.permute.xlu0 %796
    %v799 = vadd.f32 %v705, %v797
    %v800 = vtanh.pop %v799
    %v801 = vsub.f32 1.0, %v789
    %803 = vrot.lane.b32.xlu0 %v800, 96
    %v804 = vpop.permute.xlu0 %803
    %v806 = vmul.f32 %v801, %v804
    %v807 = vmul.f32 %v789, %v522
    %v808 = vadd.f32 %v806, %v807
    %809 = vmatprep.subr.mxu0 0.0
    %810 = vmatpush1.msra.mxu0 %v187
    %811 = vmatprep.subr.mxu0 0.0
    %812 = vmatpush1.msra.mxu0 %v188
    %813 = vmatprep.subr.mxu0 0.0
    %814 = vmatpush1.msra.mxu0 %v189
    %815 = vmatprep.subr.mxu0 0.0
    %816 = vmatpush1.msra.mxu0 %v190
    %817 = vmatprep.subr.mxu0 0.0
    %818 = vmatpush1.msra.mxu0 0.0
    %819 = vmatprep.subr.mxu0 0.0
    %820 = vmatpush1.msra.mxu0 0.0
    %821 = vmatprep.subr.mxu0 0.0
    %822 = vmatpush1.msra.mxu0 0.0
    %823 = vmatprep.subr.mxu0 0.0
    %824 = vmatpush1.msra.mxu0 0.0
    %825 = vmatprep.subr.mxu0 0.0
    %826 = vmatpush1.msra.mxu0 0.0
    %827 = vmatprep.subr.mxu0 0.0
    %828 = vmatpush1.msra.mxu0 0.0
    %829 = vmatprep.subr.mxu0 0.0
    %830 = vmatpush1.msra.mxu0 0.0
    %831 = vmatprep.subr.mxu0 0.0
    %832 = vmatpush1.msra.mxu0 0.0
    %833 = vmatprep.subr.mxu0 0.0
    %834 = vmatpush1.msra.mxu0 0.0
    %835 = vmatprep.subr.mxu0 0.0
    %836 = vmatpush1.msra.mxu0 0.0
    %837 = vmatprep.subr.mxu0 0.0
    %838 = vmatpush1.msra.mxu0 0.0
    %839 = vmatprep.subr.mxu0 0.0
    %840 = vmatpush1.msra.mxu0 0.0
    %841 = vmatprep.subr.mxu0 0.0
    %842 = vmatpush1.msra.mxu0 0.0
    %843 = vmatprep.subr.mxu0 0.0
    %844 = vmatpush1.msra.mxu0 0.0
    %845 = vmatprep.subr.mxu0 0.0
    %846 = vmatpush1.msra.mxu0 0.0
    %847 = vmatprep.subr.mxu0 0.0
    %848 = vmatpush1.msra.mxu0 0.0
    %849 = vmatprep.subr.mxu0 0.0
    %850 = vmatpush1.msra.mxu0 0.0
    %851 = vmatprep.subr.mxu0 0.0
    %852 = vmatpush1.msra.mxu0 0.0
    %853 = vmatprep.subr.mxu0 0.0
    %854 = vmatpush1.msra.mxu0 0.0
    %855 = vmatprep.subr.mxu0 0.0
    %856 = vmatpush1.msra.mxu0 0.0
    %857 = vmatprep.subr.mxu0 0.0
    %858 = vmatpush1.msra.mxu0 0.0
    %859 = vmatprep.subr.mxu0 0.0
    %860 = vmatpush1.msra.mxu0 0.0
    %861 = vmatprep.subr.mxu0 0.0
    %862 = vmatpush1.msra.mxu0 0.0
    %863 = vmatprep.subr.mxu0 0.0
    %864 = vmatpush1.msra.mxu0 0.0
    %865 = vmatprep.subr.mxu0 0.0
    %866 = vmatpush1.msra.mxu0 0.0
    %867 = vmatprep.subr.mxu0 0.0
    %868 = vmatpush1.msra.mxu0 0.0
    %869 = vmatprep.subr.mxu0 0.0
    %870 = vmatpush1.msra.mxu0 0.0
    %871 = vmatprep.subr.mxu0 0.0
    %872 = vmatpush1.msra.mxu0 0.0
    %873 = vmatprep.mubr.f32.mxu0 0.0
    %874 = vmatmul.mubr.f32.gmra.mrb[0].mxu0 %v636
    %v875 = vpop.f32.mrb[0].mxu0
    %v876 = vadd.f32 %v196, %v875
    %v877 = vpop.f32.mrb[0].mxu0
    %878 = vdwg.mxu0
    %v879 = vadd.f32 %v155, %v876
    %v880 = vxor.u32 %v879, 2147483648
    %v881 = vmul.f32 %v880, 1.442695
    %v882 = vpow.pop %v881
    %v883 = vadd.f32 %v882, 1.0
    %v884 = vrcp.pop %v883
    %v885 = vmul.f32 1.0, %v884
    %v888 = vunpack.c.l.s4 1983009808
    %v889 = vunpack.c.0.s8 %v888
    %v890 = vlaneseq
    %v891 = vshrl.u32 %v890, 7
    %v892 = vsub.s32 %v889, %v891
    %v893 = vrot.slane %v876, %v892
    %894 = vrot.lane.b32.xlu0 %v893, 64
    %v895 = vpop.permute.xlu0 %894
    %v897 = vmul.f32 %v885, %v895
    %899 = vrot.lane.b32.xlu0 %v897, 64
    %v900 = vpop.permute.xlu0 %899
    %v902 = vadd.f32 %v155, %v900
    %v903 = vtanh.pop %v902
    %v904 = vsub.f32 1.0, %v885
    %906 = vrot.lane.b32.xlu0 %v903, 96
    %v907 = vpop.permute.xlu0 %906
    %v909 = vmul.f32 %v904, %v907
    %v910 = vmul.f32 %v885, %v625
    %v911 = vadd.f32 %v909, %v910
    %v914 = vunpack.c.l.s4 1983009808
    %v915 = vunpack.c.0.s8 %v914
    %v916 = vlaneseq
    %v917 = vshrl.u32 %v916, 7
    %v918 = vsub.s32 %v915, %v917
    %v919 = vrot.slane %v911, %v918
    %920 = vrot.lane.b32.xlu0 %v919, 96
    %v921 = vpop.permute.xlu0 %920
    %v922 = vsel %vm57, %v921, 0
    %924 = vmatprep.subr.mxu0 0.0
    %925 = vmatpush1.msra.mxu0 %v314
    %926 = vmatprep.subr.mxu0 0.0
    %927 = vmatpush1.msra.mxu0 %v315
    %928 = vmatprep.subr.mxu0 0.0
    %929 = vmatpush1.msra.mxu0 %v316
    %930 = vmatprep.subr.mxu0 0.0
    %931 = vmatpush1.msra.mxu0 %v317
    %932 = vmatprep.subr.mxu0 0.0
    %933 = vmatpush1.msra.mxu0 0.0
    %934 = vmatprep.subr.mxu0 0.0
    %935 = vmatpush1.msra.mxu0 0.0
    %936 = vmatprep.subr.mxu0 0.0
    %937 = vmatpush1.msra.mxu0 0.0
    %938 = vmatprep.subr.mxu0 0.0
    %939 = vmatpush1.msra.mxu0 0.0
    %940 = vmatprep.subr.mxu0 0.0
    %941 = vmatpush1.msra.mxu0 0.0
    %942 = vmatprep.subr.mxu0 0.0
    %943 = vmatpush1.msra.mxu0 0.0
    %944 = vmatprep.subr.mxu0 0.0
    %945 = vmatpush1.msra.mxu0 0.0
    %946 = vmatprep.subr.mxu0 0.0
    %947 = vmatpush1.msra.mxu0 0.0
    %948 = vmatprep.subr.mxu0 0.0
    %949 = vmatpush1.msra.mxu0 0.0
    %950 = vmatprep.subr.mxu0 0.0
    %951 = vmatpush1.msra.mxu0 0.0
    %952 = vmatprep.subr.mxu0 0.0
    %953 = vmatpush1.msra.mxu0 0.0
    %954 = vmatprep.subr.mxu0 0.0
    %955 = vmatpush1.msra.mxu0 0.0
    %956 = vmatprep.subr.mxu0 0.0
    %957 = vmatpush1.msra.mxu0 0.0
    %958 = vmatprep.subr.mxu0 0.0
    %959 = vmatpush1.msra.mxu0 0.0
    %960 = vmatprep.subr.mxu0 0.0
    %961 = vmatpush1.msra.mxu0 0.0
    %962 = vmatprep.subr.mxu0 0.0
    %963 = vmatpush1.msra.mxu0 0.0
    %964 = vmatprep.subr.mxu0 0.0
    %965 = vmatpush1.msra.mxu0 0.0
    %966 = vmatprep.subr.mxu0 0.0
    %967 = vmatpush1.msra.mxu0 0.0
    %968 = vmatprep.subr.mxu0 0.0
    %969 = vmatpush1.msra.mxu0 0.0
    %970 = vmatprep.subr.mxu0 0.0
    %971 = vmatpush1.msra.mxu0 0.0
    %972 = vmatprep.subr.mxu0 0.0
    %973 = vmatpush1.msra.mxu0 0.0
    %974 = vmatprep.subr.mxu0 0.0
    %975 = vmatpush1.msra.mxu0 0.0
    %976 = vmatprep.subr.mxu0 0.0
    %977 = vmatpush1.msra.mxu0 0.0
    %978 = vmatprep.subr.mxu0 0.0
    %979 = vmatpush1.msra.mxu0 0.0
    %980 = vmatprep.subr.mxu0 0.0
    %981 = vmatpush1.msra.mxu0 0.0
    %982 = vmatprep.subr.mxu0 0.0
    %983 = vmatpush1.msra.mxu0 0.0
    %984 = vmatprep.subr.mxu0 0.0
    %985 = vmatpush1.msra.mxu0 0.0
    %986 = vmatprep.subr.mxu0 0.0
    %987 = vmatpush1.msra.mxu0 0.0
    %988 = vmatprep.mubr.f32.mxu0 0.0
    %989 = vmatmul.mubr.f32.gmra.mrb[0].mxu0 %v922
    %v990 = vpop.f32.mrb[0].mxu0
    %v991 = vadd.f32 %v324, %v990
    %v992 = vpop.f32.mrb[0].mxu0
    %993 = vdwg.mxu0
    %995 = vrot.lane.b32.xlu0 %v808, 96
    %v996 = vpop.permute.xlu0 %995
    %v997 = vsel %vm57, %v996, 0
    %999 = vmatprep.subr.mxu0 0.0
    %1000 = vmatpush1.msra.mxu0 %v409
    %1001 = vmatprep.subr.mxu0 0.0
    %1002 = vmatpush1.msra.mxu0 %v410
    %1003 = vmatprep.subr.mxu0 0.0
    %1004 = vmatpush1.msra.mxu0 %v411
    %1005 = vmatprep.subr.mxu0 0.0
    %1006 = vmatpush1.msra.mxu0 %v412
    %1007 = vmatprep.subr.mxu0 0.0
    %1008 = vmatpush1.msra.mxu0 0.0
    %1009 = vmatprep.subr.mxu0 0.0
    %1010 = vmatpush1.msra.mxu0 0.0
    %1011 = vmatprep.subr.mxu0 0.0
    %1012 = vmatpush1.msra.mxu0 0.0
    %1013 = vmatprep.subr.mxu0 0.0
    %1014 = vmatpush1.msra.mxu0 0.0
    %1015 = vmatprep.subr.mxu0 0.0
    %1016 = vmatpush1.msra.mxu0 0.0
    %1017 = vmatprep.subr.mxu0 0.0
    %1018 = vmatpush1.msra.mxu0 0.0
    %1019 = vmatprep.subr.mxu0 0.0
    %1020 = vmatpush1.msra.mxu0 0.0
    %1021 = vmatprep.subr.mxu0 0.0
    %1022 = vmatpush1.msra.mxu0 0.0
    %1023 = vmatprep.subr.mxu0 0.0
    %1024 = vmatpush1.msra.mxu0 0.0
    %1025 = vmatprep.subr.mxu0 0.0
    %1026 = vmatpush1.msra.mxu0 0.0
    %1027 = vmatprep.subr.mxu0 0.0
    %1028 = vmatpush1.msra.mxu0 0.0
    %1029 = vmatprep.subr.mxu0 0.0
    %1030 = vmatpush1.msra.mxu0 0.0
    %1031 = vmatprep.subr.mxu0 0.0
    %1032 = vmatpush1.msra.mxu0 0.0
    %1033 = vmatprep.subr.mxu0 0.0
    %1034 = vmatpush1.msra.mxu0 0.0
    %1035 = vmatprep.subr.mxu0 0.0
    %1036 = vmatpush1.msra.mxu0 0.0
    %1037 = vmatprep.subr.mxu0 0.0
    %1038 = vmatpush1.msra.mxu0 0.0
    %1039 = vmatprep.subr.mxu0 0.0
    %1040 = vmatpush1.msra.mxu0 0.0
    %1041 = vmatprep.subr.mxu0 0.0
    %1042 = vmatpush1.msra.mxu0 0.0
    %1043 = vmatprep.subr.mxu0 0.0
    %1044 = vmatpush1.msra.mxu0 0.0
    %1045 = vmatprep.subr.mxu0 0.0
    %1046 = vmatpush1.msra.mxu0 0.0
    %1047 = vmatprep.subr.mxu0 0.0
    %1048 = vmatpush1.msra.mxu0 0.0
    %1049 = vmatprep.subr.mxu0 0.0
    %1050 = vmatpush1.msra.mxu0 0.0
    %1051 = vmatprep.subr.mxu0 0.0
    %1052 = vmatpush1.msra.mxu0 0.0
    %1053 = vmatprep.subr.mxu0 0.0
    %1054 = vmatpush1.msra.mxu0 0.0
    %1055 = vmatprep.subr.mxu0 0.0
    %1056 = vmatpush1.msra.mxu0 0.0
    %1057 = vmatprep.subr.mxu0 0.0
    %1058 = vmatpush1.msra.mxu0 0.0
    %1059 = vmatprep.subr.mxu0 0.0
    %1060 = vmatpush1.msra.mxu0 0.0
    %1061 = vmatprep.subr.mxu0 0.0
    %1062 = vmatpush1.msra.mxu0 0.0
    %1063 = vmatprep.mubr.f32.mxu0 0.0
    %1064 = vmatmul.mubr.f32.gmra.mrb[0].mxu0 %v997
    %v1065 = vpop.f32.mrb[0].mxu0
    %v1066 = vadd.f32 %v419, %v1065
    %v1067 = vpop.f32.mrb[0].mxu0
    %1068 = vdwg.mxu0
    %v1069 = vadd.f32 %v991, %v1066
    %v1070 = vxor.u32 %v1069, 2147483648
    %v1071 = vmul.f32 %v1070, 1.442695
    %v1072 = vpow.pop %v1071
    %v1073 = vadd.f32 %v1072, 1.0
    %v1074 = vrcp.pop %v1073
    %v1075 = vmul.f32 1.0, %v1074
    %1077 = vrot.lane.b32.xlu0 %v1066, 64
    %v1078 = vpop.permute.xlu0 %1077
    %v1080 = vmul.f32 %v1075, %v1078
    %1082 = vrot.lane.b32.xlu0 %v1080, 64
    %v1083 = vpop.permute.xlu0 %1082
    %v1085 = vadd.f32 %v991, %v1083
    %v1086 = vtanh.pop %v1085
    %v1087 = vsub.f32 1.0, %v1075
    %1089 = vrot.lane.b32.xlu0 %v1086, 96
    %v1090 = vpop.permute.xlu0 %1089
    %v1092 = vmul.f32 %v1087, %v1090
    %v1093 = vmul.f32 %v1075, %v808
    %v1094 = vadd.f32 %v1092, %v1093
    %1095 = vmatprep.subr.mxu0 0.0
    %1096 = vmatpush1.msra.mxu0 %v187
    %1097 = vmatprep.subr.mxu0 0.0
    %1098 = vmatpush1.msra.mxu0 %v188
    %1099 = vmatprep.subr.mxu0 0.0
    %1100 = vmatpush1.msra.mxu0 %v189
    %1101 = vmatprep.subr.mxu0 0.0
    %1102 = vmatpush1.msra.mxu0 %v190
    %1103 = vmatprep.subr.mxu0 0.0
    %1104 = vmatpush1.msra.mxu0 0.0
    %1105 = vmatprep.subr.mxu0 0.0
    %1106 = vmatpush1.msra.mxu0 0.0
    %1107 = vmatprep.subr.mxu0 0.0
    %1108 = vmatpush1.msra.mxu0 0.0
    %1109 = vmatprep.subr.mxu0 0.0
    %1110 = vmatpush1.msra.mxu0 0.0
    %1111 = vmatprep.subr.mxu0 0.0
    %1112 = vmatpush1.msra.mxu0 0.0
    %1113 = vmatprep.subr.mxu0 0.0
    %1114 = vmatpush1.msra.mxu0 0.0
    %1115 = vmatprep.subr.mxu0 0.0
    %1116 = vmatpush1.msra.mxu0 0.0
    %1117 = vmatprep.subr.mxu0 0.0
    %1118 = vmatpush1.msra.mxu0 0.0
    %1119 = vmatprep.subr.mxu0 0.0
    %1120 = vmatpush1.msra.mxu0 0.0
    %1121 = vmatprep.subr.mxu0 0.0
    %1122 = vmatpush1.msra.mxu0 0.0
    %1123 = vmatprep.subr.mxu0 0.0
    %1124 = vmatpush1.msra.mxu0 0.0
    %1125 = vmatprep.subr.mxu0 0.0
    %1126 = vmatpush1.msra.mxu0 0.0
    %1127 = vmatprep.subr.mxu0 0.0
    %1128 = vmatpush1.msra.mxu0 0.0
    %1129 = vmatprep.subr.mxu0 0.0
    %1130 = vmatpush1.msra.mxu0 0.0
    %1131 = vmatprep.subr.mxu0 0.0
    %1132 = vmatpush1.msra.mxu0 0.0
    %1133 = vmatprep.subr.mxu0 0.0
    %1134 = vmatpush1.msra.mxu0 0.0
    %1135 = vmatprep.subr.mxu0 0.0
    %1136 = vmatpush1.msra.mxu0 0.0
    %1137 = vmatprep.subr.mxu0 0.0
    %1138 = vmatpush1.msra.mxu0 0.0
    %1139 = vmatprep.subr.mxu0 0.0
    %1140 = vmatpush1.msra.mxu0 0.0
    %1141 = vmatprep.subr.mxu0 0.0
    %1142 = vmatpush1.msra.mxu0 0.0
    %1143 = vmatprep.subr.mxu0 0.0
    %1144 = vmatpush1.msra.mxu0 0.0
    %1145 = vmatprep.subr.mxu0 0.0
    %1146 = vmatpush1.msra.mxu0 0.0
    %1147 = vmatprep.subr.mxu0 0.0
    %1148 = vmatpush1.msra.mxu0 0.0
    %1149 = vmatprep.subr.mxu0 0.0
    %1150 = vmatpush1.msra.mxu0 0.0
    %1151 = vmatprep.subr.mxu0 0.0
    %1152 = vmatpush1.msra.mxu0 0.0
    %1153 = vmatprep.subr.mxu0 0.0
    %1154 = vmatpush1.msra.mxu0 0.0
    %1155 = vmatprep.subr.mxu0 0.0
    %1156 = vmatpush1.msra.mxu0 0.0
    %1157 = vmatprep.subr.mxu0 0.0
    %1158 = vmatpush1.msra.mxu0 0.0
    %1159 = vmatprep.mubr.f32.mxu0 0.0
    %1160 = vmatmul.mubr.f32.gmra.mrb[0].mxu0 %v922
    %v1161 = vpop.f32.mrb[0].mxu0
    %v1162 = vadd.f32 %v196, %v1161
    %v1163 = vpop.f32.mrb[0].mxu0
    %1164 = vdwg.mxu0
    %v1165 = vadd.f32 %v157, %v1162
    %v1166 = vxor.u32 %v1165, 2147483648
    %v1167 = vmul.f32 %v1166, 1.442695
    %v1168 = vpow.pop %v1167
    %v1169 = vadd.f32 %v1168, 1.0
    %v1170 = vrcp.pop %v1169
    %v1171 = vmul.f32 1.0, %v1170
    %v1174 = vunpack.c.l.s4 1983009808
    %v1175 = vunpack.c.0.s8 %v1174
    %v1176 = vlaneseq
    %v1177 = vshrl.u32 %v1176, 7
    %v1178 = vsub.s32 %v1175, %v1177
    %v1179 = vrot.slane %v1162, %v1178
    %1180 = vrot.lane.b32.xlu0 %v1179, 64
    %v1181 = vpop.permute.xlu0 %1180
    %v1183 = vmul.f32 %v1171, %v1181
    %1185 = vrot.lane.b32.xlu0 %v1183, 64
    %v1186 = vpop.permute.xlu0 %1185
    %v1188 = vadd.f32 %v157, %v1186
    %v1189 = vtanh.pop %v1188
    %v1190 = vsub.f32 1.0, %v1171
    %1192 = vrot.lane.b32.xlu0 %v1189, 96
    %v1193 = vpop.permute.xlu0 %1192
    %v1195 = vmul.f32 %v1190, %v1193
    %v1196 = vmul.f32 %v1171, %v911
    %v1197 = vadd.f32 %v1195, %v1196
    %v1200 = vunpack.c.l.s4 1983009808
    %v1201 = vunpack.c.0.s8 %v1200
    %v1202 = vlaneseq
    %v1203 = vshrl.u32 %v1202, 7
    %v1204 = vsub.s32 %v1201, %v1203
    %v1205 = vrot.slane %v1197, %v1204
    %1206 = vrot.lane.b32.xlu0 %v1205, 96
    %v1207 = vpop.permute.xlu0 %1206
    %v1208 = vsel %vm57, %v1207, 0
    %1210 = vmatprep.subr.mxu0 0.0
    %1211 = vmatpush1.msra.mxu0 %v314
    %1212 = vmatprep.subr.mxu0 0.0
    %1213 = vmatpush1.msra.mxu0 %v315
    %1214 = vmatprep.subr.mxu0 0.0
    %1215 = vmatpush1.msra.mxu0 %v316
    %1216 = vmatprep.subr.mxu0 0.0
    %1217 = vmatpush1.msra.mxu0 %v317
    %1218 = vmatprep.subr.mxu0 0.0
    %1219 = vmatpush1.msra.mxu0 0.0
    %1220 = vmatprep.subr.mxu0 0.0
    %1221 = vmatpush1.msra.mxu0 0.0
    %1222 = vmatprep.subr.mxu0 0.0
    %1223 = vmatpush1.msra.mxu0 0.0
    %1224 = vmatprep.subr.mxu0 0.0
    %1225 = vmatpush1.msra.mxu0 0.0
    %1226 = vmatprep.subr.mxu0 0.0
    %1227 = vmatpush1.msra.mxu0 0.0
    %1228 = vmatprep.subr.mxu0 0.0
    %1229 = vmatpush1.msra.mxu0 0.0
    %1230 = vmatprep.subr.mxu0 0.0
    %1231 = vmatpush1.msra.mxu0 0.0
    %1232 = vmatprep.subr.mxu0 0.0
    %1233 = vmatpush1.msra.mxu0 0.0
    %1234 = vmatprep.subr.mxu0 0.0
    %1235 = vmatpush1.msra.mxu0 0.0
    %1236 = vmatprep.subr.mxu0 0.0
    %1237 = vmatpush1.msra.mxu0 0.0
    %1238 = vmatprep.subr.mxu0 0.0
    %1239 = vmatpush1.msra.mxu0 0.0
    %1240 = vmatprep.subr.mxu0 0.0
    %1241 = vmatpush1.msra.mxu0 0.0
    %1242 = vmatprep.subr.mxu0 0.0
    %1243 = vmatpush1.msra.mxu0 0.0
    %1244 = vmatprep.subr.mxu0 0.0
    %1245 = vmatpush1.msra.mxu0 0.0
    %1246 = vmatprep.subr.mxu0 0.0
    %1247 = vmatpush1.msra.mxu0 0.0
    %1248 = vmatprep.subr.mxu0 0.0
    %1249 = vmatpush1.msra.mxu0 0.0
    %1250 = vmatprep.subr.mxu0 0.0
    %1251 = vmatpush1.msra.mxu0 0.0
    %1252 = vmatprep.subr.mxu0 0.0
    %1253 = vmatpush1.msra.mxu0 0.0
    %1254 = vmatprep.subr.mxu0 0.0
    %1255 = vmatpush1.msra.mxu0 0.0
    %1256 = vmatprep.subr.mxu0 0.0
    %1257 = vmatpush1.msra.mxu0 0.0
    %1258 = vmatprep.subr.mxu0 0.0
    %1259 = vmatpush1.msra.mxu0 0.0
    %1260 = vmatprep.subr.mxu0 0.0
    %1261 = vmatpush1.msra.mxu0 0.0
    %1262 = vmatprep.subr.mxu0 0.0
    %1263 = vmatpush1.msra.mxu0 0.0
    %1264 = vmatprep.subr.mxu0 0.0
    %1265 = vmatpush1.msra.mxu0 0.0
    %1266 = vmatprep.subr.mxu0 0.0
    %1267 = vmatpush1.msra.mxu0 0.0
    %1268 = vmatprep.subr.mxu0 0.0
    %1269 = vmatpush1.msra.mxu0 0.0
    %1270 = vmatprep.subr.mxu0 0.0
    %1271 = vmatpush1.msra.mxu0 0.0
    %1272 = vmatprep.subr.mxu0 0.0
    %1273 = vmatpush1.msra.mxu0 0.0
    %1274 = vmatprep.mubr.f32.mxu0 0.0
    %1275 = vmatmul.mubr.f32.gmra.mrb[0].mxu0 %v1208
    %v1276 = vpop.f32.mrb[0].mxu0
    %v1277 = vadd.f32 %v324, %v1276
    %v1278 = vpop.f32.mrb[0].mxu0
    %1279 = vdwg.mxu0
    %1281 = vrot.lane.b32.xlu0 %v1094, 96
    %v1282 = vpop.permute.xlu0 %1281
    %v1283 = vsel %vm57, %v1282, 0
    %1285 = vmatprep.subr.mxu0 0.0
    %1286 = vmatpush1.msra.mxu0 %v409
    %1287 = vmatprep.subr.mxu0 0.0
    %1288 = vmatpush1.msra.mxu0 %v410
    %1289 = vmatprep.subr.mxu0 0.0
    %1290 = vmatpush1.msra.mxu0 %v411
    %1291 = vmatprep.subr.mxu0 0.0
    %1292 = vmatpush1.msra.mxu0 %v412
    %1293 = vmatprep.subr.mxu0 0.0
    %1294 = vmatpush1.msra.mxu0 0.0
    %1295 = vmatprep.subr.mxu0 0.0
    %1296 = vmatpush1.msra.mxu0 0.0
    %1297 = vmatprep.subr.mxu0 0.0
    %1298 = vmatpush1.msra.mxu0 0.0
    %1299 = vmatprep.subr.mxu0 0.0
    %1300 = vmatpush1.msra.mxu0 0.0
    %1301 = vmatprep.subr.mxu0 0.0
    %1302 = vmatpush1.msra.mxu0 0.0
    %1303 = vmatprep.subr.mxu0 0.0
    %1304 = vmatpush1.msra.mxu0 0.0
    %1305 = vmatprep.subr.mxu0 0.0
    %1306 = vmatpush1.msra.mxu0 0.0
    %1307 = vmatprep.subr.mxu0 0.0
    %1308 = vmatpush1.msra.mxu0 0.0
    %1309 = vmatprep.subr.mxu0 0.0
    %1310 = vmatpush1.msra.mxu0 0.0
    %1311 = vmatprep.subr.mxu0 0.0
    %1312 = vmatpush1.msra.mxu0 0.0
    %1313 = vmatprep.subr.mxu0 0.0
    %1314 = vmatpush1.msra.mxu0 0.0
    %1315 = vmatprep.subr.mxu0 0.0
    %1316 = vmatpush1.msra.mxu0 0.0
    %1317 = vmatprep.subr.mxu0 0.0
    %1318 = vmatpush1.msra.mxu0 0.0
    %1319 = vmatprep.subr.mxu0 0.0
    %1320 = vmatpush1.msra.mxu0 0.0
    %1321 = vmatprep.subr.mxu0 0.0
    %1322 = vmatpush1.msra.mxu0 0.0
    %1323 = vmatprep.subr.mxu0 0.0
    %1324 = vmatpush1.msra.mxu0 0.0
    %1325 = vmatprep.subr.mxu0 0.0
    %1326 = vmatpush1.msra.mxu0 0.0
    %1327 = vmatprep.subr.mxu0 0.0
    %1328 = vmatpush1.msra.mxu0 0.0
    %1329 = vmatprep.subr.mxu0 0.0
    %1330 = vmatpush1.msra.mxu0 0.0
    %1331 = vmatprep.subr.mxu0 0.0
    %1332 = vmatpush1.msra.mxu0 0.0
    %1333 = vmatprep.subr.mxu0 0.0
    %1334 = vmatpush1.msra.mxu0 0.0
    %1335 = vmatprep.subr.mxu0 0.0
    %1336 = vmatpush1.msra.mxu0 0.0
    %1337 = vmatprep.subr.mxu0 0.0
    %1338 = vmatpush1.msra.mxu0 0.0
    %1339 = vmatprep.subr.mxu0 0.0
    %1340 = vmatpush1.msra.mxu0 0.0
    %1341 = vmatprep.subr.mxu0 0.0
    %1342 = vmatpush1.msra.mxu0 0.0
    %1343 = vmatprep.subr.mxu0 0.0
    %1344 = vmatpush1.msra.mxu0 0.0
    %1345 = vmatprep.subr.mxu0 0.0
    %1346 = vmatpush1.msra.mxu0 0.0
    %1347 = vmatprep.subr.mxu0 0.0
    %1348 = vmatpush1.msra.mxu0 0.0
    %1349 = vmatprep.mubr.f32.mxu0 0.0
    %1350 = vmatmul.mubr.f32.gmra.mrb[0].mxu0 %v1283
    %v1351 = vpop.f32.mrb[0].mxu0
    %v1352 = vadd.f32 %v419, %v1351
    %v1353 = vpop.f32.mrb[0].mxu0
    %1354 = vdwg.mxu0
    %v1355 = vadd.f32 %v1277, %v1352
    %v1356 = vxor.u32 %v1355, 2147483648
    %v1357 = vmul.f32 %v1356, 1.442695
    %v1358 = vpow.pop %v1357
    %v1359 = vadd.f32 %v1358, 1.0
    %v1360 = vrcp.pop %v1359
    %v1361 = vmul.f32 1.0, %v1360
    %1363 = vrot.lane.b32.xlu0 %v1352, 64
    %v1364 = vpop.permute.xlu0 %1363
    %v1366 = vmul.f32 %v1361, %v1364
    %1368 = vrot.lane.b32.xlu0 %v1366, 64
    %v1369 = vpop.permute.xlu0 %1368
    %v1371 = vadd.f32 %v1277, %v1369
    %v1372 = vtanh.pop %v1371
    %v1373 = vsub.f32 1.0, %v1361
    %1375 = vrot.lane.b32.xlu0 %v1372, 96
    %v1376 = vpop.permute.xlu0 %1375
    %v1378 = vmul.f32 %v1373, %v1376
    %v1379 = vmul.f32 %v1361, %v1094
    %v1380 = vadd.f32 %v1378, %v1379
    %1381 = vmatprep.subr.mxu0 0.0
    %1382 = vmatpush1.msra.mxu0 %v187
    %1383 = vmatprep.subr.mxu0 0.0
    %1384 = vmatpush1.msra.mxu0 %v188
    %1385 = vmatprep.subr.mxu0 0.0
    %1386 = vmatpush1.msra.mxu0 %v189
    %1387 = vmatprep.subr.mxu0 0.0
    %1388 = vmatpush1.msra.mxu0 %v190
    %1389 = vmatprep.subr.mxu0 0.0
    %1390 = vmatpush1.msra.mxu0 0.0
    %1391 = vmatprep.subr.mxu0 0.0
    %1392 = vmatpush1.msra.mxu0 0.0
    %1393 = vmatprep.subr.mxu0 0.0
    %1394 = vmatpush1.msra.mxu0 0.0
    %1395 = vmatprep.subr.mxu0 0.0
    %1396 = vmatpush1.msra.mxu0 0.0
    %1397 = vmatprep.subr.mxu0 0.0
    %1398 = vmatpush1.msra.mxu0 0.0
    %1399 = vmatprep.subr.mxu0 0.0
    %1400 = vmatpush1.msra.mxu0 0.0
    %1401 = vmatprep.subr.mxu0 0.0
    %1402 = vmatpush1.msra.mxu0 0.0
    %1403 = vmatprep.subr.mxu0 0.0
    %1404 = vmatpush1.msra.mxu0 0.0
    %1405 = vmatprep.subr.mxu0 0.0
    %1406 = vmatpush1.msra.mxu0 0.0
    %1407 = vmatprep.subr.mxu0 0.0
    %1408 = vmatpush1.msra.mxu0 0.0
    %1409 = vmatprep.subr.mxu0 0.0
    %1410 = vmatpush1.msra.mxu0 0.0
    %1411 = vmatprep.subr.mxu0 0.0
    %1412 = vmatpush1.msra.mxu0 0.0
    %1413 = vmatprep.subr.mxu0 0.0
    %1414 = vmatpush1.msra.mxu0 0.0
    %1415 = vmatprep.subr.mxu0 0.0
    %1416 = vmatpush1.msra.mxu0 0.0
    %1417 = vmatprep.subr.mxu0 0.0
    %1418 = vmatpush1.msra.mxu0 0.0
    %1419 = vmatprep.subr.mxu0 0.0
    %1420 = vmatpush1.msra.mxu0 0.0
    %1421 = vmatprep.subr.mxu0 0.0
    %1422 = vmatpush1.msra.mxu0 0.0
    %1423 = vmatprep.subr.mxu0 0.0
    %1424 = vmatpush1.msra.mxu0 0.0
    %1425 = vmatprep.subr.mxu0 0.0
    %1426 = vmatpush1.msra.mxu0 0.0
    %1427 = vmatprep.subr.mxu0 0.0
    %1428 = vmatpush1.msra.mxu0 0.0
    %1429 = vmatprep.subr.mxu0 0.0
    %1430 = vmatpush1.msra.mxu0 0.0
    %1431 = vmatprep.subr.mxu0 0.0
    %1432 = vmatpush1.msra.mxu0 0.0
    %1433 = vmatprep.subr.mxu0 0.0
    %1434 = vmatpush1.msra.mxu0 0.0
    %1435 = vmatprep.subr.mxu0 0.0
    %1436 = vmatpush1.msra.mxu0 0.0
    %1437 = vmatprep.subr.mxu0 0.0
    %1438 = vmatpush1.msra.mxu0 0.0
    %1439 = vmatprep.subr.mxu0 0.0
    %1440 = vmatpush1.msra.mxu0 0.0
    %1441 = vmatprep.subr.mxu0 0.0
    %1442 = vmatpush1.msra.mxu0 0.0
    %1443 = vmatprep.subr.mxu0 0.0
    %1444 = vmatpush1.msra.mxu0 0.0
    %1445 = vmatprep.mubr.f32.mxu0 0.0
    %1446 = vmatmul.mubr.f32.gmra.mrb[0].mxu0 %v1208
    %v1447 = vpop.f32.mrb[0].mxu0
    %v1448 = vadd.f32 %v196, %v1447
    %v1449 = vpop.f32.mrb[0].mxu0
    %1450 = vdwg.mxu0
    %v1451 = vadd.f32 %v164, %v1448
    %v1452 = vxor.u32 %v1451, 2147483648
    %v1453 = vmul.f32 %v1452, 1.442695
    %v1454 = vpow.pop %v1453
    %v1455 = vadd.f32 %v1454, 1.0
    %v1456 = vrcp.pop %v1455
    %v1457 = vmul.f32 1.0, %v1456
    %v1460 = vunpack.c.l.s4 1983009808
    %v1461 = vunpack.c.0.s8 %v1460
    %v1462 = vlaneseq
    %v1463 = vshrl.u32 %v1462, 7
    %v1464 = vsub.s32 %v1461, %v1463
    %v1465 = vrot.slane %v1448, %v1464
    %1466 = vrot.lane.b32.xlu0 %v1465, 64
    %v1467 = vpop.permute.xlu0 %1466
    %v1469 = vmul.f32 %v1457, %v1467
    %1471 = vrot.lane.b32.xlu0 %v1469, 64
    %v1472 = vpop.permute.xlu0 %1471
    %v1474 = vadd.f32 %v164, %v1472
    %v1475 = vtanh.pop %v1474
    %v1476 = vsub.f32 1.0, %v1457
    %1478 = vrot.lane.b32.xlu0 %v1475, 96
    %v1479 = vpop.permute.xlu0 %1478
    %v1481 = vmul.f32 %v1476, %v1479
    %v1482 = vmul.f32 %v1457, %v1197
    %v1483 = vadd.f32 %v1481, %v1482
    %v1486 = vunpack.c.l.s4 1983009808
    %v1487 = vunpack.c.0.s8 %v1486
    %v1488 = vlaneseq
    %v1489 = vshrl.u32 %v1488, 7
    %v1490 = vsub.s32 %v1487, %v1489
    %v1491 = vrot.slane %v1483, %v1490
    %1492 = vrot.lane.b32.xlu0 %v1491, 96
    %v1493 = vpop.permute.xlu0 %1492
    %v1494 = vsel %vm57, %v1493, 0
    %1496 = vmatprep.subr.mxu0 0.0
    %1497 = vmatpush1.msra.mxu0 %v314
    %1498 = vmatprep.subr.mxu0 0.0
    %1499 = vmatpush1.msra.mxu0 %v315
    %1500 = vmatprep.subr.mxu0 0.0
    %1501 = vmatpush1.msra.mxu0 %v316
    %1502 = vmatprep.subr.mxu0 0.0
    %1503 = vmatpush1.msra.mxu0 %v317
    %1504 = vmatprep.subr.mxu0 0.0
    %1505 = vmatpush1.msra.mxu0 0.0
    %1506 = vmatprep.subr.mxu0 0.0
    %1507 = vmatpush1.msra.mxu0 0.0
    %1508 = vmatprep.subr.mxu0 0.0
    %1509 = vmatpush1.msra.mxu0 0.0
    %1510 = vmatprep.subr.mxu0 0.0
    %1511 = vmatpush1.msra.mxu0 0.0
    %1512 = vmatprep.subr.mxu0 0.0
    %1513 = vmatpush1.msra.mxu0 0.0
    %1514 = vmatprep.subr.mxu0 0.0
    %1515 = vmatpush1.msra.mxu0 0.0
    %1516 = vmatprep.subr.mxu0 0.0
    %1517 = vmatpush1.msra.mxu0 0.0
    %1518 = vmatprep.subr.mxu0 0.0
    %1519 = vmatpush1.msra.mxu0 0.0
    %1520 = vmatprep.subr.mxu0 0.0
    %1521 = vmatpush1.msra.mxu0 0.0
    %1522 = vmatprep.subr.mxu0 0.0
    %1523 = vmatpush1.msra.mxu0 0.0
    %1524 = vmatprep.subr.mxu0 0.0
    %1525 = vmatpush1.msra.mxu0 0.0
    %1526 = vmatprep.subr.mxu0 0.0
    %1527 = vmatpush1.msra.mxu0 0.0
    %1528 = vmatprep.subr.mxu0 0.0
    %1529 = vmatpush1.msra.mxu0 0.0
    %1530 = vmatprep.subr.mxu0 0.0
    %1531 = vmatpush1.msra.mxu0 0.0
    %1532 = vmatprep.subr.mxu0 0.0
    %1533 = vmatpush1.msra.mxu0 0.0
    %1534 = vmatprep.subr.mxu0 0.0
    %1535 = vmatpush1.msra.mxu0 0.0
    %1536 = vmatprep.subr.mxu0 0.0
    %1537 = vmatpush1.msra.mxu0 0.0
    %1538 = vmatprep.subr.mxu0 0.0
    %1539 = vmatpush1.msra.mxu0 0.0
    %1540 = vmatprep.subr.mxu0 0.0
    %1541 = vmatpush1.msra.mxu0 0.0
    %1542 = vmatprep.subr.mxu0 0.0
    %1543 = vmatpush1.msra.mxu0 0.0
    %1544 = vmatprep.subr.mxu0 0.0
    %1545 = vmatpush1.msra.mxu0 0.0
    %1546 = vmatprep.subr.mxu0 0.0
    %1547 = vmatpush1.msra.mxu0 0.0
    %1548 = vmatprep.subr.mxu0 0.0
    %1549 = vmatpush1.msra.mxu0 0.0
    %1550 = vmatprep.subr.mxu0 0.0
    %1551 = vmatpush1.msra.mxu0 0.0
    %1552 = vmatprep.subr.mxu0 0.0
    %1553 = vmatpush1.msra.mxu0 0.0
    %1554 = vmatprep.subr.mxu0 0.0
    %1555 = vmatpush1.msra.mxu0 0.0
    %1556 = vmatprep.subr.mxu0 0.0
    %1557 = vmatpush1.msra.mxu0 0.0
    %1558 = vmatprep.subr.mxu0 0.0
    %1559 = vmatpush1.msra.mxu0 0.0
    %1560 = vmatprep.mubr.f32.mxu0 0.0
    %1561 = vmatmul.mubr.f32.gmra.mrb[0].mxu0 %v1494
    %v1562 = vpop.f32.mrb[0].mxu0
    %v1563 = vadd.f32 %v324, %v1562
    %v1564 = vpop.f32.mrb[0].mxu0
    %1565 = vdwg.mxu0
    %1567 = vrot.lane.b32.xlu0 %v1380, 96
    %v1568 = vpop.permute.xlu0 %1567
    %v1569 = vsel %vm57, %v1568, 0
    %1571 = vmatprep.subr.mxu0 0.0
    %1572 = vmatpush1.msra.mxu0 %v409
    %1573 = vmatprep.subr.mxu0 0.0
    %1574 = vmatpush1.msra.mxu0 %v410
    %1575 = vmatprep.subr.mxu0 0.0
    %1576 = vmatpush1.msra.mxu0 %v411
    %1577 = vmatprep.subr.mxu0 0.0
    %1578 = vmatpush1.msra.mxu0 %v412
    %1579 = vmatprep.subr.mxu0 0.0
    %1580 = vmatpush1.msra.mxu0 0.0
    %1581 = vmatprep.subr.mxu0 0.0
    %1582 = vmatpush1.msra.mxu0 0.0
    %1583 = vmatprep.subr.mxu0 0.0
    %1584 = vmatpush1.msra.mxu0 0.0
    %1585 = vmatprep.subr.mxu0 0.0
    %1586 = vmatpush1.msra.mxu0 0.0
    %1587 = vmatprep.subr.mxu0 0.0
    %1588 = vmatpush1.msra.mxu0 0.0
    %1589 = vmatprep.subr.mxu0 0.0
    %1590 = vmatpush1.msra.mxu0 0.0
    %1591 = vmatprep.subr.mxu0 0.0
    %1592 = vmatpush1.msra.mxu0 0.0
    %1593 = vmatprep.subr.mxu0 0.0
    %1594 = vmatpush1.msra.mxu0 0.0
    %1595 = vmatprep.subr.mxu0 0.0
    %1596 = vmatpush1.msra.mxu0 0.0
    %1597 = vmatprep.subr.mxu0 0.0
    %1598 = vmatpush1.msra.mxu0 0.0
    %1599 = vmatprep.subr.mxu0 0.0
    %1600 = vmatpush1.msra.mxu0 0.0
    %1601 = vmatprep.subr.mxu0 0.0
    %1602 = vmatpush1.msra.mxu0 0.0
    %1603 = vmatprep.subr.mxu0 0.0
    %1604 = vmatpush1.msra.mxu0 0.0
    %1605 = vmatprep.subr.mxu0 0.0
    %1606 = vmatpush1.msra.mxu0 0.0
    %1607 = vmatprep.subr.mxu0 0.0
    %1608 = vmatpush1.msra.mxu0 0.0
    %1609 = vmatprep.subr.mxu0 0.0
    %1610 = vmatpush1.msra.mxu0 0.0
    %1611 = vmatprep.subr.mxu0 0.0
    %1612 = vmatpush1.msra.mxu0 0.0
    %1613 = vmatprep.subr.mxu0 0.0
    %1614 = vmatpush1.msra.mxu0 0.0
    %1615 = vmatprep.subr.mxu0 0.0
    %1616 = vmatpush1.msra.mxu0 0.0
    %1617 = vmatprep.subr.mxu0 0.0
    %1618 = vmatpush1.msra.mxu0 0.0
    %1619 = vmatprep.subr.mxu0 0.0
    %1620 = vmatpush1.msra.mxu0 0.0
    %1621 = vmatprep.subr.mxu0 0.0
    %1622 = vmatpush1.msra.mxu0 0.0
    %1623 = vmatprep.subr.mxu0 0.0
    %1624 = vmatpush1.msra.mxu0 0.0
    %1625 = vmatprep.subr.mxu0 0.0
    %1626 = vmatpush1.msra.mxu0 0.0
    %1627 = vmatprep.subr.mxu0 0.0
    %1628 = vmatpush1.msra.mxu0 0.0
    %1629 = vmatprep.subr.mxu0 0.0
    %1630 = vmatpush1.msra.mxu0 0.0
    %1631 = vmatprep.subr.mxu0 0.0
    %1632 = vmatpush1.msra.mxu0 0.0
    %1633 = vmatprep.subr.mxu0 0.0
    %1634 = vmatpush1.msra.mxu0 0.0
    %1635 = vmatprep.mubr.f32.mxu0 0.0
    %1636 = vmatmul.mubr.f32.gmra.mrb[0].mxu0 %v1569
    %v1637 = vpop.f32.mrb[0].mxu0
    %v1638 = vadd.f32 %v419, %v1637
    %v1639 = vpop.f32.mrb[0].mxu0
    %1640 = vdwg.mxu0
    %v1641 = vadd.f32 %v1563, %v1638
    %v1642 = vxor.u32 %v1641, 2147483648
    %v1643 = vmul.f32 %v1642, 1.442695
    %v1644 = vpow.pop %v1643
    %v1645 = vadd.f32 %v1644, 1.0
    %v1646 = vrcp.pop %v1645
    %v1647 = vmul.f32 1.0, %v1646
    %1649 = vrot.lane.b32.xlu0 %v1638, 64
    %v1650 = vpop.permute.xlu0 %1649
    %v1652 = vmul.f32 %v1647, %v1650
    %1654 = vrot.lane.b32.xlu0 %v1652, 64
    %v1655 = vpop.permute.xlu0 %1654
    %v1657 = vadd.f32 %v1563, %v1655
    %v1658 = vtanh.pop %v1657
    %v1659 = vsub.f32 1.0, %v1647
    %1661 = vrot.lane.b32.xlu0 %v1658, 96
    %v1662 = vpop.permute.xlu0 %1661
    %v1664 = vmul.f32 %v1659, %v1662
    %v1665 = vmul.f32 %v1647, %v1380
    %v1666 = vadd.f32 %v1664, %v1665
    %1667 = vmatprep.subr.mxu0 0.0
    %1668 = vmatpush1.msra.mxu0 %v187
    %1669 = vmatprep.subr.mxu0 0.0
    %1670 = vmatpush1.msra.mxu0 %v188
    %1671 = vmatprep.subr.mxu0 0.0
    %1672 = vmatpush1.msra.mxu0 %v189
    %1673 = vmatprep.subr.mxu0 0.0
    %1674 = vmatpush1.msra.mxu0 %v190
    %1675 = vmatprep.subr.mxu0 0.0
    %1676 = vmatpush1.msra.mxu0 0.0
    %1677 = vmatprep.subr.mxu0 0.0
    %1678 = vmatpush1.msra.mxu0 0.0
    %1679 = vmatprep.subr.mxu0 0.0
    %1680 = vmatpush1.msra.mxu0 0.0
    %1681 = vmatprep.subr.mxu0 0.0
    %1682 = vmatpush1.msra.mxu0 0.0
    %1683 = vmatprep.subr.mxu0 0.0
    %1684 = vmatpush1.msra.mxu0 0.0
    %1685 = vmatprep.subr.mxu0 0.0
    %1686 = vmatpush1.msra.mxu0 0.0
    %1687 = vmatprep.subr.mxu0 0.0
    %1688 = vmatpush1.msra.mxu0 0.0
    %1689 = vmatprep.subr.mxu0 0.0
    %1690 = vmatpush1.msra.mxu0 0.0
    %1691 = vmatprep.subr.mxu0 0.0
    %1692 = vmatpush1.msra.mxu0 0.0
    %1693 = vmatprep.subr.mxu0 0.0
    %1694 = vmatpush1.msra.mxu0 0.0
    %1695 = vmatprep.subr.mxu0 0.0
    %1696 = vmatpush1.msra.mxu0 0.0
    %1697 = vmatprep.subr.mxu0 0.0
    %1698 = vmatpush1.msra.mxu0 0.0
    %1699 = vmatprep.subr.mxu0 0.0
    %1700 = vmatpush1.msra.mxu0 0.0
    %1701 = vmatprep.subr.mxu0 0.0
    %1702 = vmatpush1.msra.mxu0 0.0
    %1703 = vmatprep.subr.mxu0 0.0
    %1704 = vmatpush1.msra.mxu0 0.0
    %1705 = vmatprep.subr.mxu0 0.0
    %1706 = vmatpush1.msra.mxu0 0.0
    %1707 = vmatprep.subr.mxu0 0.0
    %1708 = vmatpush1.msra.mxu0 0.0
    %1709 = vmatprep.subr.mxu0 0.0
    %1710 = vmatpush1.msra.mxu0 0.0
    %1711 = vmatprep.subr.mxu0 0.0
    %1712 = vmatpush1.msra.mxu0 0.0
    %1713 = vmatprep.subr.mxu0 0.0
    %1714 = vmatpush1.msra.mxu0 0.0
    %1715 = vmatprep.subr.mxu0 0.0
    %1716 = vmatpush1.msra.mxu0 0.0
    %1717 = vmatprep.subr.mxu0 0.0
    %1718 = vmatpush1.msra.mxu0 0.0
    %1719 = vmatprep.subr.mxu0 0.0
    %1720 = vmatpush1.msra.mxu0 0.0
    %1721 = vmatprep.subr.mxu0 0.0
    %1722 = vmatpush1.msra.mxu0 0.0
    %1723 = vmatprep.subr.mxu0 0.0
    %1724 = vmatpush1.msra.mxu0 0.0
    %1725 = vmatprep.subr.mxu0 0.0
    %1726 = vmatpush1.msra.mxu0 0.0
    %1727 = vmatprep.subr.mxu0 0.0
    %1728 = vmatpush1.msra.mxu0 0.0
    %1729 = vmatprep.subr.mxu0 0.0
    %1730 = vmatpush1.msra.mxu0 0.0
    %1731 = vmatprep.mubr.f32.mxu0 0.0
    %1732 = vmatmul.mubr.f32.gmra.mrb[0].mxu0 %v1494
    %v1733 = vpop.f32.mrb[0].mxu0
    %v1734 = vadd.f32 %v196, %v1733
    %v1735 = vpop.f32.mrb[0].mxu0
    %1736 = vdwg.mxu0
    %v1737 = vadd.f32 %v165, %v1734
    %v1738 = vxor.u32 %v1737, 2147483648
    %v1739 = vmul.f32 %v1738, 1.442695
    %v1740 = vpow.pop %v1739
    %v1741 = vadd.f32 %v1740, 1.0
    %v1742 = vrcp.pop %v1741
    %v1743 = vmul.f32 1.0, %v1742
    %v1746 = vunpack.c.l.s4 1983009808
    %v1747 = vunpack.c.0.s8 %v1746
    %v1748 = vlaneseq
    %v1749 = vshrl.u32 %v1748, 7
    %v1750 = vsub.s32 %v1747, %v1749
    %v1751 = vrot.slane %v1734, %v1750
    %1752 = vrot.lane.b32.xlu0 %v1751, 64
    %v1753 = vpop.permute.xlu0 %1752
    %v1755 = vmul.f32 %v1743, %v1753
    %1757 = vrot.lane.b32.xlu0 %v1755, 64
    %v1758 = vpop.permute.xlu0 %1757
    %v1760 = vadd.f32 %v165, %v1758
    %v1761 = vtanh.pop %v1760
    %v1762 = vsub.f32 1.0, %v1743
    %1764 = vrot.lane.b32.xlu0 %v1761, 96
    %v1765 = vpop.permute.xlu0 %1764
    %v1767 = vmul.f32 %v1762, %v1765
    %v1768 = vmul.f32 %v1743, %v1483
    %v1769 = vadd.f32 %v1767, %v1768
    %v1772 = vunpack.c.l.s4 1983009808
    %v1773 = vunpack.c.0.s8 %v1772
    %v1774 = vlaneseq
    %v1775 = vshrl.u32 %v1774, 7
    %v1776 = vsub.s32 %v1773, %v1775
    %v1777 = vrot.slane %v1769, %v1776
    %1778 = vrot.lane.b32.xlu0 %v1777, 96
    %v1779 = vpop.permute.xlu0 %1778
    %v1780 = vsel %vm57, %v1779, 0
    %1782 = vmatprep.subr.mxu0 0.0
    %1783 = vmatpush1.msra.mxu0 %v314
    %1784 = vmatprep.subr.mxu0 0.0
    %1785 = vmatpush1.msra.mxu0 %v315
    %1786 = vmatprep.subr.mxu0 0.0
    %1787 = vmatpush1.msra.mxu0 %v316
    %1788 = vmatprep.subr.mxu0 0.0
    %1789 = vmatpush1.msra.mxu0 %v317
    %1790 = vmatprep.subr.mxu0 0.0
    %1791 = vmatpush1.msra.mxu0 0.0
    %1792 = vmatprep.subr.mxu0 0.0
    %1793 = vmatpush1.msra.mxu0 0.0
    %1794 = vmatprep.subr.mxu0 0.0
    %1795 = vmatpush1.msra.mxu0 0.0
    %1796 = vmatprep.subr.mxu0 0.0
    %1797 = vmatpush1.msra.mxu0 0.0
    %1798 = vmatprep.subr.mxu0 0.0
    %1799 = vmatpush1.msra.mxu0 0.0
    %1800 = vmatprep.subr.mxu0 0.0
    %1801 = vmatpush1.msra.mxu0 0.0
    %1802 = vmatprep.subr.mxu0 0.0
    %1803 = vmatpush1.msra.mxu0 0.0
    %1804 = vmatprep.subr.mxu0 0.0
    %1805 = vmatpush1.msra.mxu0 0.0
    %1806 = vmatprep.subr.mxu0 0.0
    %1807 = vmatpush1.msra.mxu0 0.0
    %1808 = vmatprep.subr.mxu0 0.0
    %1809 = vmatpush1.msra.mxu0 0.0
    %1810 = vmatprep.subr.mxu0 0.0
    %1811 = vmatpush1.msra.mxu0 0.0
    %1812 = vmatprep.subr.mxu0 0.0
    %1813 = vmatpush1.msra.mxu0 0.0
    %1814 = vmatprep.subr.mxu0 0.0
    %1815 = vmatpush1.msra.mxu0 0.0
    %1816 = vmatprep.subr.mxu0 0.0
    %1817 = vmatpush1.msra.mxu0 0.0
    %1818 = vmatprep.subr.mxu0 0.0
    %1819 = vmatpush1.msra.mxu0 0.0
    %1820 = vmatprep.subr.mxu0 0.0
    %1821 = vmatpush1.msra.mxu0 0.0
    %1822 = vmatprep.subr.mxu0 0.0
    %1823 = vmatpush1.msra.mxu0 0.0
    %1824 = vmatprep.subr.mxu0 0.0
    %1825 = vmatpush1.msra.mxu0 0.0
    %1826 = vmatprep.subr.mxu0 0.0
    %1827 = vmatpush1.msra.mxu0 0.0
    %1828 = vmatprep.subr.mxu0 0.0
    %1829 = vmatpush1.msra.mxu0 0.0
    %1830 = vmatprep.subr.mxu0 0.0
    %1831 = vmatpush1.msra.mxu0 0.0
    %1832 = vmatprep.subr.mxu0 0.0
    %1833 = vmatpush1.msra.mxu0 0.0
    %1834 = vmatprep.subr.mxu0 0.0
    %1835 = vmatpush1.msra.mxu0 0.0
    %1836 = vmatprep.subr.mxu0 0.0
    %1837 = vmatpush1.msra.mxu0 0.0
    %1838 = vmatprep.subr.mxu0 0.0
    %1839 = vmatpush1.msra.mxu0 0.0
    %1840 = vmatprep.subr.mxu0 0.0
    %1841 = vmatpush1.msra.mxu0 0.0
    %1842 = vmatprep.subr.mxu0 0.0
    %1843 = vmatpush1.msra.mxu0 0.0
    %1844 = vmatprep.subr.mxu0 0.0
    %1845 = vmatpush1.msra.mxu0 0.0
    %1846 = vmatprep.mubr.f32.mxu0 0.0
    %1847 = vmatmul.mubr.f32.gmra.mrb[0].mxu0 %v1780
    %v1848 = vpop.f32.mrb[0].mxu0
    %v1849 = vadd.f32 %v324, %v1848
    %v1850 = vpop.f32.mrb[0].mxu0
    %1851 = vdwg.mxu0
    %1853 = vrot.lane.b32.xlu0 %v1666, 96
    %v1854 = vpop.permute.xlu0 %1853
    %v1855 = vsel %vm57, %v1854, 0
    %1857 = vmatprep.subr.mxu0 0.0
    %1858 = vmatpush1.msra.mxu0 %v409
    %1859 = vmatprep.subr.mxu0 0.0
    %1860 = vmatpush1.msra.mxu0 %v410
    %1861 = vmatprep.subr.mxu0 0.0
    %1862 = vmatpush1.msra.mxu0 %v411
    %1863 = vmatprep.subr.mxu0 0.0
    %1864 = vmatpush1.msra.mxu0 %v412
    %1865 = vmatprep.subr.mxu0 0.0
    %1866 = vmatpush1.msra.mxu0 0.0
    %1867 = vmatprep.subr.mxu0 0.0
    %1868 = vmatpush1.msra.mxu0 0.0
    %1869 = vmatprep.subr.mxu0 0.0
    %1870 = vmatpush1.msra.mxu0 0.0
    %1871 = vmatprep.subr.mxu0 0.0
    %1872 = vmatpush1.msra.mxu0 0.0
    %1873 = vmatprep.subr.mxu0 0.0
    %1874 = vmatpush1.msra.mxu0 0.0
    %1875 = vmatprep.subr.mxu0 0.0
    %1876 = vmatpush1.msra.mxu0 0.0
    %1877 = vmatprep.subr.mxu0 0.0
    %1878 = vmatpush1.msra.mxu0 0.0
    %1879 = vmatprep.subr.mxu0 0.0
    %1880 = vmatpush1.msra.mxu0 0.0
    %1881 = vmatprep.subr.mxu0 0.0
    %1882 = vmatpush1.msra.mxu0 0.0
    %1883 = vmatprep.subr.mxu0 0.0
    %1884 = vmatpush1.msra.mxu0 0.0
    %1885 = vmatprep.subr.mxu0 0.0
    %1886 = vmatpush1.msra.mxu0 0.0
    %1887 = vmatprep.subr.mxu0 0.0
    %1888 = vmatpush1.msra.mxu0 0.0
    %1889 = vmatprep.subr.mxu0 0.0
    %1890 = vmatpush1.msra.mxu0 0.0
    %1891 = vmatprep.subr.mxu0 0.0
    %1892 = vmatpush1.msra.mxu0 0.0
    %1893 = vmatprep.subr.mxu0 0.0
    %1894 = vmatpush1.msra.mxu0 0.0
    %1895 = vmatprep.subr.mxu0 0.0
    %1896 = vmatpush1.msra.mxu0 0.0
    %1897 = vmatprep.subr.mxu0 0.0
    %1898 = vmatpush1.msra.mxu0 0.0
    %1899 = vmatprep.subr.mxu0 0.0
    %1900 = vmatpush1.msra.mxu0 0.0
    %1901 = vmatprep.subr.mxu0 0.0
    %1902 = vmatpush1.msra.mxu0 0.0
    %1903 = vmatprep.subr.mxu0 0.0
    %1904 = vmatpush1.msra.mxu0 0.0
    %1905 = vmatprep.subr.mxu0 0.0
    %1906 = vmatpush1.msra.mxu0 0.0
    %1907 = vmatprep.subr.mxu0 0.0
    %1908 = vmatpush1.msra.mxu0 0.0
    %1909 = vmatprep.subr.mxu0 0.0
    %1910 = vmatpush1.msra.mxu0 0.0
    %1911 = vmatprep.subr.mxu0 0.0
    %1912 = vmatpush1.msra.mxu0 0.0
    %1913 = vmatprep.subr.mxu0 0.0
    %1914 = vmatpush1.msra.mxu0 0.0
    %1915 = vmatprep.subr.mxu0 0.0
    %1916 = vmatpush1.msra.mxu0 0.0
    %1917 = vmatprep.subr.mxu0 0.0
    %1918 = vmatpush1.msra.mxu0 0.0
    %1919 = vmatprep.subr.mxu0 0.0
    %1920 = vmatpush1.msra.mxu0 0.0
    %1921 = vmatprep.mubr.f32.mxu0 0.0
    %1922 = vmatmul.mubr.f32.gmra.mrb[0].mxu0 %v1855
    %v1923 = vpop.f32.mrb[0].mxu0
    %v1924 = vadd.f32 %v419, %v1923
    %v1925 = vpop.f32.mrb[0].mxu0
    %1926 = vdwg.mxu0
    %v1927 = vadd.f32 %v1849, %v1924
    %v1928 = vxor.u32 %v1927, 2147483648
    %v1929 = vmul.f32 %v1928, 1.442695
    %v1930 = vpow.pop %v1929
    %v1931 = vadd.f32 %v1930, 1.0
    %v1932 = vrcp.pop %v1931
    %v1933 = vmul.f32 1.0, %v1932
    %1935 = vrot.lane.b32.xlu0 %v1924, 64
    %v1936 = vpop.permute.xlu0 %1935
    %v1938 = vmul.f32 %v1933, %v1936
    %1940 = vrot.lane.b32.xlu0 %v1938, 64
    %v1941 = vpop.permute.xlu0 %1940
    %v1943 = vadd.f32 %v1849, %v1941
    %v1944 = vtanh.pop %v1943
    %v1945 = vsub.f32 1.0, %v1933
    %1947 = vrot.lane.b32.xlu0 %v1944, 96
    %v1948 = vpop.permute.xlu0 %1947
    %v1950 = vmul.f32 %v1945, %v1948
    %v1951 = vmul.f32 %v1933, %v1666
    %v1952 = vadd.f32 %v1950, %v1951
    %v1954 = vunpack.c.l.s4 1966171168
    %v1955 = vunpack.c.0.s8 %v1954
    %v1956 = vlaneseq
    %v1957 = vshrl.u32 %v1956, 7
    %v1958 = vsub.s32 %v1955, %v1957
    %v1959 = vrot.slane %v522, %v1958
    %v1960 = vcombine.high %v1959, %v1959
    %v1962 = vunpack.c.l.s4 1966171168
    %v1963 = vunpack.c.0.s8 %v1962
    %v1964 = vlaneseq
    %v1965 = vshrl.u32 %v1964, 7
    %v1966 = vsub.s32 %v1963, %v1965
    %v1967 = vrot.slane %v1959, %v1966
    %v1969 = vunpack.c.l.s4 1966171168
    %v1970 = vunpack.c.0.s8 %v1969
    %v1971 = vlaneseq
    %v1972 = vshrl.u32 %v1971, 7
    %v1973 = vsub.s32 %v1970, %v1972
    %v1974 = vrot.slane %v1960, %v1973
    %v1978 = vunpack.c.l.s4 1966171168
    %v1979 = vunpack.c.0.s8 %v1978
    %v1980 = vlaneseq
    %v1981 = vshrl.u32 %v1980, 7
    %v1982 = vsub.s32 %v1979, %v1981
    %v1983 = vrot.slane %v808, %v1982
    %v1984 = vcombine.high %v1983, %v1983
    %v1986 = vunpack.c.l.s4 1966171168
    %v1987 = vunpack.c.0.s8 %v1986
    %v1988 = vlaneseq
    %v1989 = vshrl.u32 %v1988, 7
    %v1990 = vsub.s32 %v1987, %v1989
    %v1991 = vrot.slane %v1983, %v1990
    %v1993 = vunpack.c.l.s4 1966171168
    %v1994 = vunpack.c.0.s8 %v1993
    %v1995 = vlaneseq
    %v1996 = vshrl.u32 %v1995, 7
    %v1997 = vsub.s32 %v1994, %v1996
    %v1998 = vrot.slane %v1984, %v1997
    %v2000 = vunpack.c.l.s4 1966171168
    %v2001 = vunpack.c.0.s8 %v2000
    %v2002 = vlaneseq
    %v2003 = vshrl.u32 %v2002, 7
    %v2004 = vsub.s32 %v2001, %v2003
    %v2005 = vrot.slane %v1094, %v2004
    %v2006 = vcombine.high %v2005, %v2005
    %v2008 = vunpack.c.l.s4 1966171168
    %v2009 = vunpack.c.0.s8 %v2008
    %v2010 = vlaneseq
    %v2011 = vshrl.u32 %v2010, 7
    %v2012 = vsub.s32 %v2009, %v2011
    %v2013 = vrot.slane %v2005, %v2012
    %v2015 = vunpack.c.l.s4 1966171168
    %v2016 = vunpack.c.0.s8 %v2015
    %v2017 = vlaneseq
    %v2018 = vshrl.u32 %v2017, 7
    %v2019 = vsub.s32 %v2016, %v2018
    %v2020 = vrot.slane %v2006, %v2019
    %v2022 = vunpack.c.l.s4 1966171168
    %v2023 = vunpack.c.0.s8 %v2022
    %v2024 = vlaneseq
    %v2025 = vshrl.u32 %v2024, 7
    %v2026 = vsub.s32 %v2023, %v2025
    %v2027 = vrot.slane %v1380, %v2026
    %v2028 = vcombine.high %v2027, %v2027
    %v2030 = vunpack.c.l.s4 1966171168
    %v2031 = vunpack.c.0.s8 %v2030
    %v2032 = vlaneseq
    %v2033 = vshrl.u32 %v2032, 7
    %v2034 = vsub.s32 %v2031, %v2033
    %v2035 = vrot.slane %v2027, %v2034
    %v2037 = vunpack.c.l.s4 1966171168
    %v2038 = vunpack.c.0.s8 %v2037
    %v2039 = vlaneseq
    %v2040 = vshrl.u32 %v2039, 7
    %v2041 = vsub.s32 %v2038, %v2040
    %v2042 = vrot.slane %v2028, %v2041
    %v2044 = vunpack.c.l.s4 1966171168
    %v2045 = vunpack.c.0.s8 %v2044
    %v2046 = vlaneseq
    %v2047 = vshrl.u32 %v2046, 7
    %v2048 = vsub.s32 %v2045, %v2047
    %v2049 = vrot.slane %v1666, %v2048
    %v2050 = vcombine.high %v2049, %v2049
    %v2052 = vunpack.c.l.s4 1966171168
    %v2053 = vunpack.c.0.s8 %v2052
    %v2054 = vlaneseq
    %v2055 = vshrl.u32 %v2054, 7
    %v2056 = vsub.s32 %v2053, %v2055
    %v2057 = vrot.slane %v2049, %v2056
    %v2059 = vunpack.c.l.s4 1966171168
    %v2060 = vunpack.c.0.s8 %v2059
    %v2061 = vlaneseq
    %v2062 = vshrl.u32 %v2061, 7
    %v2063 = vsub.s32 %v2060, %v2062
    %v2064 = vrot.slane %v2050, %v2063
    %v2067 = vunpack.c.l.s4 1966171168
    %v2068 = vunpack.c.0.s8 %v2067
    %v2069 = vlaneseq
    %v2070 = vshrl.u32 %v2069, 7
    %v2071 = vsub.s32 %v2068, %v2070
    %v2072 = vrot.slane %v1952, %v2071
    %v2073 = vcombine.high %v2072, %v2072
    %v2075 = vunpack.c.l.s4 1966171168
    %v2076 = vunpack.c.0.s8 %v2075
    %v2077 = vlaneseq
    %v2078 = vshrl.u32 %v2077, 7
    %v2079 = vsub.s32 %v2076, %v2078
    %v2080 = vrot.slane %v2072, %v2079
    %v2082 = vunpack.c.l.s4 1966171168
    %v2083 = vunpack.c.0.s8 %v2082
    %v2084 = vlaneseq
    %v2085 = vshrl.u32 %v2084, 7
    %v2086 = vsub.s32 %v2083, %v2085
    %v2087 = vrot.slane %v2073, %v2086
    %v2088 = vlaneseq
    %v2089 = vshrl.u32 %v2088, 7
    %v2090 = vsub.s32 0, %v2089
    %v2091 = vrot.slane %v1991, %v2090
    %v2092 = vlaneseq
    %v2093 = vshrl.u32 %v2092, 7
    %v2094 = vsub.s32 0, %v2093
    %v2095 = vrot.slane %v1998, %v2094
    %v2098 = vlaneseq
    %v2099 = vshrl.u32 %v2098, 7
    %v2100 = vsub.s32 0, %v2099
    %v2101 = vrot.slane %v2013, %v2100
    %v2102 = vlaneseq
    %v2103 = vshrl.u32 %v2102, 7
    %v2104 = vsub.s32 0, %v2103
    %v2105 = vrot.slane %v2020, %v2104
    %v2108 = vlaneseq
    %v2109 = vshrl.u32 %v2108, 7
    %v2110 = vsub.s32 0, %v2109
    %v2111 = vrot.slane %v2035, %v2110
    %v2112 = vlaneseq
    %v2113 = vshrl.u32 %v2112, 7
    %v2114 = vsub.s32 0, %v2113
    %v2115 = vrot.slane %v2042, %v2114
    %v2118 = vlaneseq
    %v2119 = vshrl.u32 %v2118, 7
    %v2120 = vsub.s32 0, %v2119
    %v2121 = vrot.slane %v2057, %v2120
    %v2122 = vlaneseq
    %v2123 = vshrl.u32 %v2122, 7
    %v2124 = vsub.s32 0, %v2123
    %v2125 = vrot.slane %v2064, %v2124
    %v2128 = vlaneseq
    %v2129 = vshrl.u32 %v2128, 7
    %v2130 = vsub.s32 0, %v2129
    %v2131 = vrot.slane %v2080, %v2130
    %v2132 = vlaneseq
    %v2133 = vshrl.u32 %v2132, 7
    %v2134 = vsub.s32 0, %v2133
    %v2135 = vrot.slane %v2087, %v2134
    %vm2138 = vcmask 1040384
    %v2139 = vsel %vm2138, %v1967, %v2091
    %v2140 = vsel %vm2138, %v1974, %v2095
    %vm2141 = vcmask 1041408
    %v2142 = vsel %vm2141, %v2139, %v2101
    %v2143 = vsel %vm2141, %v2140, %v2105
    %vm2144 = vcmask 1042432
    %v2145 = vsel %vm2144, %v2142, %v2111
    %v2146 = vsel %vm2144, %v2143, %v2115
    %vm2147 = vcmask 1043456
    %v2148 = vsel %vm2147, %v2145, %v2121
    %v2149 = vsel %vm2147, %v2146, %v2125
    %vm2150 = vcmask 1044480
    %v2151 = vsel %vm2150, %v2148, %v2131
    %v2152 = vsel %vm2150, %v2149, %v2135
    %v2155 = vcombine.high %v2151, %v2151
    %v2157 = vunpack.c.l.s4 1983009808
    %v2158 = vunpack.c.0.s8 %v2157
    %v2159 = vlaneseq
    %v2160 = vshrl.u32 %v2159, 7
    %v2161 = vsub.s32 %v2158, %v2160
    %v2162 = vrot.slane %v2151, %v2161
    %v2164 = vunpack.c.l.s4 1983009808
    %v2165 = vunpack.c.0.s8 %v2164
    %v2166 = vlaneseq
    %v2167 = vshrl.u32 %v2166, 7
    %v2168 = vsub.s32 %v2165, %v2167
    %v2169 = vrot.slane %v2155, %v2168
    %v2170 = vcombine.high %v2162, %v2162
    %v2171 = vcombine.high %v2152, %v2152
    %v2173 = vunpack.c.l.s4 1983009808
    %v2174 = vunpack.c.0.s8 %v2173
    %v2175 = vlaneseq
    %v2176 = vshrl.u32 %v2175, 7
    %v2177 = vsub.s32 %v2174, %v2176
    %v2178 = vrot.slane %v2152, %v2177
    %v2180 = vunpack.c.l.s4 1983009808
    %v2181 = vunpack.c.0.s8 %v2180
    %v2182 = vlaneseq
    %v2183 = vshrl.u32 %v2182, 7
    %v2184 = vsub.s32 %v2181, %v2183
    %v2185 = vrot.slane %v2171, %v2184
    %v2186 = vcombine.high %v2178, %v2178
    %v2187 = vcombine.low %v2162, %v2170
    %v2188 = vcombine.low %v2169, %v2178
    %v2190 = vunpack.c.l.s4 1983009808
    %v2191 = vunpack.c.0.s8 %v2190
    %v2192 = vlaneseq
    %v2193 = vshrl.u32 %v2192, 7
    %v2194 = vsub.s32 %v2191, %v2193
    %v2195 = vrot.slane %v2187, %v2194
    %v2197 = vunpack.c.l.s4 1983009808
    %v2198 = vunpack.c.0.s8 %v2197
    %v2199 = vlaneseq
    %v2200 = vshrl.u32 %v2199, 7
    %v2201 = vsub.s32 %v2198, %v2200
    %v2202 = vrot.slane %v2188, %v2201
    %v2203 = vcombine.low %v2195, %v2202
    %v2204 = vcombine.low %v2186, %v2185
    %v2206 = vunpack.c.l.s4 1983009808
    %v2207 = vunpack.c.0.s8 %v2206
    %v2208 = vlaneseq
    %v2209 = vshrl.u32 %v2208, 7
    %v2210 = vsub.s32 %v2207, %v2209
    %v2211 = vrot.slane %v2204, %v2210
    %2212 = vrot.lane.b32.xlu0 %v2203, 96
    %v2213 = vpop.permute.xlu0 %2212
    %2214 = vrot.lane.b32.xlu0 %v2211, 96
    %v2215 = vpop.permute.xlu0 %2214
    %v2216 = vsel %vm57, %v2213, 0
    %v2218 = vsel %vm57, %v2215, 0
    %2220 = vmatprep.subr.mxu0 0.0
    %2221 = vmatpush1.msra.mxu0 %v172
    %2222 = vmatprep.subr.mxu0 0.0
    %2223 = vmatpush1.msra.mxu0 %v173
    %2224 = vmatprep.subr.mxu0 0.0
    %2225 = vmatpush1.msra.mxu0 %v174
    %2226 = vmatprep.subr.mxu0 0.0
    %2227 = vmatpush1.msra.mxu0 %v175
    %2228 = vmatprep.subr.mxu0 0.0
    %2229 = vmatpush1.msra.mxu0 0.0
    %2230 = vmatprep.subr.mxu0 0.0
    %2231 = vmatpush1.msra.mxu0 0.0
    %2232 = vmatprep.subr.mxu0 0.0
    %2233 = vmatpush1.msra.mxu0 0.0
    %2234 = vmatprep.subr.mxu0 0.0
    %2235 = vmatpush1.msra.mxu0 0.0
    %2236 = vmatprep.subr.mxu0 0.0
    %2237 = vmatpush1.msra.mxu0 0.0
    %2238 = vmatprep.subr.mxu0 0.0
    %2239 = vmatpush1.msra.mxu0 0.0
    %2240 = vmatprep.subr.mxu0 0.0
    %2241 = vmatpush1.msra.mxu0 0.0
    %2242 = vmatprep.subr.mxu0 0.0
    %2243 = vmatpush1.msra.mxu0 0.0
    %2244 = vmatprep.subr.mxu0 0.0
    %2245 = vmatpush1.msra.mxu0 0.0
    %2246 = vmatprep.subr.mxu0 0.0
    %2247 = vmatpush1.msra.mxu0 0.0
    %2248 = vmatprep.subr.mxu0 0.0
    %2249 = vmatpush1.msra.mxu0 0.0
    %2250 = vmatprep.subr.mxu0 0.0
    %2251 = vmatpush1.msra.mxu0 0.0
    %2252 = vmatprep.subr.mxu0 0.0
    %2253 = vmatpush1.msra.mxu0 0.0
    %2254 = vmatprep.subr.mxu0 0.0
    %2255 = vmatpush1.msra.mxu0 0.0
    %2256 = vmatprep.subr.mxu0 0.0
    %2257 = vmatpush1.msra.mxu0 0.0
    %2258 = vmatprep.subr.mxu0 0.0
    %2259 = vmatpush1.msra.mxu0 0.0
    %2260 = vmatprep.subr.mxu0 0.0
    %2261 = vmatpush1.msra.mxu0 0.0
    %2262 = vmatprep.subr.mxu0 0.0
    %2263 = vmatpush1.msra.mxu0 0.0
    %2264 = vmatprep.subr.mxu0 0.0
    %2265 = vmatpush1.msra.mxu0 0.0
    %2266 = vmatprep.subr.mxu0 0.0
    %2267 = vmatpush1.msra.mxu0 0.0
    %2268 = vmatprep.subr.mxu0 0.0
    %2269 = vmatpush1.msra.mxu0 0.0
    %2270 = vmatprep.subr.mxu0 0.0
    %2271 = vmatpush1.msra.mxu0 0.0
    %2272 = vmatprep.subr.mxu0 0.0
    %2273 = vmatpush1.msra.mxu0 0.0
    %2274 = vmatprep.subr.mxu0 0.0
    %2275 = vmatpush1.msra.mxu0 0.0
    %2276 = vmatprep.subr.mxu0 0.0
    %2277 = vmatpush1.msra.mxu0 0.0
    %2278 = vmatprep.subr.mxu0 0.0
    %2279 = vmatpush1.msra.mxu0 0.0
    %2280 = vmatprep.subr.mxu0 0.0
    %2281 = vmatpush1.msra.mxu0 0.0
    %2282 = vmatprep.subr.mxu0 0.0
    %2283 = vmatpush1.msra.mxu0 0.0
    %2284 = vmatprep.mubr.f32.mxu0 0.0
    %2285 = vmatmul.mubr.f32.gmra.mrb[0].mxu0 %v2216
    %v2286 = vpop.f32.mrb[0].mxu0
    %v2287 = vadd.f32 0.0, %v2286
    %v2288 = vpop.f32.mrb[0].mxu0
    %2289 = vmatprep.mubr.f32.mxu0 0.0
    %2290 = vmatmul.mubr.f32.gmra.mrb[0].mxu0 %v2218
    %v2291 = vpop.f32.mrb[0].mxu0
    %v2292 = vadd.f32 0.0, %v2291
    %v2293 = vpop.f32.mrb[0].mxu0
    %2294 = vdwg.mxu0
    %v2297 = vcombine.high %v2287, %v2287
    %v2299 = vunpack.c.l.s4 1983009808
    %v2300 = vunpack.c.0.s8 %v2299
    %v2301 = vlaneseq
    %v2302 = vshrl.u32 %v2301, 7
    %v2303 = vsub.s32 %v2300, %v2302
    %v2304 = vrot.slane %v2287, %v2303
    %v2306 = vunpack.c.l.s4 1983009808
    %v2307 = vunpack.c.0.s8 %v2306
    %v2308 = vlaneseq
    %v2309 = vshrl.u32 %v2308, 7
    %v2310 = vsub.s32 %v2307, %v2309
    %v2311 = vrot.slane %v2297, %v2310
    %v2312 = vcombine.high %v2304, %v2304
    %v2313 = vcombine.high %v2311, %v2311
    %v2315 = vunpack.c.l.s4 1983009808
    %v2316 = vunpack.c.0.s8 %v2315
    %v2317 = vlaneseq
    %v2318 = vshrl.u32 %v2317, 7
    %v2319 = vsub.s32 %v2316, %v2318
    %v2320 = vrot.slane %v2292, %v2319
    %v2321 = vcombine.high %v2320, %v2320
    %v2322 = vld [vmem:[%s2] sm:$0xff]
    %v2323 = vld [vmem:[%s2 + $0x8] sm:$0xff]
    %v2324 = vld [vmem:[%s3] sm:$0xff]
    %v2325 = vld [vmem:[%s3 + $0x8] sm:$0xff]
    %v2326 = vld [vmem:[%s3 + $0x10] sm:$0xff]
    %v2327 = vld [vmem:[%s3 + $0x18] sm:$0xff]
    %v2328 = vld [vmem:[%s3 + $0x20] sm:$0xff]
    %v2329 = vld [vmem:[%s3 + $0x28] sm:$0xff]
    %v2330 = vld [vmem:[%s3 + $0x30] sm:$0xff]
    %v2331 = vld [vmem:[%s3 + $0x38] sm:$0xff]
    %v2332 = vcombine.low %v2304, %v2312
    %v2334 = vunpack.c.l.s4 1983009808
    %v2335 = vunpack.c.0.s8 %v2334
    %v2336 = vlaneseq
    %v2337 = vshrl.u32 %v2336, 7
    %v2338 = vsub.s32 %v2335, %v2337
    %v2339 = vrot.slane %v2332, %v2338
    %v2341 = vunpack.c.l.s4 1983009808
    %v2342 = vunpack.c.0.s8 %v2341
    %v2343 = vlaneseq
    %v2344 = vshrl.u32 %v2343, 7
    %v2345 = vsub.s32 %v2342, %v2344
    %v2346 = vrot.slane %v2311, %v2345
    %v2347 = vcombine.low %v2339, %v2346
    %v2348 = vsel %vm57, %v2347, 0
    %2350 = vmatprep.subr.mxu0 0.0
    %2351 = vmatpush1.msra.mxu0 %v2324
    %2352 = vmatprep.subr.mxu0 0.0
    %2353 = vmatpush1.msra.mxu0 %v2325
    %2354 = vmatprep.subr.mxu0 0.0
    %2355 = vmatpush1.msra.mxu0 %v2326
    %2356 = vmatprep.subr.mxu0 0.0
    %2357 = vmatpush1.msra.mxu0 %v2327
    %2358 = vmatprep.subr.mxu0 0.0
    %2359 = vmatpush1.msra.mxu0 0.0
    %2360 = vmatprep.subr.mxu0 0.0
    %2361 = vmatpush1.msra.mxu0 0.0
    %2362 = vmatprep.subr.mxu0 0.0
    %2363 = vmatpush1.msra.mxu0 0.0
    %2364 = vmatprep.subr.mxu0 0.0
    %2365 = vmatpush1.msra.mxu0 0.0
    %2366 = vmatprep.subr.mxu0 0.0
    %2367 = vmatpush1.msra.mxu0 0.0
    %2368 = vmatprep.subr.mxu0 0.0
    %2369 = vmatpush1.msra.mxu0 0.0
    %2370 = vmatprep.subr.mxu0 0.0
    %2371 = vmatpush1.msra.mxu0 0.0
    %2372 = vmatprep.subr.mxu0 0.0
    %2373 = vmatpush1.msra.mxu0 0.0
    %2374 = vmatprep.subr.mxu0 0.0
    %2375 = vmatpush1.msra.mxu0 0.0
    %2376 = vmatprep.subr.mxu0 0.0
    %2377 = vmatpush1.msra.mxu0 0.0
    %2378 = vmatprep.subr.mxu0 0.0
    %2379 = vmatpush1.msra.mxu0 0.0
    %2380 = vmatprep.subr.mxu0 0.0
    %2381 = vmatpush1.msra.mxu0 0.0
    %2382 = vmatprep.subr.mxu0 0.0
    %2383 = vmatpush1.msra.mxu0 0.0
    %2384 = vmatprep.subr.mxu0 0.0
    %2385 = vmatpush1.msra.mxu0 0.0
    %2386 = vmatprep.subr.mxu0 0.0
    %2387 = vmatpush1.msra.mxu0 0.0
    %2388 = vmatprep.subr.mxu0 0.0
    %2389 = vmatpush1.msra.mxu0 0.0
    %2390 = vmatprep.subr.mxu0 0.0
    %2391 = vmatpush1.msra.mxu0 0.0
    %2392 = vmatprep.subr.mxu0 0.0
    %2393 = vmatpush1.msra.mxu0 0.0
    %2394 = vmatprep.subr.mxu0 0.0
    %2395 = vmatpush1.msra.mxu0 0.0
    %2396 = vmatprep.subr.mxu0 0.0
    %2397 = vmatpush1.msra.mxu0 0.0
    %2398 = vmatprep.subr.mxu0 0.0
    %2399 = vmatpush1.msra.mxu0 0.0
    %2400 = vmatprep.subr.mxu0 0.0
    %2401 = vmatpush1.msra.mxu0 0.0
    %2402 = vmatprep.subr.mxu0 0.0
    %2403 = vmatpush1.msra.mxu0 0.0
    %2404 = vmatprep.subr.mxu0 0.0
    %2405 = vmatpush1.msra.mxu0 0.0
    %2406 = vmatprep.subr.mxu0 0.0
    %2407 = vmatpush1.msra.mxu0 0.0
    %2408 = vmatprep.subr.mxu0 0.0
    %2409 = vmatpush1.msra.mxu0 0.0
    %2410 = vmatprep.subr.mxu0 0.0
    %2411 = vmatpush1.msra.mxu0 0.0
    %2412 = vmatprep.subr.mxu0 0.0
    %2413 = vmatpush1.msra.mxu0 0.0
    %2414 = vmatprep.mubr.f32.mxu0 0.0
    %2415 = vmatmul.mubr.f32.gmra.mrb[0].mxu0 %v2348
    %v2416 = vpop.f32.mrb[0].mxu0
    %v2417 = vadd.f32 0.0, %v2416
    %v2418 = vpop.f32.mrb[0].mxu0
    %2419 = vdwg.mxu0
    %v2420 = vcombine.low %v2313, %v2320
    %v2422 = vunpack.c.l.s4 1983009808
    %v2423 = vunpack.c.0.s8 %v2422
    %v2424 = vlaneseq
    %v2425 = vshrl.u32 %v2424, 7
    %v2426 = vsub.s32 %v2423, %v2425
    %v2427 = vrot.slane %v2420, %v2426
    %v2429 = vunpack.c.l.s4 1983009808
    %v2430 = vunpack.c.0.s8 %v2429
    %v2431 = vlaneseq
    %v2432 = vshrl.u32 %v2431, 7
    %v2433 = vsub.s32 %v2430, %v2432
    %v2434 = vrot.slane %v2321, %v2433
    %v2435 = vcombine.low %v2427, %v2434
    %v2436 = vsel %vm57, %v2435, 0
    %2438 = vmatprep.subr.mxu0 0.0
    %2439 = vmatpush1.msra.mxu0 %v2328
    %2440 = vmatprep.subr.mxu0 0.0
    %2441 = vmatpush1.msra.mxu0 %v2329
    %2442 = vmatprep.subr.mxu0 0.0
    %2443 = vmatpush1.msra.mxu0 %v2330
    %2444 = vmatprep.subr.mxu0 0.0
    %2445 = vmatpush1.msra.mxu0 %v2331
    %2446 = vmatprep.subr.mxu0 0.0
    %2447 = vmatpush1.msra.mxu0 0.0
    %2448 = vmatprep.subr.mxu0 0.0
    %2449 = vmatpush1.msra.mxu0 0.0
    %2450 = vmatprep.subr.mxu0 0.0
    %2451 = vmatpush1.msra.mxu0 0.0
    %2452 = vmatprep.subr.mxu0 0.0
    %2453 = vmatpush1.msra.mxu0 0.0
    %2454 = vmatprep.subr.mxu0 0.0
    %2455 = vmatpush1.msra.mxu0 0.0
    %2456 = vmatprep.subr.mxu0 0.0
    %2457 = vmatpush1.msra.mxu0 0.0
    %2458 = vmatprep.subr.mxu0 0.0
    %2459 = vmatpush1.msra.mxu0 0.0
    %2460 = vmatprep.subr.mxu0 0.0
    %2461 = vmatpush1.msra.mxu0 0.0
    %2462 = vmatprep.subr.mxu0 0.0
    %2463 = vmatpush1.msra.mxu0 0.0
    %2464 = vmatprep.subr.mxu0 0.0
    %2465 = vmatpush1.msra.mxu0 0.0
    %2466 = vmatprep.subr.mxu0 0.0
    %2467 = vmatpush1.msra.mxu0 0.0
    %2468 = vmatprep.subr.mxu0 0.0
    %2469 = vmatpush1.msra.mxu0 0.0
    %2470 = vmatprep.subr.mxu0 0.0
    %2471 = vmatpush1.msra.mxu0 0.0
    %2472 = vmatprep.subr.mxu0 0.0
    %2473 = vmatpush1.msra.mxu0 0.0
    %2474 = vmatprep.subr.mxu0 0.0
    %2475 = vmatpush1.msra.mxu0 0.0
    %2476 = vmatprep.subr.mxu0 0.0
    %2477 = vmatpush1.msra.mxu0 0.0
    %2478 = vmatprep.subr.mxu0 0.0
    %2479 = vmatpush1.msra.mxu0 0.0
    %2480 = vmatprep.subr.mxu0 0.0
    %2481 = vmatpush1.msra.mxu0 0.0
    %2482 = vmatprep.subr.mxu0 0.0
    %2483 = vmatpush1.msra.mxu0 0.0
    %2484 = vmatprep.subr.mxu0 0.0
    %2485 = vmatpush1.msra.mxu0 0.0
    %2486 = vmatprep.subr.mxu0 0.0
    %2487 = vmatpush1.msra.mxu0 0.0
    %2488 = vmatprep.subr.mxu0 0.0
    %2489 = vmatpush1.msra.mxu0 0.0
    %2490 = vmatprep.subr.mxu0 0.0
    %2491 = vmatpush1.msra.mxu0 0.0
    %2492 = vmatprep.subr.mxu0 0.0
    %2493 = vmatpush1.msra.mxu0 0.0
    %2494 = vmatprep.subr.mxu0 0.0
    %2495 = vmatpush1.msra.mxu0 0.0
    %2496 = vmatprep.subr.mxu0 0.0
    %2497 = vmatpush1.msra.mxu0 0.0
    %2498 = vmatprep.subr.mxu0 0.0
    %2499 = vmatpush1.msra.mxu0 0.0
    %2500 = vmatprep.subr.mxu0 0.0
    %2501 = vmatpush1.msra.mxu0 0.0
    %2502 = vmatprep.mubr.f32.mxu0 0.0
    %2503 = vmatmul.mubr.f32.gmra.mrb[0].mxu0 %v2436
    %v2504 = vpop.f32.mrb[0].mxu0
    %v2505 = vadd.f32 0.0, %v2504
    %v2506 = vpop.f32.mrb[0].mxu0
    %2507 = vdwg.mxu0
    %vm2508 = vcmask 62464
    %v2509 = vsel %vm2508, %v2417, -inf
    %2510 = vmax.xlane.f32.xlu0 %v2509
    %v2511 = vpop.xlane.xlu0 %2510
    %v2512 = vsel %vm2508, %v2505, -inf
    %2513 = vmax.xlane.f32.xlu0 %v2512
    %v2514 = vpop.xlane.xlu0 %2513
    %v2515 = vsub.f32 %v2417, %v2511
    %v2516 = vsub.f32 %v2505, %v2514
    %v2517 = vmul.f32 %v2515, 1.442695
    %v2518 = vpow.pop %v2517
    %v2519 = vmul.f32 %v2516, 1.442695
    %v2520 = vpow.pop %v2519
    %v2521 = vsel %vm2508, %v2518, 0.0
    %2522 = vadd.xlane.f32.xlu0 %v2521
    %v2523 = vpop.xlane.xlu0 %2522
    %v2524 = vsel %vm2508, %v2520, 0.0
    %2525 = vadd.xlane.f32.xlu0 %v2524
    %v2526 = vpop.xlane.xlu0 %2525
    %v2527 = vrcp.pop %v2523
    %v2528 = vrcp.pop %v2526
    %v2529 = vmul.f32 %v2518, %v2527
    %v2530 = vmul.f32 %v2520, %v2528
    %vm2531 = vcmask 64512
    %v2533 = vsel %vm2531, %v2529, 0
    %2535 = vmatprep.subr.mxu0 0.0
    %2536 = vmatpush1.msra.mxu0 %v2322
    %2537 = vmatprep.subr.mxu0 0.0
    %2538 = vmatpush1.msra.mxu0 0.0
    %2539 = vmatprep.subr.mxu0 0.0
    %2540 = vmatpush1.msra.mxu0 0.0
    %2541 = vmatprep.subr.mxu0 0.0
    %2542 = vmatpush1.msra.mxu0 0.0
    %2543 = vmatprep.subr.mxu0 0.0
    %2544 = vmatpush1.msra.mxu0 0.0
    %2545 = vmatprep.subr.mxu0 0.0
    %2546 = vmatpush1.msra.mxu0 0.0
    %2547 = vmatprep.subr.mxu0 0.0
    %2548 = vmatpush1.msra.mxu0 0.0
    %2549 = vmatprep.subr.mxu0 0.0
    %2550 = vmatpush1.msra.mxu0 0.0
    %2551 = vmatprep.subr.mxu0 0.0
    %2552 = vmatpush1.msra.mxu0 0.0
    %2553 = vmatprep.subr.mxu0 0.0
    %2554 = vmatpush1.msra.mxu0 0.0
    %2555 = vmatprep.subr.mxu0 0.0
    %2556 = vmatpush1.msra.mxu0 0.0
    %2557 = vmatprep.subr.mxu0 0.0
    %2558 = vmatpush1.msra.mxu0 0.0
    %2559 = vmatprep.subr.mxu0 0.0
    %2560 = vmatpush1.msra.mxu0 0.0
    %2561 = vmatprep.subr.mxu0 0.0
    %2562 = vmatpush1.msra.mxu0 0.0
    %2563 = vmatprep.subr.mxu0 0.0
    %2564 = vmatpush1.msra.mxu0 0.0
    %2565 = vmatprep.subr.mxu0 0.0
    %2566 = vmatpush1.msra.mxu0 0.0
    %2567 = vmatprep.subr.mxu0 0.0
    %2568 = vmatpush1.msra.mxu0 0.0
    %2569 = vmatprep.subr.mxu0 0.0
    %2570 = vmatpush1.msra.mxu0 0.0
    %2571 = vmatprep.subr.mxu0 0.0
    %2572 = vmatpush1.msra.mxu0 0.0
    %2573 = vmatprep.subr.mxu0 0.0
    %2574 = vmatpush1.msra.mxu0 0.0
    %2575 = vmatprep.subr.mxu0 0.0
    %2576 = vmatpush1.msra.mxu0 0.0
    %2577 = vmatprep.subr.mxu0 0.0
    %2578 = vmatpush1.msra.mxu0 0.0
    %2579 = vmatprep.subr.mxu0 0.0
    %2580 = vmatpush1.msra.mxu0 0.0
    %2581 = vmatprep.subr.mxu0 0.0
    %2582 = vmatpush1.msra.mxu0 0.0
    %2583 = vmatprep.subr.mxu0 0.0
    %2584 = vmatpush1.msra.mxu0 0.0
    %2585 = vmatprep.subr.mxu0 0.0
    %2586 = vmatpush1.msra.mxu0 0.0
    %2587 = vmatprep.subr.mxu0 0.0
    %2588 = vmatpush1.msra.mxu0 0.0
    %2589 = vmatprep.subr.mxu0 0.0
    %2590 = vmatpush1.msra.mxu0 0.0
    %2591 = vmatprep.subr.mxu0 0.0
    %2592 = vmatpush1.msra.mxu0 0.0
    %2593 = vmatprep.subr.mxu0 0.0
    %2594 = vmatpush1.msra.mxu0 0.0
    %2595 = vmatprep.subr.mxu0 0.0
    %2596 = vmatpush1.msra.mxu0 0.0
    %2597 = vmatprep.subr.mxu0 0.0
    %2598 = vmatpush1.msra.mxu0 0.0
    %2599 = vmatprep.mubr.f32.mxu0 0.0
    %2600 = vmatmul.mubr.f32.gmra.mrb[0].mxu0 %v2533
    %v2601 = vpop.f32.mrb[0].mxu0
    %v2602 = vadd.f32 0.0, %v2601
    %v2603 = vpop.f32.mrb[0].mxu0
    %2604 = vdwg.mxu0
    %v2606 = vsel %vm2531, %v2530, 0
    %2608 = vmatprep.subr.mxu0 0.0
    %2609 = vmatpush1.msra.mxu0 %v2323
    %2610 = vmatprep.subr.mxu0 0.0
    %2611 = vmatpush1.msra.mxu0 0.0
    %2612 = vmatprep.subr.mxu0 0.0
    %2613 = vmatpush1.msra.mxu0 0.0
    %2614 = vmatprep.subr.mxu0 0.0
    %2615 = vmatpush1.msra.mxu0 0.0
    %2616 = vmatprep.subr.mxu0 0.0
    %2617 = vmatpush1.msra.mxu0 0.0
    %2618 = vmatprep.subr.mxu0 0.0
    %2619 = vmatpush1.msra.mxu0 0.0
    %2620 = vmatprep.subr.mxu0 0.0
    %2621 = vmatpush1.msra.mxu0 0.0
    %2622 = vmatprep.subr.mxu0 0.0
    %2623 = vmatpush1.msra.mxu0 0.0
    %2624 = vmatprep.subr.mxu0 0.0
    %2625 = vmatpush1.msra.mxu0 0.0
    %2626 = vmatprep.subr.mxu0 0.0
    %2627 = vmatpush1.msra.mxu0 0.0
    %2628 = vmatprep.subr.mxu0 0.0
    %2629 = vmatpush1.msra.mxu0 0.0
    %2630 = vmatprep.subr.mxu0 0.0
    %2631 = vmatpush1.msra.mxu0 0.0
    %2632 = vmatprep.subr.mxu0 0.0
    %2633 = vmatpush1.msra.mxu0 0.0
    %2634 = vmatprep.subr.mxu0 0.0
    %2635 = vmatpush1.msra.mxu0 0.0
    %2636 = vmatprep.subr.mxu0 0.0
    %2637 = vmatpush1.msra.mxu0 0.0
    %2638 = vmatprep.subr.mxu0 0.0
    %2639 = vmatpush1.msra.mxu0 0.0
    %2640 = vmatprep.subr.mxu0 0.0
    %2641 = vmatpush1.msra.mxu0 0.0
    %2642 = vmatprep.subr.mxu0 0.0
    %2643 = vmatpush1.msra.mxu0 0.0
    %2644 = vmatprep.subr.mxu0 0.0
    %2645 = vmatpush1.msra.mxu0 0.0
    %2646 = vmatprep.subr.mxu0 0.0
    %2647 = vmatpush1.msra.mxu0 0.0
    %2648 = vmatprep.subr.mxu0 0.0
    %2649 = vmatpush1.msra.mxu0 0.0
    %2650 = vmatprep.subr.mxu0 0.0
    %2651 = vmatpush1.msra.mxu0 0.0
    %2652 = vmatprep.subr.mxu0 0.0
    %2653 = vmatpush1.msra.mxu0 0.0
    %2654 = vmatprep.subr.mxu0 0.0
    %2655 = vmatpush1.msra.mxu0 0.0
    %2656 = vmatprep.subr.mxu0 0.0
    %2657 = vmatpush1.msra.mxu0 0.0
    %2658 = vmatprep.subr.mxu0 0.0
    %2659 = vmatpush1.msra.mxu0 0.0
    %2660 = vmatprep.subr.mxu0 0.0
    %2661 = vmatpush1.msra.mxu0 0.0
    %2662 = vmatprep.subr.mxu0 0.0
    %2663 = vmatpush1.msra.mxu0 0.0
    %2664 = vmatprep.subr.mxu0 0.0
    %2665 = vmatpush1.msra.mxu0 0.0
    %2666 = vmatprep.subr.mxu0 0.0
    %2667 = vmatpush1.msra.mxu0 0.0
    %2668 = vmatprep.subr.mxu0 0.0
    %2669 = vmatpush1.msra.mxu0 0.0
    %2670 = vmatprep.subr.mxu0 0.0
    %2671 = vmatpush1.msra.mxu0 0.0
    %2672 = vmatprep.mubr.f32.mxu0 0.0
    %2673 = vmatmul.mubr.f32.gmra.mrb[0].mxu0 %v2606
    %v2674 = vpop.f32.mrb[0].mxu0
    %v2675 = vadd.f32 0.0, %v2674
    %v2676 = vpop.f32.mrb[0].mxu0
    %2677 = vdwg.mxu0
    %v2680 = vcombine.high %v2602, %v2602
    %v2682 = vunpack.c.l.s4 1983009808
    %v2683 = vunpack.c.0.s8 %v2682
    %v2684 = vlaneseq
    %v2685 = vshrl.u32 %v2684, 7
    %v2686 = vsub.s32 %v2683, %v2685
    %v2687 = vrot.slane %v2602, %v2686
    %v2689 = vunpack.c.l.s4 1983009808
    %v2690 = vunpack.c.0.s8 %v2689
    %v2691 = vlaneseq
    %v2692 = vshrl.u32 %v2691, 7
    %v2693 = vsub.s32 %v2690, %v2692
    %v2694 = vrot.slane %v2680, %v2693
    %v2695 = vcombine.high %v2687, %v2687
    %v2696 = vcombine.high %v2675, %v2675
    %v2698 = vunpack.c.l.s4 1983009808
    %v2699 = vunpack.c.0.s8 %v2698
    %v2700 = vlaneseq
    %v2701 = vshrl.u32 %v2700, 7
    %v2702 = vsub.s32 %v2699, %v2701
    %v2703 = vrot.slane %v2675, %v2702
    %v2705 = vunpack.c.l.s4 1983009808
    %v2706 = vunpack.c.0.s8 %v2705
    %v2707 = vlaneseq
    %v2708 = vshrl.u32 %v2707, 7
    %v2709 = vsub.s32 %v2706, %v2708
    %v2710 = vrot.slane %v2696, %v2709
    %v2711 = vcombine.high %v2703, %v2703
    %2712 = vmatprep.subr.mxu0 0.0
    %2713 = vmatpush1.msra.mxu0 %v180
    %2714 = vmatprep.subr.mxu0 0.0
    %2715 = vmatpush1.msra.mxu0 %v181
    %2716 = vmatprep.subr.mxu0 0.0
    %2717 = vmatpush1.msra.mxu0 %v182
    %2718 = vmatprep.subr.mxu0 0.0
    %2719 = vmatpush1.msra.mxu0 %v183
    %2720 = vmatprep.subr.mxu0 0.0
    %2721 = vmatpush1.msra.mxu0 0.0
    %2722 = vmatprep.subr.mxu0 0.0
    %2723 = vmatpush1.msra.mxu0 0.0
    %2724 = vmatprep.subr.mxu0 0.0
    %2725 = vmatpush1.msra.mxu0 0.0
    %2726 = vmatprep.subr.mxu0 0.0
    %2727 = vmatpush1.msra.mxu0 0.0
    %2728 = vmatprep.subr.mxu0 0.0
    %2729 = vmatpush1.msra.mxu0 0.0
    %2730 = vmatprep.subr.mxu0 0.0
    %2731 = vmatpush1.msra.mxu0 0.0
    %2732 = vmatprep.subr.mxu0 0.0
    %2733 = vmatpush1.msra.mxu0 0.0
    %2734 = vmatprep.subr.mxu0 0.0
    %2735 = vmatpush1.msra.mxu0 0.0
    %2736 = vmatprep.subr.mxu0 0.0
    %2737 = vmatpush1.msra.mxu0 0.0
    %2738 = vmatprep.subr.mxu0 0.0
    %2739 = vmatpush1.msra.mxu0 0.0
    %2740 = vmatprep.subr.mxu0 0.0
    %2741 = vmatpush1.msra.mxu0 0.0
    %2742 = vmatprep.subr.mxu0 0.0
    %2743 = vmatpush1.msra.mxu0 0.0
    %2744 = vmatprep.subr.mxu0 0.0
    %2745 = vmatpush1.msra.mxu0 0.0
    %2746 = vmatprep.subr.mxu0 0.0
    %2747 = vmatpush1.msra.mxu0 0.0
    %2748 = vmatprep.subr.mxu0 0.0
    %2749 = vmatpush1.msra.mxu0 0.0
    %2750 = vmatprep.subr.mxu0 0.0
    %2751 = vmatpush1.msra.mxu0 0.0
    %2752 = vmatprep.subr.mxu0 0.0
    %2753 = vmatpush1.msra.mxu0 0.0
    %2754 = vmatprep.subr.mxu0 0.0
    %2755 = vmatpush1.msra.mxu0 0.0
    %2756 = vmatprep.subr.mxu0 0.0
    %2757 = vmatpush1.msra.mxu0 0.0
    %2758 = vmatprep.subr.mxu0 0.0
    %2759 = vmatpush1.msra.mxu0 0.0
    %2760 = vmatprep.subr.mxu0 0.0
    %2761 = vmatpush1.msra.mxu0 0.0
    %2762 = vmatprep.subr.mxu0 0.0
    %2763 = vmatpush1.msra.mxu0 0.0
    %2764 = vmatprep.subr.mxu0 0.0
    %2765 = vmatpush1.msra.mxu0 0.0
    %2766 = vmatprep.subr.mxu0 0.0
    %2767 = vmatpush1.msra.mxu0 0.0
    %2768 = vmatprep.subr.mxu0 0.0
    %2769 = vmatpush1.msra.mxu0 0.0
    %2770 = vmatprep.subr.mxu0 0.0
    %2771 = vmatpush1.msra.mxu0 0.0
    %2772 = vmatprep.subr.mxu0 0.0
    %2773 = vmatpush1.msra.mxu0 0.0
    %2774 = vmatprep.subr.mxu0 0.0
    %2775 = vmatpush1.msra.mxu0 0.0
    %2776 = vmatprep.mubr.f32.mxu0 0.0
    %2777 = vmatmul.mubr.f32.gmra.mrb[0].mxu0 %v2216
    %v2778 = vpop.f32.mrb[0].mxu0
    %v2779 = vadd.f32 0.0, %v2778
    %v2780 = vpop.f32.mrb[0].mxu0
    %2781 = vmatprep.mubr.f32.mxu0 0.0
    %2782 = vmatmul.mubr.f32.gmra.mrb[0].mxu0 %v2218
    %v2783 = vpop.f32.mrb[0].mxu0
    %v2784 = vadd.f32 0.0, %v2783
    %v2785 = vpop.f32.mrb[0].mxu0
    %2786 = vdwg.mxu0
    %v2787 = vcombine.low %v2687, %v2695
    %v2788 = vcombine.low %v2694, %v2703
    %v2790 = vunpack.c.l.s4 1983009808
    %v2791 = vunpack.c.0.s8 %v2790
    %v2792 = vlaneseq
    %v2793 = vshrl.u32 %v2792, 7
    %v2794 = vsub.s32 %v2791, %v2793
    %v2795 = vrot.slane %v2787, %v2794
    %v2797 = vunpack.c.l.s4 1983009808
    %v2798 = vunpack.c.0.s8 %v2797
    %v2799 = vlaneseq
    %v2800 = vshrl.u32 %v2799, 7
    %v2801 = vsub.s32 %v2798, %v2800
    %v2802 = vrot.slane %v2788, %v2801
    %v2803 = vcombine.low %v2795, %v2802
    %v2804 = vcombine.low %v2711, %v2710
    %v2806 = vunpack.c.l.s4 1983009808
    %v2807 = vunpack.c.0.s8 %v2806
    %v2808 = vlaneseq
    %v2809 = vshrl.u32 %v2808, 7
    %v2810 = vsub.s32 %v2807, %v2809
    %v2811 = vrot.slane %v2804, %v2810
    %v2812 = vsel %vm57, %v2803, 0
    %v2814 = vsel %vm57, %v2811, 0
    %2816 = vmatprep.subr.mxu0 0.0
    %2817 = vmatpush1.msra.mxu0 %v176
    %2818 = vmatprep.subr.mxu0 0.0
    %2819 = vmatpush1.msra.mxu0 %v177
    %2820 = vmatprep.subr.mxu0 0.0
    %2821 = vmatpush1.msra.mxu0 %v178
    %2822 = vmatprep.subr.mxu0 0.0
    %2823 = vmatpush1.msra.mxu0 %v179
    %2824 = vmatprep.subr.mxu0 0.0
    %2825 = vmatpush1.msra.mxu0 0.0
    %2826 = vmatprep.subr.mxu0 0.0
    %2827 = vmatpush1.msra.mxu0 0.0
    %2828 = vmatprep.subr.mxu0 0.0
    %2829 = vmatpush1.msra.mxu0 0.0
    %2830 = vmatprep.subr.mxu0 0.0
    %2831 = vmatpush1.msra.mxu0 0.0
    %2832 = vmatprep.subr.mxu0 0.0
    %2833 = vmatpush1.msra.mxu0 0.0
    %2834 = vmatprep.subr.mxu0 0.0
    %2835 = vmatpush1.msra.mxu0 0.0
    %2836 = vmatprep.subr.mxu0 0.0
    %2837 = vmatpush1.msra.mxu0 0.0
    %2838 = vmatprep.subr.mxu0 0.0
    %2839 = vmatpush1.msra.mxu0 0.0
    %2840 = vmatprep.subr.mxu0 0.0
    %2841 = vmatpush1.msra.mxu0 0.0
    %2842 = vmatprep.subr.mxu0 0.0
    %2843 = vmatpush1.msra.mxu0 0.0
    %2844 = vmatprep.subr.mxu0 0.0
    %2845 = vmatpush1.msra.mxu0 0.0
    %2846 = vmatprep.subr.mxu0 0.0
    %2847 = vmatpush1.msra.mxu0 0.0
    %2848 = vmatprep.subr.mxu0 0.0
    %2849 = vmatpush1.msra.mxu0 0.0
    %2850 = vmatprep.subr.mxu0 0.0
    %2851 = vmatpush1.msra.mxu0 0.0
    %2852 = vmatprep.subr.mxu0 0.0
    %2853 = vmatpush1.msra.mxu0 0.0
    %2854 = vmatprep.subr.mxu0 0.0
    %2855 = vmatpush1.msra.mxu0 0.0
    %2856 = vmatprep.subr.mxu0 0.0
    %2857 = vmatpush1.msra.mxu0 0.0
    %2858 = vmatprep.subr.mxu0 0.0
    %2859 = vmatpush1.msra.mxu0 0.0
    %2860 = vmatprep.subr.mxu0 0.0
    %2861 = vmatpush1.msra.mxu0 0.0
    %2862 = vmatprep.subr.mxu0 0.0
    %2863 = vmatpush1.msra.mxu0 0.0
    %2864 = vmatprep.subr.mxu0 0.0
    %2865 = vmatpush1.msra.mxu0 0.0
    %2866 = vmatprep.subr.mxu0 0.0
    %2867 = vmatpush1.msra.mxu0 0.0
    %2868 = vmatprep.subr.mxu0 0.0
    %2869 = vmatpush1.msra.mxu0 0.0
    %2870 = vmatprep.subr.mxu0 0.0
    %2871 = vmatpush1.msra.mxu0 0.0
    %2872 = vmatprep.subr.mxu0 0.0
    %2873 = vmatpush1.msra.mxu0 0.0
    %2874 = vmatprep.subr.mxu0 0.0
    %2875 = vmatpush1.msra.mxu0 0.0
    %2876 = vmatprep.subr.mxu0 0.0
    %2877 = vmatpush1.msra.mxu0 0.0
    %2878 = vmatprep.subr.mxu0 0.0
    %2879 = vmatpush1.msra.mxu0 0.0
    %2880 = vmatprep.mubr.f32.mxu0 0.0
    %2881 = vmatmul.mubr.f32.gmra.mrb[0].mxu0 %v2812
    %v2882 = vpop.f32.mrb[0].mxu0
    %v2883 = vadd.f32 %v2779, %v2882
    %v2884 = vpop.f32.mrb[0].mxu0
    %2885 = vmatprep.mubr.f32.mxu0 0.0
    %2886 = vmatmul.mubr.f32.gmra.mrb[0].mxu0 %v2814
    %v2887 = vpop.f32.mrb[0].mxu0
    %v2888 = vadd.f32 %v2784, %v2887
    %v2889 = vpop.f32.mrb[0].mxu0
    %2890 = vdwg.mxu0
    %v2891 = vtanh.pop %v2883
    %v2892 = vtanh.pop %v2888
    %2893 = vst.msk [vmem:[%s12] sm:$0xff] %vm57, %v2891
    %vm2894 = vcmask 257024
    %2895 = vst.msk [vmem:[%s12 + $0x8] sm:$0xf] %vm2894, %v2892
    %vm2897 = vcmask 254976
    %2898 = vst.msk [vmem:[#allocation2] sm:$0x3] %vm2897, %v1779
    %2899 = vrot.lane.b32.xlu0 %v1952, 96
    %v2900 = vpop.permute.xlu0 %2899
    %s2902 = scalar_lea.vmem [#allocation2], 2
    %2903 = vst.msk [vmem:[%s2902] sm:$0x3] %vm2897, %v2900
    // Predicated region
    $region50: #{decoder_forward.1} parent=1 // pred_check
      _
    $region51: #{decoder_forward.1} parent=1 // pred_check_branch
      %2905 = sbr.rel (0) target = $region53
    $region52: #{decoder_forward.1} parent=1 // pred_region
      _
    $region53: #{decoder_forward.1} parent=1 // pred_fallthru
      _
    // Predicated region
    $region54: #{decoder_forward.1} parent=1 // pred_check
      _
    $region55: #{decoder_forward.1} parent=1 // pred_check_branch
      %2907 = sbr.rel (0) target = $region57
    $region56: #{decoder_forward.1} parent=1 // pred_region
      %s2909 = ssub.s32 64, 64
      %2910 = vsyncadd [#allocation3], %s2909
      %s2911 = sshll.u32 [#allocation2], 4
      %s2912 = int_to_ptr.vmem [resolvable:$true] %s2911
      %2917 = dma.vmem_to_hbm [thread:$0]  %s2912, 64, %s13, [#allocation3], 32, 32, 2
    $region57: #{decoder_forward.1} parent=1 // pred_fallthru
      _
    // Predicated region
    $region58: #{decoder_forward.1} parent=1 // pred_check
      _
    $region59: #{decoder_forward.1} parent=1 // pred_check_branch
      %2919 = sbr.rel (0) target = $region61
    $region60: #{decoder_forward.1} parent=1 // pred_region
      _
    $region61: #{decoder_forward.1} parent=1 // pred_fallthru
      _
    // Predicated region
    $region62: #{decoder_forward.1} parent=1 // pred_check
      _
    $region63: #{decoder_forward.1} parent=1 // pred_check_branch
      %2921 = sbr.rel (0) target = $region65
    $region64: #{decoder_forward.1} parent=1 // pred_region
      %2922 = dma.done [#allocation3], 64
    $region65: #{decoder_forward.1} parent=1 // pred_fallthru
      _
    %2923 = vsyncpa [#allocation3], 1

</llo_original>
